<compile_context>
chip_gen: v6e
topology: v6e:2x2x1
jax: 0.10.0
libtpu: 0.0.40
codegen_flags: <defaults>
</compile_context>

<pallas_src>
import math

import jax
import jax.numpy as jnp
from jax import lax
from jax.experimental import pallas as pl
from jax.experimental.pallas import tpu as pltpu

_LEAKY_SLOPE = 0.01


def _round_up(n, m):
    return ((n + m - 1) // m) * m


def _block_configs(in_channels, channels, depth, reduced_size):
    """(cin, cout, dilation, has_residual_conv) for every CausalConvolutionBlock."""
    cfgs = []
    dilation = 1
    for i in range(depth):
        cin = in_channels if i == 0 else channels
        cfgs.append((cin, channels, dilation, cin != channels))
        dilation *= 2
    cfgs.append((channels, reduced_size, dilation, channels != reduced_size))
    return tuple(cfgs)


def _leaky_relu(v):
    return jnp.where(v >= 0, v, _LEAKY_SLOPE * v)


# --------------------------------------------------------------------------- #
# Host-side parameter packing: ONE lane-padded weight slab for the whole model #
# --------------------------------------------------------------------------- #
def pack_weight_slab(params, cfgs, kernel_size, compute_dtype=jnp.float32):
    """Pack every parameter into one (rows, lane_width) slab.

    Every parameter starts on an 8-row boundary.  Conv weights are stored
    tap-major as (K*cin, cout): tap k occupies rows [k*cin, (k+1)*cin).
    Returns (slab, block_offsets, (fc_w_off, fc_b_off)).
    """
    K = kernel_size
    mats, order = [], []

    def to_mat(w):  # torch layout (cout, cin, K) -> (K*cin, cout)
        cout, cin, k = w.shape
        return jnp.transpose(w, (2, 1, 0)).reshape(k * cin, cout)

    for blk, (cin, cout, _d, has_res) in zip(params["blocks"], cfgs):
        entry = {"w1": len(mats)}
        mats.append(to_mat(blk["w1"]))
        entry["b1"] = len(mats)
        mats.append(blk["b1"].reshape(1, -1))
        entry["w2"] = len(mats)
        mats.append(to_mat(blk["w2"]))
        entry["b2"] = len(mats)
        mats.append(blk["b2"].reshape(1, -1))
        if has_res:
            entry["wr"] = len(mats)
            mats.append(jnp.transpose(blk["wr"][:, :, 0]))        # (cin, cout)
            entry["br"] = len(mats)
            mats.append(blk["br"].reshape(1, -1))
        order.append(entry)
    fc_entry = {"w": len(mats)}
    mats.append(jnp.transpose(params["fc_w"]))                     # (reduced, out)
    fc_entry["b"] = len(mats)
    mats.append(params["fc_b"].reshape(1, -1))

    lane_w = max(128, _round_up(max(m.shape[1] for m in mats), 128))
    parts, offsets, cursor = [], [], 0
    for m in mats:
        r, c = m.shape
        rp = _round_up(r, 8)
        buf = jnp.zeros((rp, lane_w), compute_dtype)
        buf = buf.at[:r, :c].set(m.astype(compute_dtype))
        parts.append(buf)
        offsets.append(cursor)
        cursor += rp
    slab = jnp.concatenate(parts, axis=0)

    block_offs = []
    for entry, (_cin, _cout, _d, has_res) in zip(order, cfgs):
        block_offs.append(dict(
            w1=offsets[entry["w1"]], b1=offsets[entry["b1"]],
            w2=offsets[entry["w2"]], b2=offsets[entry["b2"]],
            wr=offsets[entry["wr"]] if has_res else -1,
            br=offsets[entry["br"]] if has_res else -1))
    return slab, tuple(block_offs), (offsets[fc_entry["w"]], offsets[fc_entry["b"]])


# --------------------------------------------------------------------------- #
# Fused kernel                                                                 #
# --------------------------------------------------------------------------- #
def _build_encoder_kernel(cfgs, block_offs, fc_offs, kernel_size, seq_len,
                          tb, padr, c_max, reduced_size, out_channels):
    K, L, PADR, TB = kernel_size, seq_len, padr, tb
    SLOT = PADR + L                    # rows per sample inside the slab
    N = TB * SLOT                      # total slab rows
    M = N - PADR                       # rows of every conv matmul (batch-tiled M)
    fc_w_off, fc_b_off = fc_offs

    def kernel(x_ref, w_ref, out_ref, buf_a, buf_b):
        f32 = jnp.float32

        # ---- prologue: zero per-sample causal-pad rows, place the TB inputs ----
        if PADR > 0:
            zpad = jnp.zeros((PADR, c_max), buf_a.dtype)
            for s in range(TB):
                buf_a[s * SLOT:s * SLOT + PADR, :] = zpad
                buf_b[s * SLOT:s * SLOT + PADR, :] = zpad
        cin0 = cfgs[0][0]
        for s in range(TB):
            base = s * SLOT + PADR
            buf_a[base:base + L, 0:cin0] = x_ref[s].astype(buf_a.dtype)

        def rezero_pad(buf, cout):
            # A full-height write starts at row PADR, so sample 0's pad rows are
            # never dirtied; re-zero the pad rows of samples 1..TB-1 only.
            if PADR > 0 and TB > 1:
                z = jnp.zeros((PADR, cout), buf.dtype)
                for s in range(1, TB):
                    buf[s * SLOT:s * SLOT + PADR, 0:cout] = z

        def causal_conv(src, w_off, b_off, cin, cout, dilation):
            # y[t] = b + sum_k x[t-(K-1-k)*d] @ W_k, computed for all TB samples
            # at once: one (M, cin) x (cin, cout) MXU matmul per tap.  The global
            # row shift never crosses a sample boundary because each sample has
            # PADR >= (K-1)*d zeroed pad rows in front of it.
            acc = None
            for k in range(K):
                shift = (K - 1 - k) * dilation
                xs = src[PADR - shift:PADR - shift + M, 0:cin]
                wk = w_ref[w_off + k * cin:w_off + (k + 1) * cin, 0:cout]
                term = jnp.dot(xs, wk, preferred_element_type=f32)
                acc = term if acc is None else acc + term
            return acc + w_ref[b_off:b_off + 1, 0:cout].astype(f32)

        # ---- CausalCNN blocks (activations stay resident in the VMEM slabs) ----
        for (cin, cout, dilation, has_res), off in zip(cfgs, block_offs):
            h1 = _leaky_relu(
                causal_conv(buf_a, off["w1"], off["b1"], cin, cout, dilation))
            buf_b[PADR:N, 0:cout] = h1.astype(buf_b.dtype)
            rezero_pad(buf_b, cout)

            h2 = _leaky_relu(
                causal_conv(buf_b, off["w2"], off["b2"], cout, cout, dilation))

            x_in = buf_a[PADR:N, 0:cin]
            if has_res:
                wr = w_ref[off["wr"]:off["wr"] + cin, 0:cout]
                res = (jnp.dot(x_in, wr, preferred_element_type=f32)
                       + w_ref[off["br"]:off["br"] + 1, 0:cout].astype(f32))
            else:
                res = x_in.astype(f32)
            # final=False for every block inside CausalCNN -> no activation here.
            buf_a[PADR:N, 0:cout] = (h2 + res).astype(buf_a.dtype)
            rezero_pad(buf_a, cout)

        # ---- AdaptiveMaxPool1d(1) + SqueezeChannels + Linear (fused) ----
        for s in range(TB):
            base = s * SLOT + PADR
            feat = buf_a[base:base + L, 0:reduced_size]
            buf_b[s:s + 1, 0:reduced_size] = jnp.max(feat, axis=0, keepdims=True)
        pooled = buf_b[0:TB, 0:reduced_size]                       # (TB, reduced)
        fcw = w_ref[fc_w_off:fc_w_off + reduced_size, 0:out_channels]
        fcb = w_ref[fc_b_off:fc_b_off + 1, 0:out_channels].astype(f32)
        out = jnp.dot(pooled, fcw, preferred_element_type=f32) + fcb
        out_ref[0] = out.astype(out_ref.dtype)                     # (TB, out)

    return kernel


def make_encoder_forward(in_channels, channels, depth, reduced_size, out_channels,
                         kernel_size, seq_len, batch, block_offs, fc_offs,
                         compute_dtype=jnp.float32):
    cfgs = _block_configs(in_channels, channels, depth, reduced_size)
    pad = (kernel_size - 1) * cfgs[-1][2]                           # largest dilation
    padr = _round_up(pad, 8) if pad > 0 else 0
    c_max = max([in_channels] + [cout for (_, cout, _, _) in cfgs])

    # Batch tile: target TB*seq_len >= ~256 rows per conv matmul, TB | batch.
    # (On v7x prefer keeping grid >= 2 so both TensorCores stay busy when batch
    #  is large; with tiny batches the single step dominates regardless.)
    tb = min(batch, max(1, -(-256 // max(seq_len, 1))))
    while batch % tb:
        tb -= 1
    grid = batch // tb
    slot = padr + seq_len
    nrows = tb * slot
    # VMEM budget (f32): 2 slabs * nrows * 128 lanes * 4B + weight slab + input
    # tile -- far below the 16-32 MiB scoped default at these shapes, so no
    # explicit vmem_limit_bytes override is needed.

    kernel = _build_encoder_kernel(cfgs, block_offs, fc_offs, kernel_size, seq_len,
                                   tb, padr, c_max, reduced_size, out_channels)

    def forward(x, wslab):
        """x: (batch, in_channels, seq_len), wslab: packed weights -> (batch, out)."""
        assert x.shape[0] == batch
        x_t = jnp.transpose(x, (0, 2, 1)).astype(compute_dtype)    # (B, L, Cin)

        out = pl.pallas_call(
            kernel,
            out_shape=jax.ShapeDtypeStruct((grid, tb, out_channels), jnp.float32),
            grid_spec=pltpu.PrefetchScalarGridSpec(
                num_scalar_prefetch=0,
                grid=(grid,),
                in_specs=[
                    pl.BlockSpec((tb, seq_len, in_channels), lambda g: (g, 0, 0)),
                    # one resident copy of ALL weights; block index never changes
                    pl.BlockSpec(wslab.shape, lambda g: (0, 0)),
                ],
                out_specs=pl.BlockSpec((1, tb, out_channels), lambda g: (g, 0, 0)),
                scratch_shapes=[
                    pltpu.VMEM((nrows, c_max), compute_dtype),      # layer-input slab
                    pltpu.VMEM((nrows, c_max), compute_dtype),      # intra-block slab
                ]),
            compiler_params=pltpu.CompilerParams(
                dimension_semantics=("parallel",)),
        )(x_t, wslab)
        return out.reshape(batch, out_channels)

    return forward


# --------------------------------------------------------------------------- #
# Parameter init + pure-JAX reference (correctness check)                      #
# --------------------------------------------------------------------------- #
def init_params(key, in_channels, channels, depth, reduced_size,
                out_channels, kernel_size):
    """Deterministic synthetic init mirroring the PyTorch parameter shapes/bounds."""
    cfgs = _block_configs(in_channels, channels, depth, reduced_size)
    n_keys = sum(6 if hr else 4 for (_, _, _, hr) in cfgs) + 2
    keys = jax.random.split(key, n_keys)
    counter = iter(range(n_keys))

    def unif(shape, bound):
        return jax.random.uniform(keys[next(counter)], shape, jnp.float32,
                                  -bound, bound)

    blocks = []
    for (cin, cout, _dil, has_res) in cfgs:
        bound1 = 1.0 / math.sqrt(cin * kernel_size)
        bound2 = 1.0 / math.sqrt(cout * kernel_size)
        blk = {
            "w1": unif((cout, cin, kernel_size), bound1),
            "b1": unif((cout,), bound1),
            "w2": unif((cout, cout, kernel_size), bound2),
            "b2": unif((cout,), bound2),
            "wr": None,
            "br": None,
        }
        if has_res:
            bound_r = 1.0 / math.sqrt(cin)
            blk["wr"] = unif((cout, cin, 1), bound_r)
            blk["br"] = unif((cout,), bound_r)
        blocks.append(blk)
    bound_fc = 1.0 / math.sqrt(reduced_size)
    return {
        "blocks": blocks,
        "fc_w": unif((out_channels, reduced_size), bound_fc),
        "fc_b": unif((out_channels,), bound_fc),
    }


def reference_forward(x, params, *, in_channels, channels, depth,
                      reduced_size, out_channels, kernel_size):
    """Pure-JAX (XLA conv) reference with PyTorch semantics."""
    cfgs = _block_configs(in_channels, channels, depth, reduced_size)
    K = kernel_size
    h = x.astype(jnp.float32)                                       # (B, C, L)
    L = h.shape[2]
    for blk, (cin, cout, dilation, has_res) in zip(params["blocks"], cfgs):
        pad = (K - 1) * dilation

        def cconv(inp, w, bias, _pad=pad, _dil=dilation):
            y = lax.conv_general_dilated(
                inp, w, window_strides=(1,), padding=[(_pad, _pad)],
                rhs_dilation=(_dil,), dimension_numbers=("NCH", "OIH", "NCH"))
            y = y[:, :, :L]                                          # Chomp1d
            return y + bias[None, :, None]

        a = jax.nn.leaky_relu(cconv(h, blk["w1"], blk["b1"]), _LEAKY_SLOPE)
        a = jax.nn.leaky_relu(cconv(a, blk["w2"], blk["b2"]), _LEAKY_SLOPE)
        if has_res:
            res = (jnp.einsum("bcl,oc->bol", h, blk["wr"][:, :, 0])
                   + blk["br"][None, :, None])
        else:
            res = h
        h = a + res
    pooled = jnp.max(h, axis=2)                                      # MaxPool1d(1)+squeeze
    return pooled @ params["fc_w"].T + params["fc_b"]


if __name__ == "__main__":
    in_channels, channels, depth = 4, 32, 2
    reduced_size, out_channels, kernel_size = 16, 8, 3
    batch, seq_len = 2, 16

    key = jax.random.PRNGKey(0)
    kx, kp = jax.random.split(key)
    x = jax.random.normal(kx, (batch, in_channels, seq_len), dtype=jnp.float32)
    params = init_params(kp, in_channels, channels, depth, reduced_size,
                         out_channels, kernel_size)

    cfgs = _block_configs(in_channels, channels, depth, reduced_size)
    wslab, block_offs, fc_offs = pack_weight_slab(params, cfgs, kernel_size)

    forward = make_encoder_forward(in_channels, channels, depth, reduced_size,
                                   out_channels, kernel_size, seq_len, batch,
                                   block_offs, fc_offs)
    fwd = jax.jit(forward)
    out = fwd(x, wslab)
    jax.block_until_ready(out)

    ref = reference_forward(x, params, in_channels=in_channels, channels=channels,
                            depth=depth, reduced_size=reduced_size,
                            out_channels=out_channels, kernel_size=kernel_size)
    assert out.shape == (batch, out_channels), out.shape
    assert jnp.allclose(out, ref, atol=2e-3, rtol=2e-3), (
        "mismatch vs reference: max abs diff = "
        f"{float(jnp.max(jnp.abs(out - ref)))}")
    print("KERNEL_OK")
</pallas_src>

<mosaic_0001>
module attributes {stable_mosaic.version = 11 : i64} {
  func.func @kernel(%arg0: i32, %arg1: memref<2x16x4xf32, #tpu.memory_space<vmem>>, %arg2: memref<576x128xf32, #tpu.memory_space<vmem>>, %arg3: memref<1x2x8xf32, #tpu.memory_space<vmem>>, %arg4: memref<48x32xf32, #tpu.memory_space<vmem>>, %arg5: memref<48x32xf32, #tpu.memory_space<vmem>>) attributes {dimension_semantics = [#tpu.dimension_semantics<parallel>], iteration_bounds = array<i64: 1>, scalar_prefetch = 0 : i64, scratch_operands = 2 : i64, tpu.core_type = #tpu.core_type<tc>, window_params = [{transform_indices = @transform_0, window_bounds = array<i64: 2, 16, 4>}, {pipeline_mode = #tpu.pipeline_mode<synchronous>, transform_indices = @transform_1, window_bounds = array<i64: 576, 128>}, {transform_indices = @transform_2, window_bounds = array<i64: 1, 2, 8>}]} {
    %cst = arith.constant 0.000000e+00 : f32
    %0 = vector.broadcast %cst : f32 to vector<8x32xf32>
    %c0 = arith.constant 0 : index
    %c0_0 = arith.constant 0 : index
    %1 = vector.load %arg4[%c0, %c0_0] : memref<48x32xf32, #tpu.memory_space<vmem>>, vector<8x32xf32>
    tpu.vector_store %arg4[%c0, %c0_0], %0 {strides = array<i32>} : memref<48x32xf32, #tpu.memory_space<vmem>>, vector<8x32xf32>,
    %c0_1 = arith.constant 0 : index
    %c0_2 = arith.constant 0 : index
    %2 = vector.load %arg5[%c0_1, %c0_2] : memref<48x32xf32, #tpu.memory_space<vmem>>, vector<8x32xf32>
    tpu.vector_store %arg5[%c0_1, %c0_2], %0 {strides = array<i32>} : memref<48x32xf32, #tpu.memory_space<vmem>>, vector<8x32xf32>,
    %c24 = arith.constant 24 : index
    %c0_3 = arith.constant 0 : index
    %3 = vector.load %arg4[%c24, %c0_3] : memref<48x32xf32, #tpu.memory_space<vmem>>, vector<8x32xf32>
    tpu.vector_store %arg4[%c24, %c0_3], %0 {strides = array<i32>} : memref<48x32xf32, #tpu.memory_space<vmem>>, vector<8x32xf32>,
    %c24_4 = arith.constant 24 : index
    %c0_5 = arith.constant 0 : index
    %4 = vector.load %arg5[%c24_4, %c0_5] : memref<48x32xf32, #tpu.memory_space<vmem>>, vector<8x32xf32>
    tpu.vector_store %arg5[%c24_4, %c0_5], %0 {strides = array<i32>} : memref<48x32xf32, #tpu.memory_space<vmem>>, vector<8x32xf32>,
    %c0_6 = arith.constant 0 : index
    %c0_7 = arith.constant 0 : index
    %c0_8 = arith.constant 0 : index
    %5 = vector.load %arg1[%c0_6, %c0_7, %c0_8] : memref<2x16x4xf32, #tpu.memory_space<vmem>>, vector<1x16x4xf32>
    %6 = vector.shape_cast %5 : vector<1x16x4xf32> to vector<16x4xf32>
    %c8 = arith.constant 8 : index
    %c0_9 = arith.constant 0 : index
    %7 = vector.load %arg4[%c8, %c0_9] : memref<48x32xf32, #tpu.memory_space<vmem>>, vector<16x4xf32>
    tpu.vector_store %arg4[%c8, %c0_9], %6 {strides = array<i32>} : memref<48x32xf32, #tpu.memory_space<vmem>>, vector<16x4xf32>,
    %c1 = arith.constant 1 : index
    %c0_10 = arith.constant 0 : index
    %c0_11 = arith.constant 0 : index
    %8 = vector.load %arg1[%c1, %c0_10, %c0_11] : memref<2x16x4xf32, #tpu.memory_space<vmem>>, vector<1x16x4xf32>
    %9 = vector.shape_cast %8 : vector<1x16x4xf32> to vector<16x4xf32>
    %c32 = arith.constant 32 : index
    %c0_12 = arith.constant 0 : index
    %10 = vector.load %arg4[%c32, %c0_12] : memref<48x32xf32, #tpu.memory_space<vmem>>, vector<16x4xf32>
    tpu.vector_store %arg4[%c32, %c0_12], %9 {strides = array<i32>} : memref<48x32xf32, #tpu.memory_space<vmem>>, vector<16x4xf32>,
    %c6 = arith.constant 6 : index
    %c0_13 = arith.constant 0 : index
    %11 = vector.load %arg4[%c6, %c0_13] : memref<48x32xf32, #tpu.memory_space<vmem>>, vector<40x4xf32>
    %c0_14 = arith.constant 0 : index
    %c0_15 = arith.constant 0 : index
    %12 = vector.load %arg2[%c0_14, %c0_15] : memref<576x128xf32, #tpu.memory_space<vmem>>, vector<4x32xf32>
    %cst_16 = arith.constant dense<0.000000e+00> : vector<40x32xf32>
    %13 = tpu.matmul %11, %12, %cst_16 {dimension_numbers = #tpu.dot_dimension_numbers<[1], [0], [0], [1], [0, 0, 1, 1], [], []>} : vector<40x4xf32>, vector<4x32xf32>, vector<40x32xf32> -> vector<40x32xf32>
    %c7 = arith.constant 7 : index
    %c0_17 = arith.constant 0 : index
    %14 = vector.load %arg4[%c7, %c0_17] : memref<48x32xf32, #tpu.memory_space<vmem>>, vector<40x4xf32>
    %c4 = arith.constant 4 : index
    %c0_18 = arith.constant 0 : index
    %15 = vector.load %arg2[%c4, %c0_18] : memref<576x128xf32, #tpu.memory_space<vmem>>, vector<4x32xf32>
    %cst_19 = arith.constant dense<0.000000e+00> : vector<40x32xf32>
    %16 = tpu.matmul %14, %15, %cst_19 {dimension_numbers = #tpu.dot_dimension_numbers<[1], [0], [0], [1], [0, 0, 1, 1], [], []>} : vector<40x4xf32>, vector<4x32xf32>, vector<40x32xf32> -> vector<40x32xf32>
    %17 = arith.addf %13, %16 : vector<40x32xf32>
    %c8_20 = arith.constant 8 : index
    %c0_21 = arith.constant 0 : index
    %18 = vector.load %arg4[%c8_20, %c0_21] : memref<48x32xf32, #tpu.memory_space<vmem>>, vector<40x4xf32>
    %c8_22 = arith.constant 8 : index
    %c0_23 = arith.constant 0 : index
    %19 = vector.load %arg2[%c8_22, %c0_23] : memref<576x128xf32, #tpu.memory_space<vmem>>, vector<4x32xf32>
    %cst_24 = arith.constant dense<0.000000e+00> : vector<40x32xf32>
    %20 = tpu.matmul %18, %19, %cst_24 {dimension_numbers = #tpu.dot_dimension_numbers<[1], [0], [0], [1], [0, 0, 1, 1], [], []>} : vector<40x4xf32>, vector<4x32xf32>, vector<40x32xf32> -> vector<40x32xf32>
    %21 = arith.addf %17, %20 : vector<40x32xf32>
    %c16 = arith.constant 16 : index
    %c0_25 = arith.constant 0 : index
    %22 = vector.load %arg2[%c16, %c0_25] : memref<576x128xf32, #tpu.memory_space<vmem>>, vector<1x32xf32>
    %23 = vector.broadcast %22 : vector<1x32xf32> to vector<40x32xf32>
    %24 = arith.addf %21, %23 : vector<40x32xf32>
    %cst_26 = arith.constant 0.000000e+00 : f32
    %25 = vector.broadcast %cst_26 : f32 to vector<40x32xf32>
    %26 = arith.cmpf oge, %24, %25 : vector<40x32xf32>
    %cst_27 = arith.constant 0.00999999977 : f32
    %27 = vector.broadcast %cst_27 : f32 to vector<40x32xf32>
    %28 = arith.mulf %27, %24 : vector<40x32xf32>
    %29 = arith.select %26, %24, %28 : vector<40x32xi1>, vector<40x32xf32>
    %c8_28 = arith.constant 8 : index
    %c0_29 = arith.constant 0 : index
    %30 = vector.load %arg5[%c8_28, %c0_29] : memref<48x32xf32, #tpu.memory_space<vmem>>, vector<40x32xf32>
    tpu.vector_store %arg5[%c8_28, %c0_29], %29 {strides = array<i32>} : memref<48x32xf32, #tpu.memory_space<vmem>>, vector<40x32xf32>,
    %cst_30 = arith.constant 0.000000e+00 : f32
    %31 = vector.broadcast %cst_30 : f32 to vector<8x32xf32>
    %c24_31 = arith.constant 24 : index
    %c0_32 = arith.constant 0 : index
    %32 = vector.load %arg5[%c24_31, %c0_32] : memref<48x32xf32, #tpu.memory_space<vmem>>, vector<8x32xf32>
    tpu.vector_store %arg5[%c24_31, %c0_32], %31 {strides = array<i32>} : memref<48x32xf32, #tpu.memory_space<vmem>>, vector<8x32xf32>,
    %c6_33 = arith.constant 6 : index
    %c0_34 = arith.constant 0 : index
    %33 = vector.load %arg5[%c6_33, %c0_34] : memref<48x32xf32, #tpu.memory_space<vmem>>, vector<40x32xf32>
    %c24_35 = arith.constant 24 : index
    %c0_36 = arith.constant 0 : index
    %34 = vector.load %arg2[%c24_35, %c0_36] : memref<576x128xf32, #tpu.memory_space<vmem>>, vector<32x32xf32>
    %cst_37 = arith.constant dense<0.000000e+00> : vector<40x32xf32>
    %35 = tpu.matmul %33, %34, %cst_37 {dimension_numbers = #tpu.dot_dimension_numbers<[1], [0], [0], [1], [0, 0, 1, 1], [], []>} : vector<40x32xf32>, vector<32x32xf32>, vector<40x32xf32> -> vector<40x32xf32>
    %c7_38 = arith.constant 7 : index
    %c0_39 = arith.constant 0 : index
    %36 = vector.load %arg5[%c7_38, %c0_39] : memref<48x32xf32, #tpu.memory_space<vmem>>, vector<40x32xf32>
    %c56 = arith.constant 56 : index
    %c0_40 = arith.constant 0 : index
    %37 = vector.load %arg2[%c56, %c0_40] : memref<576x128xf32, #tpu.memory_space<vmem>>, vector<32x32xf32>
    %cst_41 = arith.constant dense<0.000000e+00> : vector<40x32xf32>
    %38 = tpu.matmul %36, %37, %cst_41 {dimension_numbers = #tpu.dot_dimension_numbers<[1], [0], [0], [1], [0, 0, 1, 1], [], []>} : vector<40x32xf32>, vector<32x32xf32>, vector<40x32xf32> -> vector<40x32xf32>
    %39 = arith.addf %35, %38 : vector<40x32xf32>
    %c8_42 = arith.constant 8 : index
    %c0_43 = arith.constant 0 : index
    %40 = vector.load %arg5[%c8_42, %c0_43] : memref<48x32xf32, #tpu.memory_space<vmem>>, vector<40x32xf32>
    %c88 = arith.constant 88 : index
    %c0_44 = arith.constant 0 : index
    %41 = vector.load %arg2[%c88, %c0_44] : memref<576x128xf32, #tpu.memory_space<vmem>>, vector<32x32xf32>
    %cst_45 = arith.constant dense<0.000000e+00> : vector<40x32xf32>
    %42 = tpu.matmul %40, %41, %cst_45 {dimension_numbers = #tpu.dot_dimension_numbers<[1], [0], [0], [1], [0, 0, 1, 1], [], []>} : vector<40x32xf32>, vector<32x32xf32>, vector<40x32xf32> -> vector<40x32xf32>
    %43 = arith.addf %39, %42 : vector<40x32xf32>
    %c120 = arith.constant 120 : index
    %c0_46 = arith.constant 0 : index
    %44 = vector.load %arg2[%c120, %c0_46] : memref<576x128xf32, #tpu.memory_space<vmem>>, vector<1x32xf32>
    %45 = vector.broadcast %44 : vector<1x32xf32> to vector<40x32xf32>
    %46 = arith.addf %43, %45 : vector<40x32xf32>
    %cst_47 = arith.constant 0.000000e+00 : f32
    %47 = vector.broadcast %cst_47 : f32 to vector<40x32xf32>
    %48 = arith.cmpf oge, %46, %47 : vector<40x32xf32>
    %cst_48 = arith.constant 0.00999999977 : f32
    %49 = vector.broadcast %cst_48 : f32 to vector<40x32xf32>
    %50 = arith.mulf %49, %46 : vector<40x32xf32>
    %51 = arith.select %48, %46, %50 : vector<40x32xi1>, vector<40x32xf32>
    %c8_49 = arith.constant 8 : index
    %c0_50 = arith.constant 0 : index
    %52 = vector.load %arg4[%c8_49, %c0_50] : memref<48x32xf32, #tpu.memory_space<vmem>>, vector<40x4xf32>
    %c128 = arith.constant 128 : index
    %c0_51 = arith.constant 0 : index
    %53 = vector.load %arg2[%c128, %c0_51] : memref<576x128xf32, #tpu.memory_space<vmem>>, vector<4x32xf32>
    %cst_52 = arith.constant dense<0.000000e+00> : vector<40x32xf32>
    %54 = tpu.matmul %52, %53, %cst_52 {dimension_numbers = #tpu.dot_dimension_numbers<[1], [0], [0], [1], [0, 0, 1, 1], [], []>} : vector<40x4xf32>, vector<4x32xf32>, vector<40x32xf32> -> vector<40x32xf32>
    %c136 = arith.constant 136 : index
    %c0_53 = arith.constant 0 : index
    %55 = vector.load %arg2[%c136, %c0_53] : memref<576x128xf32, #tpu.memory_space<vmem>>, vector<1x32xf32>
    %56 = vector.broadcast %55 : vector<1x32xf32> to vector<40x32xf32>
    %57 = arith.addf %54, %56 : vector<40x32xf32>
    %58 = arith.addf %51, %57 : vector<40x32xf32>
    %c8_54 = arith.constant 8 : index
    %c0_55 = arith.constant 0 : index
    %59 = vector.load %arg4[%c8_54, %c0_55] : memref<48x32xf32, #tpu.memory_space<vmem>>, vector<40x32xf32>
    tpu.vector_store %arg4[%c8_54, %c0_55], %58 {strides = array<i32>} : memref<48x32xf32, #tpu.memory_space<vmem>>, vector<40x32xf32>,
    %cst_56 = arith.constant 0.000000e+00 : f32
    %60 = vector.broadcast %cst_56 : f32 to vector<8x32xf32>
    %c24_57 = arith.constant 24 : index
    %c0_58 = arith.constant 0 : index
    %61 = vector.load %arg4[%c24_57, %c0_58] : memref<48x32xf32, #tpu.memory_space<vmem>>, vector<8x32xf32>
    tpu.vector_store %arg4[%c24_57, %c0_58], %60 {strides = array<i32>} : memref<48x32xf32, #tpu.memory_space<vmem>>, vector<8x32xf32>,
    %c4_59 = arith.constant 4 : index
    %c0_60 = arith.constant 0 : index
    %62 = vector.load %arg4[%c4_59, %c0_60] : memref<48x32xf32, #tpu.memory_space<vmem>>, vector<40x32xf32>
    %c144 = arith.constant 144 : index
    %c0_61 = arith.constant 0 : index
    %63 = vector.load %arg2[%c144, %c0_61] : memref<576x128xf32, #tpu.memory_space<vmem>>, vector<32x32xf32>
    %cst_62 = arith.constant dense<0.000000e+00> : vector<40x32xf32>
    %64 = tpu.matmul %62, %63, %cst_62 {dimension_numbers = #tpu.dot_dimension_numbers<[1], [0], [0], [1], [0, 0, 1, 1], [], []>} : vector<40x32xf32>, vector<32x32xf32>, vector<40x32xf32> -> vector<40x32xf32>
    %c6_63 = arith.constant 6 : index
    %c0_64 = arith.constant 0 : index
    %65 = vector.load %arg4[%c6_63, %c0_64] : memref<48x32xf32, #tpu.memory_space<vmem>>, vector<40x32xf32>
    %c176 = arith.constant 176 : index
    %c0_65 = arith.constant 0 : index
    %66 = vector.load %arg2[%c176, %c0_65] : memref<576x128xf32, #tpu.memory_space<vmem>>, vector<32x32xf32>
    %cst_66 = arith.constant dense<0.000000e+00> : vector<40x32xf32>
    %67 = tpu.matmul %65, %66, %cst_66 {dimension_numbers = #tpu.dot_dimension_numbers<[1], [0], [0], [1], [0, 0, 1, 1], [], []>} : vector<40x32xf32>, vector<32x32xf32>, vector<40x32xf32> -> vector<40x32xf32>
    %68 = arith.addf %64, %67 : vector<40x32xf32>
    %c8_67 = arith.constant 8 : index
    %c0_68 = arith.constant 0 : index
    %69 = vector.load %arg4[%c8_67, %c0_68] : memref<48x32xf32, #tpu.memory_space<vmem>>, vector<40x32xf32>
    %c208 = arith.constant 208 : index
    %c0_69 = arith.constant 0 : index
    %70 = vector.load %arg2[%c208, %c0_69] : memref<576x128xf32, #tpu.memory_space<vmem>>, vector<32x32xf32>
    %cst_70 = arith.constant dense<0.000000e+00> : vector<40x32xf32>
    %71 = tpu.matmul %69, %70, %cst_70 {dimension_numbers = #tpu.dot_dimension_numbers<[1], [0], [0], [1], [0, 0, 1, 1], [], []>} : vector<40x32xf32>, vector<32x32xf32>, vector<40x32xf32> -> vector<40x32xf32>
    %72 = arith.addf %68, %71 : vector<40x32xf32>
    %c240 = arith.constant 240 : index
    %c0_71 = arith.constant 0 : index
    %73 = vector.load %arg2[%c240, %c0_71] : memref<576x128xf32, #tpu.memory_space<vmem>>, vector<1x32xf32>
    %74 = vector.broadcast %73 : vector<1x32xf32> to vector<40x32xf32>
    %75 = arith.addf %72, %74 : vector<40x32xf32>
    %cst_72 = arith.constant 0.000000e+00 : f32
    %76 = vector.broadcast %cst_72 : f32 to vector<40x32xf32>
    %77 = arith.cmpf oge, %75, %76 : vector<40x32xf32>
    %cst_73 = arith.constant 0.00999999977 : f32
    %78 = vector.broadcast %cst_73 : f32 to vector<40x32xf32>
    %79 = arith.mulf %78, %75 : vector<40x32xf32>
    %80 = arith.select %77, %75, %79 : vector<40x32xi1>, vector<40x32xf32>
    %c8_74 = arith.constant 8 : index
    %c0_75 = arith.constant 0 : index
    %81 = vector.load %arg5[%c8_74, %c0_75] : memref<48x32xf32, #tpu.memory_space<vmem>>, vector<40x32xf32>
    tpu.vector_store %arg5[%c8_74, %c0_75], %80 {strides = array<i32>} : memref<48x32xf32, #tpu.memory_space<vmem>>, vector<40x32xf32>,
    %cst_76 = arith.constant 0.000000e+00 : f32
    %82 = vector.broadcast %cst_76 : f32 to vector<8x32xf32>
    %c24_77 = arith.constant 24 : index
    %c0_78 = arith.constant 0 : index
    %83 = vector.load %arg5[%c24_77, %c0_78] : memref<48x32xf32, #tpu.memory_space<vmem>>, vector<8x32xf32>
    tpu.vector_store %arg5[%c24_77, %c0_78], %82 {strides = array<i32>} : memref<48x32xf32, #tpu.memory_space<vmem>>, vector<8x32xf32>,
    %c4_79 = arith.constant 4 : index
    %c0_80 = arith.constant 0 : index
    %84 = vector.load %arg5[%c4_79, %c0_80] : memref<48x32xf32, #tpu.memory_space<vmem>>, vector<40x32xf32>
    %c248 = arith.constant 248 : index
    %c0_81 = arith.constant 0 : index
    %85 = vector.load %arg2[%c248, %c0_81] : memref<576x128xf32, #tpu.memory_space<vmem>>, vector<32x32xf32>
    %cst_82 = arith.constant dense<0.000000e+00> : vector<40x32xf32>
    %86 = tpu.matmul %84, %85, %cst_82 {dimension_numbers = #tpu.dot_dimension_numbers<[1], [0], [0], [1], [0, 0, 1, 1], [], []>} : vector<40x32xf32>, vector<32x32xf32>, vector<40x32xf32> -> vector<40x32xf32>
    %c6_83 = arith.constant 6 : index
    %c0_84 = arith.constant 0 : index
    %87 = vector.load %arg5[%c6_83, %c0_84] : memref<48x32xf32, #tpu.memory_space<vmem>>, vector<40x32xf32>
    %c280 = arith.constant 280 : index
    %c0_85 = arith.constant 0 : index
    %88 = vector.load %arg2[%c280, %c0_85] : memref<576x128xf32, #tpu.memory_space<vmem>>, vector<32x32xf32>
    %cst_86 = arith.constant dense<0.000000e+00> : vector<40x32xf32>
    %89 = tpu.matmul %87, %88, %cst_86 {dimension_numbers = #tpu.dot_dimension_numbers<[1], [0], [0], [1], [0, 0, 1, 1], [], []>} : vector<40x32xf32>, vector<32x32xf32>, vector<40x32xf32> -> vector<40x32xf32>
    %90 = arith.addf %86, %89 : vector<40x32xf32>
    %c8_87 = arith.constant 8 : index
    %c0_88 = arith.constant 0 : index
    %91 = vector.load %arg5[%c8_87, %c0_88] : memref<48x32xf32, #tpu.memory_space<vmem>>, vector<40x32xf32>
    %c312 = arith.constant 312 : index
    %c0_89 = arith.constant 0 : index
    %92 = vector.load %arg2[%c312, %c0_89] : memref<576x128xf32, #tpu.memory_space<vmem>>, vector<32x32xf32>
    %cst_90 = arith.constant dense<0.000000e+00> : vector<40x32xf32>
    %93 = tpu.matmul %91, %92, %cst_90 {dimension_numbers = #tpu.dot_dimension_numbers<[1], [0], [0], [1], [0, 0, 1, 1], [], []>} : vector<40x32xf32>, vector<32x32xf32>, vector<40x32xf32> -> vector<40x32xf32>
    %94 = arith.addf %90, %93 : vector<40x32xf32>
    %c344 = arith.constant 344 : index
    %c0_91 = arith.constant 0 : index
    %95 = vector.load %arg2[%c344, %c0_91] : memref<576x128xf32, #tpu.memory_space<vmem>>, vector<1x32xf32>
    %96 = vector.broadcast %95 : vector<1x32xf32> to vector<40x32xf32>
    %97 = arith.addf %94, %96 : vector<40x32xf32>
    %cst_92 = arith.constant 0.000000e+00 : f32
    %98 = vector.broadcast %cst_92 : f32 to vector<40x32xf32>
    %99 = arith.cmpf oge, %97, %98 : vector<40x32xf32>
    %cst_93 = arith.constant 0.00999999977 : f32
    %100 = vector.broadcast %cst_93 : f32 to vector<40x32xf32>
    %101 = arith.mulf %100, %97 : vector<40x32xf32>
    %102 = arith.select %99, %97, %101 : vector<40x32xi1>, vector<40x32xf32>
    %c8_94 = arith.constant 8 : index
    %c0_95 = arith.constant 0 : index
    %103 = vector.load %arg4[%c8_94, %c0_95] : memref<48x32xf32, #tpu.memory_space<vmem>>, vector<40x32xf32>
    %104 = arith.addf %102, %103 : vector<40x32xf32>
    %c8_96 = arith.constant 8 : index
    %c0_97 = arith.constant 0 : index
    %105 = vector.load %arg4[%c8_96, %c0_97] : memref<48x32xf32, #tpu.memory_space<vmem>>, vector<40x32xf32>
    tpu.vector_store %arg4[%c8_96, %c0_97], %104 {strides = array<i32>} : memref<48x32xf32, #tpu.memory_space<vmem>>, vector<40x32xf32>,
    %cst_98 = arith.constant 0.000000e+00 : f32
    %106 = vector.broadcast %cst_98 : f32 to vector<8x32xf32>
    %c24_99 = arith.constant 24 : index
    %c0_100 = arith.constant 0 : index
    %107 = vector.load %arg4[%c24_99, %c0_100] : memref<48x32xf32, #tpu.memory_space<vmem>>, vector<8x32xf32>
    tpu.vector_store %arg4[%c24_99, %c0_100], %106 {strides = array<i32>} : memref<48x32xf32, #tpu.memory_space<vmem>>, vector<8x32xf32>,
    %c0_101 = arith.constant 0 : index
    %c0_102 = arith.constant 0 : index
    %108 = vector.load %arg4[%c0_101, %c0_102] : memref<48x32xf32, #tpu.memory_space<vmem>>, vector<40x32xf32>
    %c352 = arith.constant 352 : index
    %c0_103 = arith.constant 0 : index
    %109 = vector.load %arg2[%c352, %c0_103] : memref<576x128xf32, #tpu.memory_space<vmem>>, vector<32x16xf32>
    %cst_104 = arith.constant dense<0.000000e+00> : vector<40x16xf32>
    %110 = tpu.matmul %108, %109, %cst_104 {dimension_numbers = #tpu.dot_dimension_numbers<[1], [0], [0], [1], [0, 0, 1, 1], [], []>} : vector<40x32xf32>, vector<32x16xf32>, vector<40x16xf32> -> vector<40x16xf32>
    %c4_105 = arith.constant 4 : index
    %c0_106 = arith.constant 0 : index
    %111 = vector.load %arg4[%c4_105, %c0_106] : memref<48x32xf32, #tpu.memory_space<vmem>>, vector<40x32xf32>
    %c384 = arith.constant 384 : index
    %c0_107 = arith.constant 0 : index
    %112 = vector.load %arg2[%c384, %c0_107] : memref<576x128xf32, #tpu.memory_space<vmem>>, vector<32x16xf32>
    %cst_108 = arith.constant dense<0.000000e+00> : vector<40x16xf32>
    %113 = tpu.matmul %111, %112, %cst_108 {dimension_numbers = #tpu.dot_dimension_numbers<[1], [0], [0], [1], [0, 0, 1, 1], [], []>} : vector<40x32xf32>, vector<32x16xf32>, vector<40x16xf32> -> vector<40x16xf32>
    %114 = arith.addf %110, %113 : vector<40x16xf32>
    %c8_109 = arith.constant 8 : index
    %c0_110 = arith.constant 0 : index
    %115 = vector.load %arg4[%c8_109, %c0_110] : memref<48x32xf32, #tpu.memory_space<vmem>>, vector<40x32xf32>
    %c416 = arith.constant 416 : index
    %c0_111 = arith.constant 0 : index
    %116 = vector.load %arg2[%c416, %c0_111] : memref<576x128xf32, #tpu.memory_space<vmem>>, vector<32x16xf32>
    %cst_112 = arith.constant dense<0.000000e+00> : vector<40x16xf32>
    %117 = tpu.matmul %115, %116, %cst_112 {dimension_numbers = #tpu.dot_dimension_numbers<[1], [0], [0], [1], [0, 0, 1, 1], [], []>} : vector<40x32xf32>, vector<32x16xf32>, vector<40x16xf32> -> vector<40x16xf32>
    %118 = arith.addf %114, %117 : vector<40x16xf32>
    %c448 = arith.constant 448 : index
    %c0_113 = arith.constant 0 : index
    %119 = vector.load %arg2[%c448, %c0_113] : memref<576x128xf32, #tpu.memory_space<vmem>>, vector<1x16xf32>
    %120 = vector.broadcast %119 : vector<1x16xf32> to vector<40x16xf32>
    %121 = arith.addf %118, %120 : vector<40x16xf32>
    %cst_114 = arith.constant 0.000000e+00 : f32
    %122 = vector.broadcast %cst_114 : f32 to vector<40x16xf32>
    %123 = arith.cmpf oge, %121, %122 : vector<40x16xf32>
    %cst_115 = arith.constant 0.00999999977 : f32
    %124 = vector.broadcast %cst_115 : f32 to vector<40x16xf32>
    %125 = arith.mulf %124, %121 : vector<40x16xf32>
    %126 = arith.select %123, %121, %125 : vector<40x16xi1>, vector<40x16xf32>
    %c8_116 = arith.constant 8 : index
    %c0_117 = arith.constant 0 : index
    %127 = vector.load %arg5[%c8_116, %c0_117] : memref<48x32xf32, #tpu.memory_space<vmem>>, vector<40x16xf32>
    tpu.vector_store %arg5[%c8_116, %c0_117], %126 {strides = array<i32>} : memref<48x32xf32, #tpu.memory_space<vmem>>, vector<40x16xf32>,
    %cst_118 = arith.constant 0.000000e+00 : f32
    %128 = vector.broadcast %cst_118 : f32 to vector<8x16xf32>
    %c24_119 = arith.constant 24 : index
    %c0_120 = arith.constant 0 : index
    %129 = vector.load %arg5[%c24_119, %c0_120] : memref<48x32xf32, #tpu.memory_space<vmem>>, vector<8x16xf32>
    tpu.vector_store %arg5[%c24_119, %c0_120], %128 {strides = array<i32>} : memref<48x32xf32, #tpu.memory_space<vmem>>, vector<8x16xf32>,
    %c0_121 = arith.constant 0 : index
    %c0_122 = arith.constant 0 : index
    %130 = vector.load %arg5[%c0_121, %c0_122] : memref<48x32xf32, #tpu.memory_space<vmem>>, vector<40x16xf32>
    %c456 = arith.constant 456 : index
    %c0_123 = arith.constant 0 : index
    %131 = vector.load %arg2[%c456, %c0_123] : memref<576x128xf32, #tpu.memory_space<vmem>>, vector<16x16xf32>
    %cst_124 = arith.constant dense<0.000000e+00> : vector<40x16xf32>
    %132 = tpu.matmul %130, %131, %cst_124 {dimension_numbers = #tpu.dot_dimension_numbers<[1], [0], [0], [1], [0, 0, 1, 1], [], []>} : vector<40x16xf32>, vector<16x16xf32>, vector<40x16xf32> -> vector<40x16xf32>
    %c4_125 = arith.constant 4 : index
    %c0_126 = arith.constant 0 : index
    %133 = vector.load %arg5[%c4_125, %c0_126] : memref<48x32xf32, #tpu.memory_space<vmem>>, vector<40x16xf32>
    %c472 = arith.constant 472 : index
    %c0_127 = arith.constant 0 : index
    %134 = vector.load %arg2[%c472, %c0_127] : memref<576x128xf32, #tpu.memory_space<vmem>>, vector<16x16xf32>
    %cst_128 = arith.constant dense<0.000000e+00> : vector<40x16xf32>
    %135 = tpu.matmul %133, %134, %cst_128 {dimension_numbers = #tpu.dot_dimension_numbers<[1], [0], [0], [1], [0, 0, 1, 1], [], []>} : vector<40x16xf32>, vector<16x16xf32>, vector<40x16xf32> -> vector<40x16xf32>
    %136 = arith.addf %132, %135 : vector<40x16xf32>
    %c8_129 = arith.constant 8 : index
    %c0_130 = arith.constant 0 : index
    %137 = vector.load %arg5[%c8_129, %c0_130] : memref<48x32xf32, #tpu.memory_space<vmem>>, vector<40x16xf32>
    %c488 = arith.constant 488 : index
    %c0_131 = arith.constant 0 : index
    %138 = vector.load %arg2[%c488, %c0_131] : memref<576x128xf32, #tpu.memory_space<vmem>>, vector<16x16xf32>
    %cst_132 = arith.constant dense<0.000000e+00> : vector<40x16xf32>
    %139 = tpu.matmul %137, %138, %cst_132 {dimension_numbers = #tpu.dot_dimension_numbers<[1], [0], [0], [1], [0, 0, 1, 1], [], []>} : vector<40x16xf32>, vector<16x16xf32>, vector<40x16xf32> -> vector<40x16xf32>
    %140 = arith.addf %136, %139 : vector<40x16xf32>
    %c504 = arith.constant 504 : index
    %c0_133 = arith.constant 0 : index
    %141 = vector.load %arg2[%c504, %c0_133] : memref<576x128xf32, #tpu.memory_space<vmem>>, vector<1x16xf32>
    %142 = vector.broadcast %141 : vector<1x16xf32> to vector<40x16xf32>
    %143 = arith.addf %140, %142 : vector<40x16xf32>
    %cst_134 = arith.constant 0.000000e+00 : f32
    %144 = vector.broadcast %cst_134 : f32 to vector<40x16xf32>
    %145 = arith.cmpf oge, %143, %144 : vector<40x16xf32>
    %cst_135 = arith.constant 0.00999999977 : f32
    %146 = vector.broadcast %cst_135 : f32 to vector<40x16xf32>
    %147 = arith.mulf %146, %143 : vector<40x16xf32>
    %148 = arith.select %145, %143, %147 : vector<40x16xi1>, vector<40x16xf32>
    %c8_136 = arith.constant 8 : index
    %c0_137 = arith.constant 0 : index
    %149 = vector.load %arg4[%c8_136, %c0_137] : memref<48x32xf32, #tpu.memory_space<vmem>>, vector<40x32xf32>
    %c512 = arith.constant 512 : index
    %c0_138 = arith.constant 0 : index
    %150 = vector.load %arg2[%c512, %c0_138] : memref<576x128xf32, #tpu.memory_space<vmem>>, vector<32x16xf32>
    %cst_139 = arith.constant dense<0.000000e+00> : vector<40x16xf32>
    %151 = tpu.matmul %149, %150, %cst_139 {dimension_numbers = #tpu.dot_dimension_numbers<[1], [0], [0], [1], [0, 0, 1, 1], [], []>} : vector<40x32xf32>, vector<32x16xf32>, vector<40x16xf32> -> vector<40x16xf32>
    %c544 = arith.constant 544 : index
    %c0_140 = arith.constant 0 : index
    %152 = vector.load %arg2[%c544, %c0_140] : memref<576x128xf32, #tpu.memory_space<vmem>>, vector<1x16xf32>
    %153 = vector.broadcast %152 : vector<1x16xf32> to vector<40x16xf32>
    %154 = arith.addf %151, %153 : vector<40x16xf32>
    %155 = arith.addf %148, %154 : vector<40x16xf32>
    %c8_141 = arith.constant 8 : index
    %c0_142 = arith.constant 0 : index
    %156 = vector.load %arg4[%c8_141, %c0_142] : memref<48x32xf32, #tpu.memory_space<vmem>>, vector<40x16xf32>
    tpu.vector_store %arg4[%c8_141, %c0_142], %155 {strides = array<i32>} : memref<48x32xf32, #tpu.memory_space<vmem>>, vector<40x16xf32>,
    %cst_143 = arith.constant 0.000000e+00 : f32
    %157 = vector.broadcast %cst_143 : f32 to vector<8x16xf32>
    %c24_144 = arith.constant 24 : index
    %c0_145 = arith.constant 0 : index
    %158 = vector.load %arg4[%c24_144, %c0_145] : memref<48x32xf32, #tpu.memory_space<vmem>>, vector<8x16xf32>
    tpu.vector_store %arg4[%c24_144, %c0_145], %157 {strides = array<i32>} : memref<48x32xf32, #tpu.memory_space<vmem>>, vector<8x16xf32>,
    %c8_146 = arith.constant 8 : index
    %c0_147 = arith.constant 0 : index
    %159 = vector.load %arg4[%c8_146, %c0_147] : memref<48x32xf32, #tpu.memory_space<vmem>>, vector<16x16xf32>
    %cst_148 = arith.constant dense<0xFF800000> : vector<16xf32>
    %160 = vector.multi_reduction <maximumf>, %159, %cst_148 [0] : vector<16x16xf32> to vector<16xf32>
    %161 = vector.shape_cast %160 : vector<16xf32> to vector<1x16xf32>
    %c0_149 = arith.constant 0 : index
    %c0_150 = arith.constant 0 : index
    %162 = vector.load %arg5[%c0_149, %c0_150] : memref<48x32xf32, #tpu.memory_space<vmem>>, vector<1x16xf32>
    tpu.vector_store %arg5[%c0_149, %c0_150], %161 {strides = array<i32>} : memref<48x32xf32, #tpu.memory_space<vmem>>, vector<1x16xf32>,
    %c32_151 = arith.constant 32 : index
    %c0_152 = arith.constant 0 : index
    %163 = vector.load %arg4[%c32_151, %c0_152] : memref<48x32xf32, #tpu.memory_space<vmem>>, vector<16x16xf32>
    %cst_153 = arith.constant dense<0xFF800000> : vector<16xf32>
    %164 = vector.multi_reduction <maximumf>, %163, %cst_153 [0] : vector<16x16xf32> to vector<16xf32>
    %165 = vector.shape_cast %164 : vector<16xf32> to vector<1x16xf32>
    %c1_154 = arith.constant 1 : index
    %c0_155 = arith.constant 0 : index
    %166 = vector.load %arg5[%c1_154, %c0_155] : memref<48x32xf32, #tpu.memory_space<vmem>>, vector<1x16xf32>
    tpu.vector_store %arg5[%c1_154, %c0_155], %165 {strides = array<i32>} : memref<48x32xf32, #tpu.memory_space<vmem>>, vector<1x16xf32>,
    %c0_156 = arith.constant 0 : index
    %c0_157 = arith.constant 0 : index
    %167 = vector.load %arg5[%c0_156, %c0_157] : memref<48x32xf32, #tpu.memory_space<vmem>>, vector<2x16xf32>
    %c552 = arith.constant 552 : index
    %c0_158 = arith.constant 0 : index
    %168 = vector.load %arg2[%c552, %c0_158] : memref<576x128xf32, #tpu.memory_space<vmem>>, vector<16x8xf32>
    %c568 = arith.constant 568 : index
    %c0_159 = arith.constant 0 : index
    %169 = vector.load %arg2[%c568, %c0_159] : memref<576x128xf32, #tpu.memory_space<vmem>>, vector<1x8xf32>
    %cst_160 = arith.constant dense<0.000000e+00> : vector<2x8xf32>
    %170 = tpu.matmul %167, %168, %cst_160 {dimension_numbers = #tpu.dot_dimension_numbers<[1], [0], [0], [1], [0, 0, 1, 1], [], []>} : vector<2x16xf32>, vector<16x8xf32>, vector<2x8xf32> -> vector<2x8xf32>
    %171 = vector.broadcast %169 : vector<1x8xf32> to vector<2x8xf32>
    %172 = arith.addf %170, %171 : vector<2x8xf32>
    %c0_161 = arith.constant 0 : index
    %c0_162 = arith.constant 0 : index
    %c0_163 = arith.constant 0 : index
    %173 = vector.load %arg3[%c0_161, %c0_162, %c0_163] : memref<1x2x8xf32, #tpu.memory_space<vmem>>, vector<1x2x8xf32>
    %174 = vector.shape_cast %173 : vector<1x2x8xf32> to vector<2x8xf32>
    %175 = vector.shape_cast %172 : vector<2x8xf32> to vector<1x2x8xf32>
    tpu.vector_store %arg3[%c0_161, %c0_162, %c0_163], %175 {strides = array<i32>} : memref<1x2x8xf32, #tpu.memory_space<vmem>>, vector<1x2x8xf32>,
    return
  }
  func.func @transform_0(%arg0: i32) -> (i32, i32, i32) {
    %c0_i32 = arith.constant 0 : i32
    %c0_i32_0 = arith.constant 0 : i32
    %c0_i32_1 = arith.constant 0 : i32
    return %arg0, %c0_i32, %c0_i32_0 : i32, i32, i32
  }
  func.func @transform_1(%arg0: i32) -> (i32, i32) {
    %c0_i32 = arith.constant 0 : i32
    %c0_i32_0 = arith.constant 0 : i32
    %c0_i32_1 = arith.constant 0 : i32
    return %c0_i32, %c0_i32_0 : i32, i32
  }
  func.func @transform_2(%arg0: i32) -> (i32, i32, i32) {
    %c0_i32 = arith.constant 0 : i32
    %c0_i32_0 = arith.constant 0 : i32
    %c0_i32_1 = arith.constant 0 : i32
    return %arg0, %c0_i32, %c0_i32_0 : i32, i32, i32
  }
}

</mosaic_0001>

<llo_original>
// kernel: forward.1
$region0: #{forward.1}
  #allocation0 [shape = 'u32[]', space=smem, size = 0x4, offset = 0x4, fixed_abs, tag = 'smem constant byte address 0x4 - core index']
  #allocation1 [shape = 'u32[144,128]{1,0:T(1,128)}', space=vmem, size = 0x12000, scoped, tag = 'internal scratch']
  #allocation2 [shape = 'f32[48,32]{1,0:T(8,128)}', space=vmem, size = 0x6000, scoped, tag = 'scratch operand']
  #allocation3 [shape = 'f32[48,32]{1,0:T(8,128)}', space=vmem, size = 0x6000, scoped, tag = 'scratch operand']
  %s0 = inlined_call_operand.vmem [shape: f32[2,16,4], index: 0, kind: input, shape index: {}]
  %s1 = inlined_call_operand.hbm [shape: f32[576,128], index: 1, kind: input, shape index: {}]
  %s2 = inlined_call_operand.hbm [shape: f32[1,2,8], index: 2, kind: output, shape index: {}]
  %s3 = sld [smem:[#allocation0]]
  $region22: #{forward.1} parent=0
    _
  %s5 = ssub.s32 1, %s3
  %s6 = scalar_select 0, %s5, %s3
  $region1: #{forward.1} parent=0
    #allocation4 [shape = 'u8[294912]{0}', space=vmem, size = 0x48000, scoped, tag = 'input window, operand 1, single buffered']
    #allocation5 [shape = 's32[1]{0}', space=sflag, size = 0x4, scoped, tag = 'scoped memory for forward.1']
    #allocation6 [shape = 's32[1]{0}', space=sflag, size = 0x4, scoped, tag = 'scoped memory for forward.1']
    #allocation7 [shape = 'u8[1024]{0}', space=vmem, size = 0x400, scoped, tag = 'output window, operand 0, single buffered']
    %7 = vsyncpa [#allocation5], 0
    %8 = vsyncpa [#allocation6], 0
    // Predicated region
    $region2: #{forward.1} parent=1 // pred_check
      _
    $region3: #{forward.1} parent=1 // pred_check_branch
      %10 = sbr.rel (0) target = $region5
    $region4: #{forward.1} parent=1 // pred_region
      _
    $region5: #{forward.1} parent=1 // pred_fallthru
      _
    // Predicated region
    $region6: #{forward.1} parent=1 // pred_check
      _
    $region7: #{forward.1} parent=1 // pred_check_branch
      %12 = sbr.rel (0) target = $region9
    $region8: #{forward.1} parent=1 // pred_region
      %s14 = ssub.s32 9216, 9216
      %15 = vsyncadd [#allocation5], %s14
      %s16 = sshll.u32 [#allocation4], 4
      %s17 = int_to_ptr.vmem [resolvable:$true] %s16
      %22 = dma.hbm_to_vmem [thread:$0]  %s1, 9216, %s17, [#allocation5], 128, 128, 8
    $region9: #{forward.1} parent=1 // pred_fallthru
      _
    // Predicated region
    $region10: #{forward.1} parent=1 // pred_check
      _
    $region11: #{forward.1} parent=1 // pred_check_branch
      %24 = sbr.rel (0) target = $region13
    $region12: #{forward.1} parent=1 // pred_region
      %25 = dma.done [#allocation5], 9216
    $region13: #{forward.1} parent=1 // pred_fallthru
      _
    %vm26 = vcmask 261120
    %27 = vst.msk [vmem:[#allocation2] sm:$0xff] %vm26, 0.0
    %28 = vst.msk [vmem:[#allocation3] sm:$0xff] %vm26, 0.0
    %29 = vst.msk [vmem:[#allocation2 + $0x18] sm:$0xff] %vm26, 0.0
    %30 = vst.msk [vmem:[#allocation3 + $0x18] sm:$0xff] %vm26, 0.0
    %v31 = vld [vmem:[%s0] sm:$0xff]
    %v32 = vld [vmem:[%s0 + $0x8] sm:$0xff]
    %vm33 = vcmask 31744
    %34 = vst.msk [vmem:[#allocation2 + $0x8] sm:$0xff] %vm33, %v31
    %35 = vst.msk [vmem:[#allocation2 + $0x10] sm:$0xff] %vm33, %v32
    %s36 = scalar_lea.vmem %s0, 16
    %v37 = vld [vmem:[%s36] sm:$0xff]
    %v38 = vld [vmem:[%s36 + $0x8] sm:$0xff]
    %39 = vst.msk [vmem:[#allocation2 + $0x20] sm:$0xff] %vm33, %v37
    %40 = vst.msk [vmem:[#allocation2 + $0x28] sm:$0xff] %vm33, %v38
    %v41 = vld [vmem:[#allocation2 + $0x6] sm:$0xff]
    %v42 = vld [vmem:[#allocation2 + $0xe] sm:$0xff]
    %v43 = vld [vmem:[#allocation2 + $0x16] sm:$0xff]
    %v44 = vld [vmem:[#allocation2 + $0x1e] sm:$0xff]
    %v45 = vld [vmem:[#allocation2 + $0x26] sm:$0xff]
    %v46 = vld [vmem:[#allocation4] sm:$0xf]
    %v47 = vld [vmem:[#allocation2 + $0x7] sm:$0xff]
    %v48 = vld [vmem:[#allocation2 + $0xf] sm:$0xff]
    %v49 = vld [vmem:[#allocation2 + $0x17] sm:$0xff]
    %v50 = vld [vmem:[#allocation2 + $0x1f] sm:$0xff]
    %v51 = vld [vmem:[#allocation2 + $0x27] sm:$0xff]
    %v52 = vld [vmem:[#allocation4 + $0x4] sm:$0xf]
    %v54 = vsel %vm33, %v47, 0
    %v57 = vsel %vm33, %v48, 0
    %v60 = vsel %vm33, %v49, 0
    %v63 = vsel %vm33, %v50, 0
    %v66 = vsel %vm33, %v51, 0
    %vm68 = vcmask 1043456
    %v70 = vsel %vm68, %v52, 0
    %72 = vmatprep.subr.mxu0 0.0
    %73 = vmatpush1.msra.mxu0 0.0
    %74 = vmatprep.subr.mxu0 0.0
    %75 = vmatpush1.msra.mxu0 0.0
    %76 = vmatprep.subr.mxu0 0.0
    %77 = vmatpush1.msra.mxu0 0.0
    %78 = vmatprep.subr.mxu0 0.0
    %79 = vmatpush1.msra.mxu0 0.0
    %80 = vmatprep.subr.mxu0 0.0
    %81 = vmatpush1.msra.mxu0 0.0
    %82 = vmatprep.subr.mxu0 0.0
    %83 = vmatpush1.msra.mxu0 0.0
    %84 = vmatprep.subr.mxu0 0.0
    %85 = vmatpush1.msra.mxu0 0.0
    %86 = vmatprep.subr.mxu0 0.0
    %87 = vmatpush1.msra.mxu0 0.0
    %88 = vmatprep.subr.mxu0 0.0
    %89 = vmatpush1.msra.mxu0 0.0
    %90 = vmatprep.subr.mxu0 0.0
    %91 = vmatpush1.msra.mxu0 0.0
    %92 = vmatprep.subr.mxu0 0.0
    %93 = vmatpush1.msra.mxu0 0.0
    %94 = vmatprep.subr.mxu0 0.0
    %95 = vmatpush1.msra.mxu0 0.0
    %96 = vmatprep.subr.mxu0 0.0
    %97 = vmatpush1.msra.mxu0 0.0
    %98 = vmatprep.subr.mxu0 0.0
    %99 = vmatpush1.msra.mxu0 0.0
    %100 = vmatprep.subr.mxu0 0.0
    %101 = vmatpush1.msra.mxu0 0.0
    %102 = vmatprep.subr.mxu0 0.0
    %103 = vmatpush1.msra.mxu0 %v70
    %104 = vmatprep.subr.mxu0 0.0
    %105 = vmatpush2.msra.mxu0 0.0
    %106 = vmatprep.subr.mxu0 0.0
    %107 = vmatpush2.msra.mxu0 0.0
    %108 = vmatprep.subr.mxu0 0.0
    %109 = vmatpush2.msra.mxu0 0.0
    %110 = vmatprep.subr.mxu0 0.0
    %111 = vmatpush2.msra.mxu0 0.0
    %112 = vmatprep.subr.mxu0 0.0
    %113 = vmatpush2.msra.mxu0 0.0
    %114 = vmatprep.subr.mxu0 0.0
    %115 = vmatpush2.msra.mxu0 0.0
    %116 = vmatprep.subr.mxu0 0.0
    %117 = vmatpush2.msra.mxu0 0.0
    %118 = vmatprep.subr.mxu0 0.0
    %119 = vmatpush2.msra.mxu0 0.0
    %120 = vmatprep.subr.mxu0 0.0
    %121 = vmatpush2.msra.mxu0 0.0
    %122 = vmatprep.subr.mxu0 0.0
    %123 = vmatpush2.msra.mxu0 0.0
    %124 = vmatprep.subr.mxu0 0.0
    %125 = vmatpush2.msra.mxu0 0.0
    %126 = vmatprep.subr.mxu0 0.0
    %127 = vmatpush2.msra.mxu0 0.0
    %128 = vmatprep.subr.mxu0 0.0
    %129 = vmatpush2.msra.mxu0 0.0
    %130 = vmatprep.subr.mxu0 0.0
    %131 = vmatpush2.msra.mxu0 0.0
    %132 = vmatprep.subr.mxu0 0.0
    %133 = vmatpush2.msra.mxu0 0.0
    %134 = vmatprep.subr.mxu0 0.0
    %135 = vmatpush2.msra.mxu0 0.0
    %136 = vmatprep.mubr.f32.mxu0 0.0
    %137 = vmatmul.mubr.f32.gmra.mxu0 %v54
    %v138 = vpop.f32.mrf.mxu0
    %v139 = vadd.f32 0.0, %v138
    %v140 = vpop.f32.mrf.mxu0
    %141 = vmatprep.mubr.f32.mxu0 0.0
    %142 = vmatmul.mubr.f32.gmra.mxu0 %v57
    %v143 = vpop.f32.mrf.mxu0
    %v144 = vadd.f32 0.0, %v143
    %v145 = vpop.f32.mrf.mxu0
    %146 = vmatprep.mubr.f32.mxu0 0.0
    %147 = vmatmul.mubr.f32.gmra.mxu0 %v60
    %v148 = vpop.f32.mrf.mxu0
    %v149 = vadd.f32 0.0, %v148
    %v150 = vpop.f32.mrf.mxu0
    %151 = vmatprep.mubr.f32.mxu0 0.0
    %152 = vmatmul.mubr.f32.gmra.mxu0 %v63
    %v153 = vpop.f32.mrf.mxu0
    %v154 = vadd.f32 0.0, %v153
    %v155 = vpop.f32.mrf.mxu0
    %156 = vmatprep.mubr.f32.mxu0 0.0
    %157 = vmatmul.mubr.f32.gmra.mxu0 %v66
    %v158 = vpop.f32.mrf.mxu0
    %v159 = vadd.f32 0.0, %v158
    %v160 = vpop.f32.mrf.mxu0
    %161 = vdwg.mxu0
    %v163 = vsel %vm33, %v41, 0
    %v166 = vsel %vm33, %v42, 0
    %v169 = vsel %vm33, %v43, 0
    %v172 = vsel %vm33, %v44, 0
    %v175 = vsel %vm33, %v45, 0
    %v178 = vsel %vm68, %v46, 0
    %180 = vmatprep.subr.mxu0 0.0
    %181 = vmatpush1.msra.mxu0 0.0
    %182 = vmatprep.subr.mxu0 0.0
    %183 = vmatpush1.msra.mxu0 0.0
    %184 = vmatprep.subr.mxu0 0.0
    %185 = vmatpush1.msra.mxu0 0.0
    %186 = vmatprep.subr.mxu0 0.0
    %187 = vmatpush1.msra.mxu0 0.0
    %188 = vmatprep.subr.mxu0 0.0
    %189 = vmatpush1.msra.mxu0 0.0
    %190 = vmatprep.subr.mxu0 0.0
    %191 = vmatpush1.msra.mxu0 0.0
    %192 = vmatprep.subr.mxu0 0.0
    %193 = vmatpush1.msra.mxu0 0.0
    %194 = vmatprep.subr.mxu0 0.0
    %195 = vmatpush1.msra.mxu0 0.0
    %196 = vmatprep.subr.mxu0 0.0
    %197 = vmatpush1.msra.mxu0 0.0
    %198 = vmatprep.subr.mxu0 0.0
    %199 = vmatpush1.msra.mxu0 0.0
    %200 = vmatprep.subr.mxu0 0.0
    %201 = vmatpush1.msra.mxu0 0.0
    %202 = vmatprep.subr.mxu0 0.0
    %203 = vmatpush1.msra.mxu0 0.0
    %204 = vmatprep.subr.mxu0 0.0
    %205 = vmatpush1.msra.mxu0 0.0
    %206 = vmatprep.subr.mxu0 0.0
    %207 = vmatpush1.msra.mxu0 0.0
    %208 = vmatprep.subr.mxu0 0.0
    %209 = vmatpush1.msra.mxu0 0.0
    %210 = vmatprep.subr.mxu0 0.0
    %211 = vmatpush1.msra.mxu0 %v178
    %212 = vmatprep.subr.mxu0 0.0
    %213 = vmatpush2.msra.mxu0 0.0
    %214 = vmatprep.subr.mxu0 0.0
    %215 = vmatpush2.msra.mxu0 0.0
    %216 = vmatprep.subr.mxu0 0.0
    %217 = vmatpush2.msra.mxu0 0.0
    %218 = vmatprep.subr.mxu0 0.0
    %219 = vmatpush2.msra.mxu0 0.0
    %220 = vmatprep.subr.mxu0 0.0
    %221 = vmatpush2.msra.mxu0 0.0
    %222 = vmatprep.subr.mxu0 0.0
    %223 = vmatpush2.msra.mxu0 0.0
    %224 = vmatprep.subr.mxu0 0.0
    %225 = vmatpush2.msra.mxu0 0.0
    %226 = vmatprep.subr.mxu0 0.0
    %227 = vmatpush2.msra.mxu0 0.0
    %228 = vmatprep.subr.mxu0 0.0
    %229 = vmatpush2.msra.mxu0 0.0
    %230 = vmatprep.subr.mxu0 0.0
    %231 = vmatpush2.msra.mxu0 0.0
    %232 = vmatprep.subr.mxu0 0.0
    %233 = vmatpush2.msra.mxu0 0.0
    %234 = vmatprep.subr.mxu0 0.0
    %235 = vmatpush2.msra.mxu0 0.0
    %236 = vmatprep.subr.mxu0 0.0
    %237 = vmatpush2.msra.mxu0 0.0
    %238 = vmatprep.subr.mxu0 0.0
    %239 = vmatpush2.msra.mxu0 0.0
    %240 = vmatprep.subr.mxu0 0.0
    %241 = vmatpush2.msra.mxu0 0.0
    %242 = vmatprep.subr.mxu0 0.0
    %243 = vmatpush2.msra.mxu0 0.0
    %244 = vmatprep.mubr.f32.mxu0 0.0
    %245 = vmatmul.mubr.f32.gmra.mxu0 %v163
    %v246 = vpop.f32.mrf.mxu0
    %v247 = vadd.f32 %v139, %v246
    %v248 = vpop.f32.mrf.mxu0
    %249 = vmatprep.mubr.f32.mxu0 0.0
    %250 = vmatmul.mubr.f32.gmra.mxu0 %v166
    %v251 = vpop.f32.mrf.mxu0
    %v252 = vadd.f32 %v144, %v251
    %v253 = vpop.f32.mrf.mxu0
    %254 = vmatprep.mubr.f32.mxu0 0.0
    %255 = vmatmul.mubr.f32.gmra.mxu0 %v169
    %v256 = vpop.f32.mrf.mxu0
    %v257 = vadd.f32 %v149, %v256
    %v258 = vpop.f32.mrf.mxu0
    %259 = vmatprep.mubr.f32.mxu0 0.0
    %260 = vmatmul.mubr.f32.gmra.mxu0 %v172
    %v261 = vpop.f32.mrf.mxu0
    %v262 = vadd.f32 %v154, %v261
    %v263 = vpop.f32.mrf.mxu0
    %264 = vmatprep.mubr.f32.mxu0 0.0
    %265 = vmatmul.mubr.f32.gmra.mxu0 %v175
    %v266 = vpop.f32.mrf.mxu0
    %v267 = vadd.f32 %v159, %v266
    %v268 = vpop.f32.mrf.mxu0
    %269 = vdwg.mxu0
    %v270 = vld [vmem:[#allocation2 + $0x8] sm:$0xff]
    %v271 = vld [vmem:[#allocation2 + $0x10] sm:$0xff]
    %v272 = vld [vmem:[#allocation2 + $0x18] sm:$0xff]
    %v273 = vld [vmem:[#allocation2 + $0x20] sm:$0xff]
    %v274 = vld [vmem:[#allocation2 + $0x28] sm:$0xff]
    %v275 = vld [vmem:[#allocation4 + $0x8] sm:$0xf]
    %v277 = vsel %vm33, %v270, 0
    %v280 = vsel %vm33, %v271, 0
    %v283 = vsel %vm33, %v272, 0
    %v286 = vsel %vm33, %v273, 0
    %v289 = vsel %vm33, %v274, 0
    %v292 = vsel %vm68, %v275, 0
    %294 = vmatprep.subr.mxu0 0.0
    %295 = vmatpush1.msra.mxu0 0.0
    %296 = vmatprep.subr.mxu0 0.0
    %297 = vmatpush1.msra.mxu0 0.0
    %298 = vmatprep.subr.mxu0 0.0
    %299 = vmatpush1.msra.mxu0 0.0
    %300 = vmatprep.subr.mxu0 0.0
    %301 = vmatpush1.msra.mxu0 0.0
    %302 = vmatprep.subr.mxu0 0.0
    %303 = vmatpush1.msra.mxu0 0.0
    %304 = vmatprep.subr.mxu0 0.0
    %305 = vmatpush1.msra.mxu0 0.0
    %306 = vmatprep.subr.mxu0 0.0
    %307 = vmatpush1.msra.mxu0 0.0
    %308 = vmatprep.subr.mxu0 0.0
    %309 = vmatpush1.msra.mxu0 0.0
    %310 = vmatprep.subr.mxu0 0.0
    %311 = vmatpush1.msra.mxu0 0.0
    %312 = vmatprep.subr.mxu0 0.0
    %313 = vmatpush1.msra.mxu0 0.0
    %314 = vmatprep.subr.mxu0 0.0
    %315 = vmatpush1.msra.mxu0 0.0
    %316 = vmatprep.subr.mxu0 0.0
    %317 = vmatpush1.msra.mxu0 0.0
    %318 = vmatprep.subr.mxu0 0.0
    %319 = vmatpush1.msra.mxu0 0.0
    %320 = vmatprep.subr.mxu0 0.0
    %321 = vmatpush1.msra.mxu0 0.0
    %322 = vmatprep.subr.mxu0 0.0
    %323 = vmatpush1.msra.mxu0 0.0
    %324 = vmatprep.subr.mxu0 0.0
    %325 = vmatpush1.msra.mxu0 %v292
    %326 = vmatprep.subr.mxu0 0.0
    %327 = vmatpush2.msra.mxu0 0.0
    %328 = vmatprep.subr.mxu0 0.0
    %329 = vmatpush2.msra.mxu0 0.0
    %330 = vmatprep.subr.mxu0 0.0
    %331 = vmatpush2.msra.mxu0 0.0
    %332 = vmatprep.subr.mxu0 0.0
    %333 = vmatpush2.msra.mxu0 0.0
    %334 = vmatprep.subr.mxu0 0.0
    %335 = vmatpush2.msra.mxu0 0.0
    %336 = vmatprep.subr.mxu0 0.0
    %337 = vmatpush2.msra.mxu0 0.0
    %338 = vmatprep.subr.mxu0 0.0
    %339 = vmatpush2.msra.mxu0 0.0
    %340 = vmatprep.subr.mxu0 0.0
    %341 = vmatpush2.msra.mxu0 0.0
    %342 = vmatprep.subr.mxu0 0.0
    %343 = vmatpush2.msra.mxu0 0.0
    %344 = vmatprep.subr.mxu0 0.0
    %345 = vmatpush2.msra.mxu0 0.0
    %346 = vmatprep.subr.mxu0 0.0
    %347 = vmatpush2.msra.mxu0 0.0
    %348 = vmatprep.subr.mxu0 0.0
    %349 = vmatpush2.msra.mxu0 0.0
    %350 = vmatprep.subr.mxu0 0.0
    %351 = vmatpush2.msra.mxu0 0.0
    %352 = vmatprep.subr.mxu0 0.0
    %353 = vmatpush2.msra.mxu0 0.0
    %354 = vmatprep.subr.mxu0 0.0
    %355 = vmatpush2.msra.mxu0 0.0
    %356 = vmatprep.subr.mxu0 0.0
    %357 = vmatpush2.msra.mxu0 0.0
    %358 = vmatprep.mubr.f32.mxu0 0.0
    %359 = vmatmul.mubr.f32.gmra.mxu0 %v277
    %v360 = vpop.f32.mrf.mxu0
    %v361 = vadd.f32 0.0, %v360
    %v362 = vpop.f32.mrf.mxu0
    %363 = vmatprep.mubr.f32.mxu0 0.0
    %364 = vmatmul.mubr.f32.gmra.mxu0 %v280
    %v365 = vpop.f32.mrf.mxu0
    %v366 = vadd.f32 0.0, %v365
    %v367 = vpop.f32.mrf.mxu0
    %368 = vmatprep.mubr.f32.mxu0 0.0
    %369 = vmatmul.mubr.f32.gmra.mxu0 %v283
    %v370 = vpop.f32.mrf.mxu0
    %v371 = vadd.f32 0.0, %v370
    %v372 = vpop.f32.mrf.mxu0
    %373 = vmatprep.mubr.f32.mxu0 0.0
    %374 = vmatmul.mubr.f32.gmra.mxu0 %v286
    %v375 = vpop.f32.mrf.mxu0
    %v376 = vadd.f32 0.0, %v375
    %v377 = vpop.f32.mrf.mxu0
    %378 = vmatprep.mubr.f32.mxu0 0.0
    %379 = vmatmul.mubr.f32.gmra.mxu0 %v289
    %v380 = vpop.f32.mrf.mxu0
    %v381 = vadd.f32 0.0, %v380
    %v382 = vpop.f32.mrf.mxu0
    %383 = vdwg.mxu0
    %v384 = vadd.f32 %v247, %v361
    %v385 = vadd.f32 %v252, %v366
    %v386 = vadd.f32 %v257, %v371
    %v387 = vadd.f32 %v262, %v376
    %v388 = vadd.f32 %v267, %v381
    %v389 = vld [vmem:[#allocation4 + $0x10] sm:$0x1]
    %v390 = vlaneseq
    %v391 = vshrl.u32 %v390, 7
    %v392 = vsub.s32 0, %v391
    %v393 = vrot.slane %v389, %v392
    %v394 = vadd.f32 %v384, %v393
    %v395 = vadd.f32 %v385, %v393
    %v396 = vadd.f32 %v386, %v393
    %v397 = vadd.f32 %v387, %v393
    %v398 = vadd.f32 %v388, %v393
    %vm399 = vcmp.ge.f32.partialorder %v394, 0.0
    %vm400 = vcmp.ge.f32.partialorder %v395, 0.0
    %vm401 = vcmp.ge.f32.partialorder %v396, 0.0
    %vm402 = vcmp.ge.f32.partialorder %v397, 0.0
    %vm403 = vcmp.ge.f32.partialorder %v398, 0.0
    %v404 = vmul.f32 %v394, 0.01
    %v405 = vmul.f32 %v395, 0.01
    %v406 = vmul.f32 %v396, 0.01
    %v407 = vmul.f32 %v397, 0.01
    %v408 = vmul.f32 %v398, 0.01
    %v409 = vsel %vm399, %v394, %v404
    %v410 = vsel %vm400, %v395, %v405
    %v411 = vsel %vm401, %v396, %v406
    %v412 = vsel %vm402, %v397, %v407
    %v413 = vsel %vm403, %v398, %v408
    %414 = vst.msk [vmem:[#allocation3 + $0x8] sm:$0xff] %vm26, %v409
    %415 = vst.msk [vmem:[#allocation3 + $0x10] sm:$0xff] %vm26, %v410
    %416 = vst.msk [vmem:[#allocation3 + $0x18] sm:$0xff] %vm26, %v411
    %417 = vst.msk [vmem:[#allocation3 + $0x20] sm:$0xff] %vm26, %v412
    %418 = vst.msk [vmem:[#allocation3 + $0x28] sm:$0xff] %vm26, %v413
    %419 = vst.msk [vmem:[#allocation3 + $0x18] sm:$0xff] %vm26, 0.0
    %v420 = vld [vmem:[#allocation3 + $0x6] sm:$0xff]
    %v421 = vld [vmem:[#allocation3 + $0xe] sm:$0xff]
    %v422 = vld [vmem:[#allocation3 + $0x16] sm:$0xff]
    %v423 = vld [vmem:[#allocation3 + $0x1e] sm:$0xff]
    %v424 = vld [vmem:[#allocation3 + $0x26] sm:$0xff]
    %v425 = vld [vmem:[#allocation4 + $0x18] sm:$0xff]
    %v426 = vld [vmem:[#allocation4 + $0x20] sm:$0xff]
    %v427 = vld [vmem:[#allocation4 + $0x28] sm:$0xff]
    %v428 = vld [vmem:[#allocation4 + $0x30] sm:$0xff]
    %v429 = vld [vmem:[#allocation3 + $0x7] sm:$0xff]
    %v430 = vld [vmem:[#allocation3 + $0xf] sm:$0xff]
    %v431 = vld [vmem:[#allocation3 + $0x17] sm:$0xff]
    %v432 = vld [vmem:[#allocation3 + $0x1f] sm:$0xff]
    %v433 = vld [vmem:[#allocation3 + $0x27] sm:$0xff]
    %v434 = vld [vmem:[#allocation4 + $0x38] sm:$0xff]
    %v435 = vld [vmem:[#allocation4 + $0x40] sm:$0xff]
    %v436 = vld [vmem:[#allocation4 + $0x48] sm:$0xff]
    %v437 = vld [vmem:[#allocation4 + $0x50] sm:$0xff]
    %v439 = vsel %vm26, %v429, 0
    %v442 = vsel %vm26, %v430, 0
    %v445 = vsel %vm26, %v431, 0
    %v448 = vsel %vm26, %v432, 0
    %v451 = vsel %vm26, %v433, 0
    %453 = vmatprep.subr.mxu0 0.0
    %454 = vmatpush1.msra.mxu0 0.0
    %455 = vmatprep.subr.mxu0 0.0
    %456 = vmatpush1.msra.mxu0 0.0
    %457 = vmatprep.subr.mxu0 0.0
    %458 = vmatpush1.msra.mxu0 0.0
    %459 = vmatprep.subr.mxu0 0.0
    %460 = vmatpush1.msra.mxu0 0.0
    %461 = vmatprep.subr.mxu0 0.0
    %462 = vmatpush1.msra.mxu0 0.0
    %463 = vmatprep.subr.mxu0 0.0
    %464 = vmatpush1.msra.mxu0 0.0
    %465 = vmatprep.subr.mxu0 0.0
    %466 = vmatpush1.msra.mxu0 0.0
    %467 = vmatprep.subr.mxu0 0.0
    %468 = vmatpush1.msra.mxu0 0.0
    %469 = vmatprep.subr.mxu0 0.0
    %470 = vmatpush1.msra.mxu0 0.0
    %471 = vmatprep.subr.mxu0 0.0
    %472 = vmatpush1.msra.mxu0 0.0
    %473 = vmatprep.subr.mxu0 0.0
    %474 = vmatpush1.msra.mxu0 0.0
    %475 = vmatprep.subr.mxu0 0.0
    %476 = vmatpush1.msra.mxu0 0.0
    %477 = vmatprep.subr.mxu0 0.0
    %478 = vmatpush1.msra.mxu0 %v437
    %479 = vmatprep.subr.mxu0 0.0
    %480 = vmatpush1.msra.mxu0 %v436
    %481 = vmatprep.subr.mxu0 0.0
    %482 = vmatpush1.msra.mxu0 %v435
    %483 = vmatprep.subr.mxu0 0.0
    %484 = vmatpush1.msra.mxu0 %v434
    %485 = vmatprep.subr.mxu0 0.0
    %486 = vmatpush2.msra.mxu0 0.0
    %487 = vmatprep.subr.mxu0 0.0
    %488 = vmatpush2.msra.mxu0 0.0
    %489 = vmatprep.subr.mxu0 0.0
    %490 = vmatpush2.msra.mxu0 0.0
    %491 = vmatprep.subr.mxu0 0.0
    %492 = vmatpush2.msra.mxu0 0.0
    %493 = vmatprep.subr.mxu0 0.0
    %494 = vmatpush2.msra.mxu0 0.0
    %495 = vmatprep.subr.mxu0 0.0
    %496 = vmatpush2.msra.mxu0 0.0
    %497 = vmatprep.subr.mxu0 0.0
    %498 = vmatpush2.msra.mxu0 0.0
    %499 = vmatprep.subr.mxu0 0.0
    %500 = vmatpush2.msra.mxu0 0.0
    %501 = vmatprep.subr.mxu0 0.0
    %502 = vmatpush2.msra.mxu0 0.0
    %503 = vmatprep.subr.mxu0 0.0
    %504 = vmatpush2.msra.mxu0 0.0
    %505 = vmatprep.subr.mxu0 0.0
    %506 = vmatpush2.msra.mxu0 0.0
    %507 = vmatprep.subr.mxu0 0.0
    %508 = vmatpush2.msra.mxu0 0.0
    %509 = vmatprep.subr.mxu0 0.0
    %510 = vmatpush2.msra.mxu0 0.0
    %511 = vmatprep.subr.mxu0 0.0
    %512 = vmatpush2.msra.mxu0 0.0
    %513 = vmatprep.subr.mxu0 0.0
    %514 = vmatpush2.msra.mxu0 0.0
    %515 = vmatprep.subr.mxu0 0.0
    %516 = vmatpush2.msra.mxu0 0.0
    %517 = vmatprep.mubr.f32.mxu0 0.0
    %518 = vmatmul.mubr.f32.gmra.mxu0 %v439
    %v519 = vpop.f32.mrf.mxu0
    %v520 = vadd.f32 0.0, %v519
    %v521 = vpop.f32.mrf.mxu0
    %522 = vmatprep.mubr.f32.mxu0 0.0
    %523 = vmatmul.mubr.f32.gmra.mxu0 %v442
    %v524 = vpop.f32.mrf.mxu0
    %v525 = vadd.f32 0.0, %v524
    %v526 = vpop.f32.mrf.mxu0
    %527 = vmatprep.mubr.f32.mxu0 0.0
    %528 = vmatmul.mubr.f32.gmra.mxu0 %v445
    %v529 = vpop.f32.mrf.mxu0
    %v530 = vadd.f32 0.0, %v529
    %v531 = vpop.f32.mrf.mxu0
    %532 = vmatprep.mubr.f32.mxu0 0.0
    %533 = vmatmul.mubr.f32.gmra.mxu0 %v448
    %v534 = vpop.f32.mrf.mxu0
    %v535 = vadd.f32 0.0, %v534
    %v536 = vpop.f32.mrf.mxu0
    %537 = vmatprep.mubr.f32.mxu0 0.0
    %538 = vmatmul.mubr.f32.gmra.mxu0 %v451
    %v539 = vpop.f32.mrf.mxu0
    %v540 = vadd.f32 0.0, %v539
    %v541 = vpop.f32.mrf.mxu0
    %542 = vdwg.mxu0
    %v544 = vsel %vm26, %v420, 0
    %v547 = vsel %vm26, %v421, 0
    %v550 = vsel %vm26, %v422, 0
    %v553 = vsel %vm26, %v423, 0
    %v556 = vsel %vm26, %v424, 0
    %558 = vmatprep.subr.mxu0 0.0
    %559 = vmatpush1.msra.mxu0 0.0
    %560 = vmatprep.subr.mxu0 0.0
    %561 = vmatpush1.msra.mxu0 0.0
    %562 = vmatprep.subr.mxu0 0.0
    %563 = vmatpush1.msra.mxu0 0.0
    %564 = vmatprep.subr.mxu0 0.0
    %565 = vmatpush1.msra.mxu0 0.0
    %566 = vmatprep.subr.mxu0 0.0
    %567 = vmatpush1.msra.mxu0 0.0
    %568 = vmatprep.subr.mxu0 0.0
    %569 = vmatpush1.msra.mxu0 0.0
    %570 = vmatprep.subr.mxu0 0.0
    %571 = vmatpush1.msra.mxu0 0.0
    %572 = vmatprep.subr.mxu0 0.0
    %573 = vmatpush1.msra.mxu0 0.0
    %574 = vmatprep.subr.mxu0 0.0
    %575 = vmatpush1.msra.mxu0 0.0
    %576 = vmatprep.subr.mxu0 0.0
    %577 = vmatpush1.msra.mxu0 0.0
    %578 = vmatprep.subr.mxu0 0.0
    %579 = vmatpush1.msra.mxu0 0.0
    %580 = vmatprep.subr.mxu0 0.0
    %581 = vmatpush1.msra.mxu0 0.0
    %582 = vmatprep.subr.mxu0 0.0
    %583 = vmatpush1.msra.mxu0 %v428
    %584 = vmatprep.subr.mxu0 0.0
    %585 = vmatpush1.msra.mxu0 %v427
    %586 = vmatprep.subr.mxu0 0.0
    %587 = vmatpush1.msra.mxu0 %v426
    %588 = vmatprep.subr.mxu0 0.0
    %589 = vmatpush1.msra.mxu0 %v425
    %590 = vmatprep.subr.mxu0 0.0
    %591 = vmatpush2.msra.mxu0 0.0
    %592 = vmatprep.subr.mxu0 0.0
    %593 = vmatpush2.msra.mxu0 0.0
    %594 = vmatprep.subr.mxu0 0.0
    %595 = vmatpush2.msra.mxu0 0.0
    %596 = vmatprep.subr.mxu0 0.0
    %597 = vmatpush2.msra.mxu0 0.0
    %598 = vmatprep.subr.mxu0 0.0
    %599 = vmatpush2.msra.mxu0 0.0
    %600 = vmatprep.subr.mxu0 0.0
    %601 = vmatpush2.msra.mxu0 0.0
    %602 = vmatprep.subr.mxu0 0.0
    %603 = vmatpush2.msra.mxu0 0.0
    %604 = vmatprep.subr.mxu0 0.0
    %605 = vmatpush2.msra.mxu0 0.0
    %606 = vmatprep.subr.mxu0 0.0
    %607 = vmatpush2.msra.mxu0 0.0
    %608 = vmatprep.subr.mxu0 0.0
    %609 = vmatpush2.msra.mxu0 0.0
    %610 = vmatprep.subr.mxu0 0.0
    %611 = vmatpush2.msra.mxu0 0.0
    %612 = vmatprep.subr.mxu0 0.0
    %613 = vmatpush2.msra.mxu0 0.0
    %614 = vmatprep.subr.mxu0 0.0
    %615 = vmatpush2.msra.mxu0 0.0
    %616 = vmatprep.subr.mxu0 0.0
    %617 = vmatpush2.msra.mxu0 0.0
    %618 = vmatprep.subr.mxu0 0.0
    %619 = vmatpush2.msra.mxu0 0.0
    %620 = vmatprep.subr.mxu0 0.0
    %621 = vmatpush2.msra.mxu0 0.0
    %622 = vmatprep.mubr.f32.mxu0 0.0
    %623 = vmatmul.mubr.f32.gmra.mxu0 %v544
    %v624 = vpop.f32.mrf.mxu0
    %v625 = vadd.f32 %v520, %v624
    %v626 = vpop.f32.mrf.mxu0
    %627 = vmatprep.mubr.f32.mxu0 0.0
    %628 = vmatmul.mubr.f32.gmra.mxu0 %v547
    %v629 = vpop.f32.mrf.mxu0
    %v630 = vadd.f32 %v525, %v629
    %v631 = vpop.f32.mrf.mxu0
    %632 = vmatprep.mubr.f32.mxu0 0.0
    %633 = vmatmul.mubr.f32.gmra.mxu0 %v550
    %v634 = vpop.f32.mrf.mxu0
    %v635 = vadd.f32 %v530, %v634
    %v636 = vpop.f32.mrf.mxu0
    %637 = vmatprep.mubr.f32.mxu0 0.0
    %638 = vmatmul.mubr.f32.gmra.mxu0 %v553
    %v639 = vpop.f32.mrf.mxu0
    %v640 = vadd.f32 %v535, %v639
    %v641 = vpop.f32.mrf.mxu0
    %642 = vmatprep.mubr.f32.mxu0 0.0
    %643 = vmatmul.mubr.f32.gmra.mxu0 %v556
    %v644 = vpop.f32.mrf.mxu0
    %v645 = vadd.f32 %v540, %v644
    %v646 = vpop.f32.mrf.mxu0
    %647 = vdwg.mxu0
    %v648 = vld [vmem:[#allocation3 + $0x8] sm:$0xff]
    %v649 = vld [vmem:[#allocation3 + $0x10] sm:$0xff]
    %v650 = vld [vmem:[#allocation3 + $0x18] sm:$0xff]
    %v651 = vld [vmem:[#allocation3 + $0x20] sm:$0xff]
    %v652 = vld [vmem:[#allocation3 + $0x28] sm:$0xff]
    %v653 = vld [vmem:[#allocation4 + $0x58] sm:$0xff]
    %v654 = vld [vmem:[#allocation4 + $0x60] sm:$0xff]
    %v655 = vld [vmem:[#allocation4 + $0x68] sm:$0xff]
    %v656 = vld [vmem:[#allocation4 + $0x70] sm:$0xff]
    %v658 = vsel %vm26, %v648, 0
    %v661 = vsel %vm26, %v649, 0
    %v664 = vsel %vm26, %v650, 0
    %v667 = vsel %vm26, %v651, 0
    %v670 = vsel %vm26, %v652, 0
    %672 = vmatprep.subr.mxu0 0.0
    %673 = vmatpush1.msra.mxu0 0.0
    %674 = vmatprep.subr.mxu0 0.0
    %675 = vmatpush1.msra.mxu0 0.0
    %676 = vmatprep.subr.mxu0 0.0
    %677 = vmatpush1.msra.mxu0 0.0
    %678 = vmatprep.subr.mxu0 0.0
    %679 = vmatpush1.msra.mxu0 0.0
    %680 = vmatprep.subr.mxu0 0.0
    %681 = vmatpush1.msra.mxu0 0.0
    %682 = vmatprep.subr.mxu0 0.0
    %683 = vmatpush1.msra.mxu0 0.0
    %684 = vmatprep.subr.mxu0 0.0
    %685 = vmatpush1.msra.mxu0 0.0
    %686 = vmatprep.subr.mxu0 0.0
    %687 = vmatpush1.msra.mxu0 0.0
    %688 = vmatprep.subr.mxu0 0.0
    %689 = vmatpush1.msra.mxu0 0.0
    %690 = vmatprep.subr.mxu0 0.0
    %691 = vmatpush1.msra.mxu0 0.0
    %692 = vmatprep.subr.mxu0 0.0
    %693 = vmatpush1.msra.mxu0 0.0
    %694 = vmatprep.subr.mxu0 0.0
    %695 = vmatpush1.msra.mxu0 0.0
    %696 = vmatprep.subr.mxu0 0.0
    %697 = vmatpush1.msra.mxu0 %v656
    %698 = vmatprep.subr.mxu0 0.0
    %699 = vmatpush1.msra.mxu0 %v655
    %700 = vmatprep.subr.mxu0 0.0
    %701 = vmatpush1.msra.mxu0 %v654
    %702 = vmatprep.subr.mxu0 0.0
    %703 = vmatpush1.msra.mxu0 %v653
    %704 = vmatprep.subr.mxu0 0.0
    %705 = vmatpush2.msra.mxu0 0.0
    %706 = vmatprep.subr.mxu0 0.0
    %707 = vmatpush2.msra.mxu0 0.0
    %708 = vmatprep.subr.mxu0 0.0
    %709 = vmatpush2.msra.mxu0 0.0
    %710 = vmatprep.subr.mxu0 0.0
    %711 = vmatpush2.msra.mxu0 0.0
    %712 = vmatprep.subr.mxu0 0.0
    %713 = vmatpush2.msra.mxu0 0.0
    %714 = vmatprep.subr.mxu0 0.0
    %715 = vmatpush2.msra.mxu0 0.0
    %716 = vmatprep.subr.mxu0 0.0
    %717 = vmatpush2.msra.mxu0 0.0
    %718 = vmatprep.subr.mxu0 0.0
    %719 = vmatpush2.msra.mxu0 0.0
    %720 = vmatprep.subr.mxu0 0.0
    %721 = vmatpush2.msra.mxu0 0.0
    %722 = vmatprep.subr.mxu0 0.0
    %723 = vmatpush2.msra.mxu0 0.0
    %724 = vmatprep.subr.mxu0 0.0
    %725 = vmatpush2.msra.mxu0 0.0
    %726 = vmatprep.subr.mxu0 0.0
    %727 = vmatpush2.msra.mxu0 0.0
    %728 = vmatprep.subr.mxu0 0.0
    %729 = vmatpush2.msra.mxu0 0.0
    %730 = vmatprep.subr.mxu0 0.0
    %731 = vmatpush2.msra.mxu0 0.0
    %732 = vmatprep.subr.mxu0 0.0
    %733 = vmatpush2.msra.mxu0 0.0
    %734 = vmatprep.subr.mxu0 0.0
    %735 = vmatpush2.msra.mxu0 0.0
    %736 = vmatprep.mubr.f32.mxu0 0.0
    %737 = vmatmul.mubr.f32.gmra.mxu0 %v658
    %v738 = vpop.f32.mrf.mxu0
    %v739 = vadd.f32 0.0, %v738
    %v740 = vpop.f32.mrf.mxu0
    %741 = vmatprep.mubr.f32.mxu0 0.0
    %742 = vmatmul.mubr.f32.gmra.mxu0 %v661
    %v743 = vpop.f32.mrf.mxu0
    %v744 = vadd.f32 0.0, %v743
    %v745 = vpop.f32.mrf.mxu0
    %746 = vmatprep.mubr.f32.mxu0 0.0
    %747 = vmatmul.mubr.f32.gmra.mxu0 %v664
    %v748 = vpop.f32.mrf.mxu0
    %v749 = vadd.f32 0.0, %v748
    %v750 = vpop.f32.mrf.mxu0
    %751 = vmatprep.mubr.f32.mxu0 0.0
    %752 = vmatmul.mubr.f32.gmra.mxu0 %v667
    %v753 = vpop.f32.mrf.mxu0
    %v754 = vadd.f32 0.0, %v753
    %v755 = vpop.f32.mrf.mxu0
    %756 = vmatprep.mubr.f32.mxu0 0.0
    %757 = vmatmul.mubr.f32.gmra.mxu0 %v670
    %v758 = vpop.f32.mrf.mxu0
    %v759 = vadd.f32 0.0, %v758
    %v760 = vpop.f32.mrf.mxu0
    %761 = vdwg.mxu0
    %v762 = vadd.f32 %v625, %v739
    %v763 = vadd.f32 %v630, %v744
    %v764 = vadd.f32 %v635, %v749
    %v765 = vadd.f32 %v640, %v754
    %v766 = vadd.f32 %v645, %v759
    %v767 = vld [vmem:[#allocation4 + $0x78] sm:$0x1]
    %v768 = vlaneseq
    %v769 = vshrl.u32 %v768, 7
    %v770 = vsub.s32 0, %v769
    %v771 = vrot.slane %v767, %v770
    %v772 = vadd.f32 %v762, %v771
    %v773 = vadd.f32 %v763, %v771
    %v774 = vadd.f32 %v764, %v771
    %v775 = vadd.f32 %v765, %v771
    %v776 = vadd.f32 %v766, %v771
    %vm777 = vcmp.ge.f32.partialorder %v772, 0.0
    %vm778 = vcmp.ge.f32.partialorder %v773, 0.0
    %vm779 = vcmp.ge.f32.partialorder %v774, 0.0
    %vm780 = vcmp.ge.f32.partialorder %v775, 0.0
    %vm781 = vcmp.ge.f32.partialorder %v776, 0.0
    %v782 = vmul.f32 %v772, 0.01
    %v783 = vmul.f32 %v773, 0.01
    %v784 = vmul.f32 %v774, 0.01
    %v785 = vmul.f32 %v775, 0.01
    %v786 = vmul.f32 %v776, 0.01
    %v787 = vsel %vm777, %v772, %v782
    %v788 = vsel %vm778, %v773, %v783
    %v789 = vsel %vm779, %v774, %v784
    %v790 = vsel %vm780, %v775, %v785
    %v791 = vsel %vm781, %v776, %v786
    %v792 = vld [vmem:[#allocation2 + $0x8] sm:$0xff]
    %v793 = vld [vmem:[#allocation2 + $0x10] sm:$0xff]
    %v794 = vld [vmem:[#allocation2 + $0x18] sm:$0xff]
    %v795 = vld [vmem:[#allocation2 + $0x20] sm:$0xff]
    %v796 = vld [vmem:[#allocation2 + $0x28] sm:$0xff]
    %v797 = vld [vmem:[#allocation4 + $0x80] sm:$0xf]
    %v798 = vld [vmem:[#allocation4 + $0x88] sm:$0x1]
    %v799 = vlaneseq
    %v800 = vshrl.u32 %v799, 7
    %v801 = vsub.s32 0, %v800
    %v802 = vrot.slane %v798, %v801
    %v804 = vsel %vm33, %v792, 0
    %v807 = vsel %vm33, %v793, 0
    %v810 = vsel %vm33, %v794, 0
    %v813 = vsel %vm33, %v795, 0
    %v816 = vsel %vm33, %v796, 0
    %v819 = vsel %vm68, %v797, 0
    %821 = vmatprep.subr.mxu0 0.0
    %822 = vmatpush1.msra.mxu0 0.0
    %823 = vmatprep.subr.mxu0 0.0
    %824 = vmatpush1.msra.mxu0 0.0
    %825 = vmatprep.subr.mxu0 0.0
    %826 = vmatpush1.msra.mxu0 0.0
    %827 = vmatprep.subr.mxu0 0.0
    %828 = vmatpush1.msra.mxu0 0.0
    %829 = vmatprep.subr.mxu0 0.0
    %830 = vmatpush1.msra.mxu0 0.0
    %831 = vmatprep.subr.mxu0 0.0
    %832 = vmatpush1.msra.mxu0 0.0
    %833 = vmatprep.subr.mxu0 0.0
    %834 = vmatpush1.msra.mxu0 0.0
    %835 = vmatprep.subr.mxu0 0.0
    %836 = vmatpush1.msra.mxu0 0.0
    %837 = vmatprep.subr.mxu0 0.0
    %838 = vmatpush1.msra.mxu0 0.0
    %839 = vmatprep.subr.mxu0 0.0
    %840 = vmatpush1.msra.mxu0 0.0
    %841 = vmatprep.subr.mxu0 0.0
    %842 = vmatpush1.msra.mxu0 0.0
    %843 = vmatprep.subr.mxu0 0.0
    %844 = vmatpush1.msra.mxu0 0.0
    %845 = vmatprep.subr.mxu0 0.0
    %846 = vmatpush1.msra.mxu0 0.0
    %847 = vmatprep.subr.mxu0 0.0
    %848 = vmatpush1.msra.mxu0 0.0
    %849 = vmatprep.subr.mxu0 0.0
    %850 = vmatpush1.msra.mxu0 0.0
    %851 = vmatprep.subr.mxu0 0.0
    %852 = vmatpush1.msra.mxu0 %v819
    %853 = vmatprep.subr.mxu0 0.0
    %854 = vmatpush2.msra.mxu0 0.0
    %855 = vmatprep.subr.mxu0 0.0
    %856 = vmatpush2.msra.mxu0 0.0
    %857 = vmatprep.subr.mxu0 0.0
    %858 = vmatpush2.msra.mxu0 0.0
    %859 = vmatprep.subr.mxu0 0.0
    %860 = vmatpush2.msra.mxu0 0.0
    %861 = vmatprep.subr.mxu0 0.0
    %862 = vmatpush2.msra.mxu0 0.0
    %863 = vmatprep.subr.mxu0 0.0
    %864 = vmatpush2.msra.mxu0 0.0
    %865 = vmatprep.subr.mxu0 0.0
    %866 = vmatpush2.msra.mxu0 0.0
    %867 = vmatprep.subr.mxu0 0.0
    %868 = vmatpush2.msra.mxu0 0.0
    %869 = vmatprep.subr.mxu0 0.0
    %870 = vmatpush2.msra.mxu0 0.0
    %871 = vmatprep.subr.mxu0 0.0
    %872 = vmatpush2.msra.mxu0 0.0
    %873 = vmatprep.subr.mxu0 0.0
    %874 = vmatpush2.msra.mxu0 0.0
    %875 = vmatprep.subr.mxu0 0.0
    %876 = vmatpush2.msra.mxu0 0.0
    %877 = vmatprep.subr.mxu0 0.0
    %878 = vmatpush2.msra.mxu0 0.0
    %879 = vmatprep.subr.mxu0 0.0
    %880 = vmatpush2.msra.mxu0 0.0
    %881 = vmatprep.subr.mxu0 0.0
    %882 = vmatpush2.msra.mxu0 0.0
    %883 = vmatprep.subr.mxu0 0.0
    %884 = vmatpush2.msra.mxu0 0.0
    %885 = vmatprep.mubr.f32.mxu0 0.0
    %886 = vmatmul.mubr.f32.gmra.mxu0 %v804
    %v887 = vpop.f32.mrf.mxu0
    %v888 = vadd.f32 %v802, %v887
    %v889 = vpop.f32.mrf.mxu0
    %890 = vmatprep.mubr.f32.mxu0 0.0
    %891 = vmatmul.mubr.f32.gmra.mxu0 %v807
    %v892 = vpop.f32.mrf.mxu0
    %v893 = vadd.f32 %v802, %v892
    %v894 = vpop.f32.mrf.mxu0
    %895 = vmatprep.mubr.f32.mxu0 0.0
    %896 = vmatmul.mubr.f32.gmra.mxu0 %v810
    %v897 = vpop.f32.mrf.mxu0
    %v898 = vadd.f32 %v802, %v897
    %v899 = vpop.f32.mrf.mxu0
    %900 = vmatprep.mubr.f32.mxu0 0.0
    %901 = vmatmul.mubr.f32.gmra.mxu0 %v813
    %v902 = vpop.f32.mrf.mxu0
    %v903 = vadd.f32 %v802, %v902
    %v904 = vpop.f32.mrf.mxu0
    %905 = vmatprep.mubr.f32.mxu0 0.0
    %906 = vmatmul.mubr.f32.gmra.mxu0 %v816
    %v907 = vpop.f32.mrf.mxu0
    %v908 = vadd.f32 %v802, %v907
    %v909 = vpop.f32.mrf.mxu0
    %910 = vdwg.mxu0
    %v911 = vadd.f32 %v787, %v888
    %v912 = vadd.f32 %v788, %v893
    %v913 = vadd.f32 %v789, %v898
    %v914 = vadd.f32 %v790, %v903
    %v915 = vadd.f32 %v791, %v908
    %916 = vst.msk [vmem:[#allocation2 + $0x8] sm:$0xff] %vm26, %v911
    %917 = vst.msk [vmem:[#allocation2 + $0x10] sm:$0xff] %vm26, %v912
    %918 = vst.msk [vmem:[#allocation2 + $0x18] sm:$0xff] %vm26, %v913
    %919 = vst.msk [vmem:[#allocation2 + $0x20] sm:$0xff] %vm26, %v914
    %920 = vst.msk [vmem:[#allocation2 + $0x28] sm:$0xff] %vm26, %v915
    %921 = vst.msk [vmem:[#allocation2 + $0x18] sm:$0xff] %vm26, 0.0
    %v922 = vld [vmem:[#allocation2 + $0x4] sm:$0xff]
    %v923 = vld [vmem:[#allocation2 + $0xc] sm:$0xff]
    %v924 = vld [vmem:[#allocation2 + $0x14] sm:$0xff]
    %v925 = vld [vmem:[#allocation2 + $0x1c] sm:$0xff]
    %v926 = vld [vmem:[#allocation2 + $0x24] sm:$0xff]
    %v927 = vld [vmem:[#allocation4 + $0x90] sm:$0xff]
    %v928 = vld [vmem:[#allocation4 + $0x98] sm:$0xff]
    %v929 = vld [vmem:[#allocation4 + $0xa0] sm:$0xff]
    %v930 = vld [vmem:[#allocation4 + $0xa8] sm:$0xff]
    %v931 = vld [vmem:[#allocation2 + $0x6] sm:$0xff]
    %v932 = vld [vmem:[#allocation2 + $0xe] sm:$0xff]
    %v933 = vld [vmem:[#allocation2 + $0x16] sm:$0xff]
    %v934 = vld [vmem:[#allocation2 + $0x1e] sm:$0xff]
    %v935 = vld [vmem:[#allocation2 + $0x26] sm:$0xff]
    %v936 = vld [vmem:[#allocation4 + $0xb0] sm:$0xff]
    %v937 = vld [vmem:[#allocation4 + $0xb8] sm:$0xff]
    %v938 = vld [vmem:[#allocation4 + $0xc0] sm:$0xff]
    %v939 = vld [vmem:[#allocation4 + $0xc8] sm:$0xff]
    %v941 = vsel %vm26, %v931, 0
    %v944 = vsel %vm26, %v932, 0
    %v947 = vsel %vm26, %v933, 0
    %v950 = vsel %vm26, %v934, 0
    %v953 = vsel %vm26, %v935, 0
    %955 = vmatprep.subr.mxu0 0.0
    %956 = vmatpush1.msra.mxu0 0.0
    %957 = vmatprep.subr.mxu0 0.0
    %958 = vmatpush1.msra.mxu0 0.0
    %959 = vmatprep.subr.mxu0 0.0
    %960 = vmatpush1.msra.mxu0 0.0
    %961 = vmatprep.subr.mxu0 0.0
    %962 = vmatpush1.msra.mxu0 0.0
    %963 = vmatprep.subr.mxu0 0.0
    %964 = vmatpush1.msra.mxu0 0.0
    %965 = vmatprep.subr.mxu0 0.0
    %966 = vmatpush1.msra.mxu0 0.0
    %967 = vmatprep.subr.mxu0 0.0
    %968 = vmatpush1.msra.mxu0 0.0
    %969 = vmatprep.subr.mxu0 0.0
    %970 = vmatpush1.msra.mxu0 0.0
    %971 = vmatprep.subr.mxu0 0.0
    %972 = vmatpush1.msra.mxu0 0.0
    %973 = vmatprep.subr.mxu0 0.0
    %974 = vmatpush1.msra.mxu0 0.0
    %975 = vmatprep.subr.mxu0 0.0
    %976 = vmatpush1.msra.mxu0 0.0
    %977 = vmatprep.subr.mxu0 0.0
    %978 = vmatpush1.msra.mxu0 0.0
    %979 = vmatprep.subr.mxu0 0.0
    %980 = vmatpush1.msra.mxu0 %v939
    %981 = vmatprep.subr.mxu0 0.0
    %982 = vmatpush1.msra.mxu0 %v938
    %983 = vmatprep.subr.mxu0 0.0
    %984 = vmatpush1.msra.mxu0 %v937
    %985 = vmatprep.subr.mxu0 0.0
    %986 = vmatpush1.msra.mxu0 %v936
    %987 = vmatprep.subr.mxu0 0.0
    %988 = vmatpush2.msra.mxu0 0.0
    %989 = vmatprep.subr.mxu0 0.0
    %990 = vmatpush2.msra.mxu0 0.0
    %991 = vmatprep.subr.mxu0 0.0
    %992 = vmatpush2.msra.mxu0 0.0
    %993 = vmatprep.subr.mxu0 0.0
    %994 = vmatpush2.msra.mxu0 0.0
    %995 = vmatprep.subr.mxu0 0.0
    %996 = vmatpush2.msra.mxu0 0.0
    %997 = vmatprep.subr.mxu0 0.0
    %998 = vmatpush2.msra.mxu0 0.0
    %999 = vmatprep.subr.mxu0 0.0
    %1000 = vmatpush2.msra.mxu0 0.0
    %1001 = vmatprep.subr.mxu0 0.0
    %1002 = vmatpush2.msra.mxu0 0.0
    %1003 = vmatprep.subr.mxu0 0.0
    %1004 = vmatpush2.msra.mxu0 0.0
    %1005 = vmatprep.subr.mxu0 0.0
    %1006 = vmatpush2.msra.mxu0 0.0
    %1007 = vmatprep.subr.mxu0 0.0
    %1008 = vmatpush2.msra.mxu0 0.0
    %1009 = vmatprep.subr.mxu0 0.0
    %1010 = vmatpush2.msra.mxu0 0.0
    %1011 = vmatprep.subr.mxu0 0.0
    %1012 = vmatpush2.msra.mxu0 0.0
    %1013 = vmatprep.subr.mxu0 0.0
    %1014 = vmatpush2.msra.mxu0 0.0
    %1015 = vmatprep.subr.mxu0 0.0
    %1016 = vmatpush2.msra.mxu0 0.0
    %1017 = vmatprep.subr.mxu0 0.0
    %1018 = vmatpush2.msra.mxu0 0.0
    %1019 = vmatprep.mubr.f32.mxu0 0.0
    %1020 = vmatmul.mubr.f32.gmra.mxu0 %v941
    %v1021 = vpop.f32.mrf.mxu0
    %v1022 = vadd.f32 0.0, %v1021
    %v1023 = vpop.f32.mrf.mxu0
    %1024 = vmatprep.mubr.f32.mxu0 0.0
    %1025 = vmatmul.mubr.f32.gmra.mxu0 %v944
    %v1026 = vpop.f32.mrf.mxu0
    %v1027 = vadd.f32 0.0, %v1026
    %v1028 = vpop.f32.mrf.mxu0
    %1029 = vmatprep.mubr.f32.mxu0 0.0
    %1030 = vmatmul.mubr.f32.gmra.mxu0 %v947
    %v1031 = vpop.f32.mrf.mxu0
    %v1032 = vadd.f32 0.0, %v1031
    %v1033 = vpop.f32.mrf.mxu0
    %1034 = vmatprep.mubr.f32.mxu0 0.0
    %1035 = vmatmul.mubr.f32.gmra.mxu0 %v950
    %v1036 = vpop.f32.mrf.mxu0
    %v1037 = vadd.f32 0.0, %v1036
    %v1038 = vpop.f32.mrf.mxu0
    %1039 = vmatprep.mubr.f32.mxu0 0.0
    %1040 = vmatmul.mubr.f32.gmra.mxu0 %v953
    %v1041 = vpop.f32.mrf.mxu0
    %v1042 = vadd.f32 0.0, %v1041
    %v1043 = vpop.f32.mrf.mxu0
    %1044 = vdwg.mxu0
    %v1046 = vsel %vm26, %v922, 0
    %v1049 = vsel %vm26, %v923, 0
    %v1052 = vsel %vm26, %v924, 0
    %v1055 = vsel %vm26, %v925, 0
    %v1058 = vsel %vm26, %v926, 0
    %1060 = vmatprep.subr.mxu0 0.0
    %1061 = vmatpush1.msra.mxu0 0.0
    %1062 = vmatprep.subr.mxu0 0.0
    %1063 = vmatpush1.msra.mxu0 0.0
    %1064 = vmatprep.subr.mxu0 0.0
    %1065 = vmatpush1.msra.mxu0 0.0
    %1066 = vmatprep.subr.mxu0 0.0
    %1067 = vmatpush1.msra.mxu0 0.0
    %1068 = vmatprep.subr.mxu0 0.0
    %1069 = vmatpush1.msra.mxu0 0.0
    %1070 = vmatprep.subr.mxu0 0.0
    %1071 = vmatpush1.msra.mxu0 0.0
    %1072 = vmatprep.subr.mxu0 0.0
    %1073 = vmatpush1.msra.mxu0 0.0
    %1074 = vmatprep.subr.mxu0 0.0
    %1075 = vmatpush1.msra.mxu0 0.0
    %1076 = vmatprep.subr.mxu0 0.0
    %1077 = vmatpush1.msra.mxu0 0.0
    %1078 = vmatprep.subr.mxu0 0.0
    %1079 = vmatpush1.msra.mxu0 0.0
    %1080 = vmatprep.subr.mxu0 0.0
    %1081 = vmatpush1.msra.mxu0 0.0
    %1082 = vmatprep.subr.mxu0 0.0
    %1083 = vmatpush1.msra.mxu0 0.0
    %1084 = vmatprep.subr.mxu0 0.0
    %1085 = vmatpush1.msra.mxu0 %v930
    %1086 = vmatprep.subr.mxu0 0.0
    %1087 = vmatpush1.msra.mxu0 %v929
    %1088 = vmatprep.subr.mxu0 0.0
    %1089 = vmatpush1.msra.mxu0 %v928
    %1090 = vmatprep.subr.mxu0 0.0
    %1091 = vmatpush1.msra.mxu0 %v927
    %1092 = vmatprep.subr.mxu0 0.0
    %1093 = vmatpush2.msra.mxu0 0.0
    %1094 = vmatprep.subr.mxu0 0.0
    %1095 = vmatpush2.msra.mxu0 0.0
    %1096 = vmatprep.subr.mxu0 0.0
    %1097 = vmatpush2.msra.mxu0 0.0
    %1098 = vmatprep.subr.mxu0 0.0
    %1099 = vmatpush2.msra.mxu0 0.0
    %1100 = vmatprep.subr.mxu0 0.0
    %1101 = vmatpush2.msra.mxu0 0.0
    %1102 = vmatprep.subr.mxu0 0.0
    %1103 = vmatpush2.msra.mxu0 0.0
    %1104 = vmatprep.subr.mxu0 0.0
    %1105 = vmatpush2.msra.mxu0 0.0
    %1106 = vmatprep.subr.mxu0 0.0
    %1107 = vmatpush2.msra.mxu0 0.0
    %1108 = vmatprep.subr.mxu0 0.0
    %1109 = vmatpush2.msra.mxu0 0.0
    %1110 = vmatprep.subr.mxu0 0.0
    %1111 = vmatpush2.msra.mxu0 0.0
    %1112 = vmatprep.subr.mxu0 0.0
    %1113 = vmatpush2.msra.mxu0 0.0
    %1114 = vmatprep.subr.mxu0 0.0
    %1115 = vmatpush2.msra.mxu0 0.0
    %1116 = vmatprep.subr.mxu0 0.0
    %1117 = vmatpush2.msra.mxu0 0.0
    %1118 = vmatprep.subr.mxu0 0.0
    %1119 = vmatpush2.msra.mxu0 0.0
    %1120 = vmatprep.subr.mxu0 0.0
    %1121 = vmatpush2.msra.mxu0 0.0
    %1122 = vmatprep.subr.mxu0 0.0
    %1123 = vmatpush2.msra.mxu0 0.0
    %1124 = vmatprep.mubr.f32.mxu0 0.0
    %1125 = vmatmul.mubr.f32.gmra.mxu0 %v1046
    %v1126 = vpop.f32.mrf.mxu0
    %v1127 = vadd.f32 %v1022, %v1126
    %v1128 = vpop.f32.mrf.mxu0
    %1129 = vmatprep.mubr.f32.mxu0 0.0
    %1130 = vmatmul.mubr.f32.gmra.mxu0 %v1049
    %v1131 = vpop.f32.mrf.mxu0
    %v1132 = vadd.f32 %v1027, %v1131
    %v1133 = vpop.f32.mrf.mxu0
    %1134 = vmatprep.mubr.f32.mxu0 0.0
    %1135 = vmatmul.mubr.f32.gmra.mxu0 %v1052
    %v1136 = vpop.f32.mrf.mxu0
    %v1137 = vadd.f32 %v1032, %v1136
    %v1138 = vpop.f32.mrf.mxu0
    %1139 = vmatprep.mubr.f32.mxu0 0.0
    %1140 = vmatmul.mubr.f32.gmra.mxu0 %v1055
    %v1141 = vpop.f32.mrf.mxu0
    %v1142 = vadd.f32 %v1037, %v1141
    %v1143 = vpop.f32.mrf.mxu0
    %1144 = vmatprep.mubr.f32.mxu0 0.0
    %1145 = vmatmul.mubr.f32.gmra.mxu0 %v1058
    %v1146 = vpop.f32.mrf.mxu0
    %v1147 = vadd.f32 %v1042, %v1146
    %v1148 = vpop.f32.mrf.mxu0
    %1149 = vdwg.mxu0
    %v1150 = vld [vmem:[#allocation2 + $0x8] sm:$0xff]
    %v1151 = vld [vmem:[#allocation2 + $0x10] sm:$0xff]
    %v1152 = vld [vmem:[#allocation2 + $0x18] sm:$0xff]
    %v1153 = vld [vmem:[#allocation2 + $0x20] sm:$0xff]
    %v1154 = vld [vmem:[#allocation2 + $0x28] sm:$0xff]
    %v1155 = vld [vmem:[#allocation4 + $0xd0] sm:$0xff]
    %v1156 = vld [vmem:[#allocation4 + $0xd8] sm:$0xff]
    %v1157 = vld [vmem:[#allocation4 + $0xe0] sm:$0xff]
    %v1158 = vld [vmem:[#allocation4 + $0xe8] sm:$0xff]
    %v1160 = vsel %vm26, %v1150, 0
    %v1163 = vsel %vm26, %v1151, 0
    %v1166 = vsel %vm26, %v1152, 0
    %v1169 = vsel %vm26, %v1153, 0
    %v1172 = vsel %vm26, %v1154, 0
    %1174 = vmatprep.subr.mxu0 0.0
    %1175 = vmatpush1.msra.mxu0 0.0
    %1176 = vmatprep.subr.mxu0 0.0
    %1177 = vmatpush1.msra.mxu0 0.0
    %1178 = vmatprep.subr.mxu0 0.0
    %1179 = vmatpush1.msra.mxu0 0.0
    %1180 = vmatprep.subr.mxu0 0.0
    %1181 = vmatpush1.msra.mxu0 0.0
    %1182 = vmatprep.subr.mxu0 0.0
    %1183 = vmatpush1.msra.mxu0 0.0
    %1184 = vmatprep.subr.mxu0 0.0
    %1185 = vmatpush1.msra.mxu0 0.0
    %1186 = vmatprep.subr.mxu0 0.0
    %1187 = vmatpush1.msra.mxu0 0.0
    %1188 = vmatprep.subr.mxu0 0.0
    %1189 = vmatpush1.msra.mxu0 0.0
    %1190 = vmatprep.subr.mxu0 0.0
    %1191 = vmatpush1.msra.mxu0 0.0
    %1192 = vmatprep.subr.mxu0 0.0
    %1193 = vmatpush1.msra.mxu0 0.0
    %1194 = vmatprep.subr.mxu0 0.0
    %1195 = vmatpush1.msra.mxu0 0.0
    %1196 = vmatprep.subr.mxu0 0.0
    %1197 = vmatpush1.msra.mxu0 0.0
    %1198 = vmatprep.subr.mxu0 0.0
    %1199 = vmatpush1.msra.mxu0 %v1158
    %1200 = vmatprep.subr.mxu0 0.0
    %1201 = vmatpush1.msra.mxu0 %v1157
    %1202 = vmatprep.subr.mxu0 0.0
    %1203 = vmatpush1.msra.mxu0 %v1156
    %1204 = vmatprep.subr.mxu0 0.0
    %1205 = vmatpush1.msra.mxu0 %v1155
    %1206 = vmatprep.subr.mxu0 0.0
    %1207 = vmatpush2.msra.mxu0 0.0
    %1208 = vmatprep.subr.mxu0 0.0
    %1209 = vmatpush2.msra.mxu0 0.0
    %1210 = vmatprep.subr.mxu0 0.0
    %1211 = vmatpush2.msra.mxu0 0.0
    %1212 = vmatprep.subr.mxu0 0.0
    %1213 = vmatpush2.msra.mxu0 0.0
    %1214 = vmatprep.subr.mxu0 0.0
    %1215 = vmatpush2.msra.mxu0 0.0
    %1216 = vmatprep.subr.mxu0 0.0
    %1217 = vmatpush2.msra.mxu0 0.0
    %1218 = vmatprep.subr.mxu0 0.0
    %1219 = vmatpush2.msra.mxu0 0.0
    %1220 = vmatprep.subr.mxu0 0.0
    %1221 = vmatpush2.msra.mxu0 0.0
    %1222 = vmatprep.subr.mxu0 0.0
    %1223 = vmatpush2.msra.mxu0 0.0
    %1224 = vmatprep.subr.mxu0 0.0
    %1225 = vmatpush2.msra.mxu0 0.0
    %1226 = vmatprep.subr.mxu0 0.0
    %1227 = vmatpush2.msra.mxu0 0.0
    %1228 = vmatprep.subr.mxu0 0.0
    %1229 = vmatpush2.msra.mxu0 0.0
    %1230 = vmatprep.subr.mxu0 0.0
    %1231 = vmatpush2.msra.mxu0 0.0
    %1232 = vmatprep.subr.mxu0 0.0
    %1233 = vmatpush2.msra.mxu0 0.0
    %1234 = vmatprep.subr.mxu0 0.0
    %1235 = vmatpush2.msra.mxu0 0.0
    %1236 = vmatprep.subr.mxu0 0.0
    %1237 = vmatpush2.msra.mxu0 0.0
    %1238 = vmatprep.mubr.f32.mxu0 0.0
    %1239 = vmatmul.mubr.f32.gmra.mxu0 %v1160
    %v1240 = vpop.f32.mrf.mxu0
    %v1241 = vadd.f32 0.0, %v1240
    %v1242 = vpop.f32.mrf.mxu0
    %1243 = vmatprep.mubr.f32.mxu0 0.0
    %1244 = vmatmul.mubr.f32.gmra.mxu0 %v1163
    %v1245 = vpop.f32.mrf.mxu0
    %v1246 = vadd.f32 0.0, %v1245
    %v1247 = vpop.f32.mrf.mxu0
    %1248 = vmatprep.mubr.f32.mxu0 0.0
    %1249 = vmatmul.mubr.f32.gmra.mxu0 %v1166
    %v1250 = vpop.f32.mrf.mxu0
    %v1251 = vadd.f32 0.0, %v1250
    %v1252 = vpop.f32.mrf.mxu0
    %1253 = vmatprep.mubr.f32.mxu0 0.0
    %1254 = vmatmul.mubr.f32.gmra.mxu0 %v1169
    %v1255 = vpop.f32.mrf.mxu0
    %v1256 = vadd.f32 0.0, %v1255
    %v1257 = vpop.f32.mrf.mxu0
    %1258 = vmatprep.mubr.f32.mxu0 0.0
    %1259 = vmatmul.mubr.f32.gmra.mxu0 %v1172
    %v1260 = vpop.f32.mrf.mxu0
    %v1261 = vadd.f32 0.0, %v1260
    %v1262 = vpop.f32.mrf.mxu0
    %1263 = vdwg.mxu0
    %v1264 = vadd.f32 %v1127, %v1241
    %v1265 = vadd.f32 %v1132, %v1246
    %v1266 = vadd.f32 %v1137, %v1251
    %v1267 = vadd.f32 %v1142, %v1256
    %v1268 = vadd.f32 %v1147, %v1261
    %v1269 = vld [vmem:[#allocation4 + $0xf0] sm:$0x1]
    %v1270 = vlaneseq
    %v1271 = vshrl.u32 %v1270, 7
    %v1272 = vsub.s32 0, %v1271
    %v1273 = vrot.slane %v1269, %v1272
    %v1274 = vadd.f32 %v1264, %v1273
    %v1275 = vadd.f32 %v1265, %v1273
    %v1276 = vadd.f32 %v1266, %v1273
    %v1277 = vadd.f32 %v1267, %v1273
    %v1278 = vadd.f32 %v1268, %v1273
    %vm1279 = vcmp.ge.f32.partialorder %v1274, 0.0
    %vm1280 = vcmp.ge.f32.partialorder %v1275, 0.0
    %vm1281 = vcmp.ge.f32.partialorder %v1276, 0.0
    %vm1282 = vcmp.ge.f32.partialorder %v1277, 0.0
    %vm1283 = vcmp.ge.f32.partialorder %v1278, 0.0
    %v1284 = vmul.f32 %v1274, 0.01
    %v1285 = vmul.f32 %v1275, 0.01
    %v1286 = vmul.f32 %v1276, 0.01
    %v1287 = vmul.f32 %v1277, 0.01
    %v1288 = vmul.f32 %v1278, 0.01
    %v1289 = vsel %vm1279, %v1274, %v1284
    %v1290 = vsel %vm1280, %v1275, %v1285
    %v1291 = vsel %vm1281, %v1276, %v1286
    %v1292 = vsel %vm1282, %v1277, %v1287
    %v1293 = vsel %vm1283, %v1278, %v1288
    %1294 = vst.msk [vmem:[#allocation3 + $0x8] sm:$0xff] %vm26, %v1289
    %1295 = vst.msk [vmem:[#allocation3 + $0x10] sm:$0xff] %vm26, %v1290
    %1296 = vst.msk [vmem:[#allocation3 + $0x18] sm:$0xff] %vm26, %v1291
    %1297 = vst.msk [vmem:[#allocation3 + $0x20] sm:$0xff] %vm26, %v1292
    %1298 = vst.msk [vmem:[#allocation3 + $0x28] sm:$0xff] %vm26, %v1293
    %1299 = vst.msk [vmem:[#allocation3 + $0x18] sm:$0xff] %vm26, 0.0
    %v1300 = vld [vmem:[#allocation3 + $0x4] sm:$0xff]
    %v1301 = vld [vmem:[#allocation3 + $0xc] sm:$0xff]
    %v1302 = vld [vmem:[#allocation3 + $0x14] sm:$0xff]
    %v1303 = vld [vmem:[#allocation3 + $0x1c] sm:$0xff]
    %v1304 = vld [vmem:[#allocation3 + $0x24] sm:$0xff]
    %v1305 = vld [vmem:[#allocation4 + $0xf8] sm:$0xff]
    %v1306 = vld [vmem:[#allocation4 + $0x100] sm:$0xff]
    %v1307 = vld [vmem:[#allocation4 + $0x108] sm:$0xff]
    %v1308 = vld [vmem:[#allocation4 + $0x110] sm:$0xff]
    %v1309 = vld [vmem:[#allocation3 + $0x6] sm:$0xff]
    %v1310 = vld [vmem:[#allocation3 + $0xe] sm:$0xff]
    %v1311 = vld [vmem:[#allocation3 + $0x16] sm:$0xff]
    %v1312 = vld [vmem:[#allocation3 + $0x1e] sm:$0xff]
    %v1313 = vld [vmem:[#allocation3 + $0x26] sm:$0xff]
    %v1314 = vld [vmem:[#allocation4 + $0x118] sm:$0xff]
    %v1315 = vld [vmem:[#allocation4 + $0x120] sm:$0xff]
    %v1316 = vld [vmem:[#allocation4 + $0x128] sm:$0xff]
    %v1317 = vld [vmem:[#allocation4 + $0x130] sm:$0xff]
    %v1319 = vsel %vm26, %v1309, 0
    %v1322 = vsel %vm26, %v1310, 0
    %v1325 = vsel %vm26, %v1311, 0
    %v1328 = vsel %vm26, %v1312, 0
    %v1331 = vsel %vm26, %v1313, 0
    %1333 = vmatprep.subr.mxu0 0.0
    %1334 = vmatpush1.msra.mxu0 0.0
    %1335 = vmatprep.subr.mxu0 0.0
    %1336 = vmatpush1.msra.mxu0 0.0
    %1337 = vmatprep.subr.mxu0 0.0
    %1338 = vmatpush1.msra.mxu0 0.0
    %1339 = vmatprep.subr.mxu0 0.0
    %1340 = vmatpush1.msra.mxu0 0.0
    %1341 = vmatprep.subr.mxu0 0.0
    %1342 = vmatpush1.msra.mxu0 0.0
    %1343 = vmatprep.subr.mxu0 0.0
    %1344 = vmatpush1.msra.mxu0 0.0
    %1345 = vmatprep.subr.mxu0 0.0
    %1346 = vmatpush1.msra.mxu0 0.0
    %1347 = vmatprep.subr.mxu0 0.0
    %1348 = vmatpush1.msra.mxu0 0.0
    %1349 = vmatprep.subr.mxu0 0.0
    %1350 = vmatpush1.msra.mxu0 0.0
    %1351 = vmatprep.subr.mxu0 0.0
    %1352 = vmatpush1.msra.mxu0 0.0
    %1353 = vmatprep.subr.mxu0 0.0
    %1354 = vmatpush1.msra.mxu0 0.0
    %1355 = vmatprep.subr.mxu0 0.0
    %1356 = vmatpush1.msra.mxu0 0.0
    %1357 = vmatprep.subr.mxu0 0.0
    %1358 = vmatpush1.msra.mxu0 %v1317
    %1359 = vmatprep.subr.mxu0 0.0
    %1360 = vmatpush1.msra.mxu0 %v1316
    %1361 = vmatprep.subr.mxu0 0.0
    %1362 = vmatpush1.msra.mxu0 %v1315
    %1363 = vmatprep.subr.mxu0 0.0
    %1364 = vmatpush1.msra.mxu0 %v1314
    %1365 = vmatprep.subr.mxu0 0.0
    %1366 = vmatpush2.msra.mxu0 0.0
    %1367 = vmatprep.subr.mxu0 0.0
    %1368 = vmatpush2.msra.mxu0 0.0
    %1369 = vmatprep.subr.mxu0 0.0
    %1370 = vmatpush2.msra.mxu0 0.0
    %1371 = vmatprep.subr.mxu0 0.0
    %1372 = vmatpush2.msra.mxu0 0.0
    %1373 = vmatprep.subr.mxu0 0.0
    %1374 = vmatpush2.msra.mxu0 0.0
    %1375 = vmatprep.subr.mxu0 0.0
    %1376 = vmatpush2.msra.mxu0 0.0
    %1377 = vmatprep.subr.mxu0 0.0
    %1378 = vmatpush2.msra.mxu0 0.0
    %1379 = vmatprep.subr.mxu0 0.0
    %1380 = vmatpush2.msra.mxu0 0.0
    %1381 = vmatprep.subr.mxu0 0.0
    %1382 = vmatpush2.msra.mxu0 0.0
    %1383 = vmatprep.subr.mxu0 0.0
    %1384 = vmatpush2.msra.mxu0 0.0
    %1385 = vmatprep.subr.mxu0 0.0
    %1386 = vmatpush2.msra.mxu0 0.0
    %1387 = vmatprep.subr.mxu0 0.0
    %1388 = vmatpush2.msra.mxu0 0.0
    %1389 = vmatprep.subr.mxu0 0.0
    %1390 = vmatpush2.msra.mxu0 0.0
    %1391 = vmatprep.subr.mxu0 0.0
    %1392 = vmatpush2.msra.mxu0 0.0
    %1393 = vmatprep.subr.mxu0 0.0
    %1394 = vmatpush2.msra.mxu0 0.0
    %1395 = vmatprep.subr.mxu0 0.0
    %1396 = vmatpush2.msra.mxu0 0.0
    %1397 = vmatprep.mubr.f32.mxu0 0.0
    %1398 = vmatmul.mubr.f32.gmra.mxu0 %v1319
    %v1399 = vpop.f32.mrf.mxu0
    %v1400 = vadd.f32 0.0, %v1399
    %v1401 = vpop.f32.mrf.mxu0
    %1402 = vmatprep.mubr.f32.mxu0 0.0
    %1403 = vmatmul.mubr.f32.gmra.mxu0 %v1322
    %v1404 = vpop.f32.mrf.mxu0
    %v1405 = vadd.f32 0.0, %v1404
    %v1406 = vpop.f32.mrf.mxu0
    %1407 = vmatprep.mubr.f32.mxu0 0.0
    %1408 = vmatmul.mubr.f32.gmra.mxu0 %v1325
    %v1409 = vpop.f32.mrf.mxu0
    %v1410 = vadd.f32 0.0, %v1409
    %v1411 = vpop.f32.mrf.mxu0
    %1412 = vmatprep.mubr.f32.mxu0 0.0
    %1413 = vmatmul.mubr.f32.gmra.mxu0 %v1328
    %v1414 = vpop.f32.mrf.mxu0
    %v1415 = vadd.f32 0.0, %v1414
    %v1416 = vpop.f32.mrf.mxu0
    %1417 = vmatprep.mubr.f32.mxu0 0.0
    %1418 = vmatmul.mubr.f32.gmra.mxu0 %v1331
    %v1419 = vpop.f32.mrf.mxu0
    %v1420 = vadd.f32 0.0, %v1419
    %v1421 = vpop.f32.mrf.mxu0
    %1422 = vdwg.mxu0
    %v1424 = vsel %vm26, %v1300, 0
    %v1427 = vsel %vm26, %v1301, 0
    %v1430 = vsel %vm26, %v1302, 0
    %v1433 = vsel %vm26, %v1303, 0
    %v1436 = vsel %vm26, %v1304, 0
    %1438 = vmatprep.subr.mxu0 0.0
    %1439 = vmatpush1.msra.mxu0 0.0
    %1440 = vmatprep.subr.mxu0 0.0
    %1441 = vmatpush1.msra.mxu0 0.0
    %1442 = vmatprep.subr.mxu0 0.0
    %1443 = vmatpush1.msra.mxu0 0.0
    %1444 = vmatprep.subr.mxu0 0.0
    %1445 = vmatpush1.msra.mxu0 0.0
    %1446 = vmatprep.subr.mxu0 0.0
    %1447 = vmatpush1.msra.mxu0 0.0
    %1448 = vmatprep.subr.mxu0 0.0
    %1449 = vmatpush1.msra.mxu0 0.0
    %1450 = vmatprep.subr.mxu0 0.0
    %1451 = vmatpush1.msra.mxu0 0.0
    %1452 = vmatprep.subr.mxu0 0.0
    %1453 = vmatpush1.msra.mxu0 0.0
    %1454 = vmatprep.subr.mxu0 0.0
    %1455 = vmatpush1.msra.mxu0 0.0
    %1456 = vmatprep.subr.mxu0 0.0
    %1457 = vmatpush1.msra.mxu0 0.0
    %1458 = vmatprep.subr.mxu0 0.0
    %1459 = vmatpush1.msra.mxu0 0.0
    %1460 = vmatprep.subr.mxu0 0.0
    %1461 = vmatpush1.msra.mxu0 0.0
    %1462 = vmatprep.subr.mxu0 0.0
    %1463 = vmatpush1.msra.mxu0 %v1308
    %1464 = vmatprep.subr.mxu0 0.0
    %1465 = vmatpush1.msra.mxu0 %v1307
    %1466 = vmatprep.subr.mxu0 0.0
    %1467 = vmatpush1.msra.mxu0 %v1306
    %1468 = vmatprep.subr.mxu0 0.0
    %1469 = vmatpush1.msra.mxu0 %v1305
    %1470 = vmatprep.subr.mxu0 0.0
    %1471 = vmatpush2.msra.mxu0 0.0
    %1472 = vmatprep.subr.mxu0 0.0
    %1473 = vmatpush2.msra.mxu0 0.0
    %1474 = vmatprep.subr.mxu0 0.0
    %1475 = vmatpush2.msra.mxu0 0.0
    %1476 = vmatprep.subr.mxu0 0.0
    %1477 = vmatpush2.msra.mxu0 0.0
    %1478 = vmatprep.subr.mxu0 0.0
    %1479 = vmatpush2.msra.mxu0 0.0
    %1480 = vmatprep.subr.mxu0 0.0
    %1481 = vmatpush2.msra.mxu0 0.0
    %1482 = vmatprep.subr.mxu0 0.0
    %1483 = vmatpush2.msra.mxu0 0.0
    %1484 = vmatprep.subr.mxu0 0.0
    %1485 = vmatpush2.msra.mxu0 0.0
    %1486 = vmatprep.subr.mxu0 0.0
    %1487 = vmatpush2.msra.mxu0 0.0
    %1488 = vmatprep.subr.mxu0 0.0
    %1489 = vmatpush2.msra.mxu0 0.0
    %1490 = vmatprep.subr.mxu0 0.0
    %1491 = vmatpush2.msra.mxu0 0.0
    %1492 = vmatprep.subr.mxu0 0.0
    %1493 = vmatpush2.msra.mxu0 0.0
    %1494 = vmatprep.subr.mxu0 0.0
    %1495 = vmatpush2.msra.mxu0 0.0
    %1496 = vmatprep.subr.mxu0 0.0
    %1497 = vmatpush2.msra.mxu0 0.0
    %1498 = vmatprep.subr.mxu0 0.0
    %1499 = vmatpush2.msra.mxu0 0.0
    %1500 = vmatprep.subr.mxu0 0.0
    %1501 = vmatpush2.msra.mxu0 0.0
    %1502 = vmatprep.mubr.f32.mxu0 0.0
    %1503 = vmatmul.mubr.f32.gmra.mxu0 %v1424
    %v1504 = vpop.f32.mrf.mxu0
    %v1505 = vadd.f32 %v1400, %v1504
    %v1506 = vpop.f32.mrf.mxu0
    %1507 = vmatprep.mubr.f32.mxu0 0.0
    %1508 = vmatmul.mubr.f32.gmra.mxu0 %v1427
    %v1509 = vpop.f32.mrf.mxu0
    %v1510 = vadd.f32 %v1405, %v1509
    %v1511 = vpop.f32.mrf.mxu0
    %1512 = vmatprep.mubr.f32.mxu0 0.0
    %1513 = vmatmul.mubr.f32.gmra.mxu0 %v1430
    %v1514 = vpop.f32.mrf.mxu0
    %v1515 = vadd.f32 %v1410, %v1514
    %v1516 = vpop.f32.mrf.mxu0
    %1517 = vmatprep.mubr.f32.mxu0 0.0
    %1518 = vmatmul.mubr.f32.gmra.mxu0 %v1433
    %v1519 = vpop.f32.mrf.mxu0
    %v1520 = vadd.f32 %v1415, %v1519
    %v1521 = vpop.f32.mrf.mxu0
    %1522 = vmatprep.mubr.f32.mxu0 0.0
    %1523 = vmatmul.mubr.f32.gmra.mxu0 %v1436
    %v1524 = vpop.f32.mrf.mxu0
    %v1525 = vadd.f32 %v1420, %v1524
    %v1526 = vpop.f32.mrf.mxu0
    %1527 = vdwg.mxu0
    %v1528 = vld [vmem:[#allocation3 + $0x8] sm:$0xff]
    %v1529 = vld [vmem:[#allocation3 + $0x10] sm:$0xff]
    %v1530 = vld [vmem:[#allocation3 + $0x18] sm:$0xff]
    %v1531 = vld [vmem:[#allocation3 + $0x20] sm:$0xff]
    %v1532 = vld [vmem:[#allocation3 + $0x28] sm:$0xff]
    %v1533 = vld [vmem:[#allocation4 + $0x138] sm:$0xff]
    %v1534 = vld [vmem:[#allocation4 + $0x140] sm:$0xff]
    %v1535 = vld [vmem:[#allocation4 + $0x148] sm:$0xff]
    %v1536 = vld [vmem:[#allocation4 + $0x150] sm:$0xff]
    %v1538 = vsel %vm26, %v1528, 0
    %v1541 = vsel %vm26, %v1529, 0
    %v1544 = vsel %vm26, %v1530, 0
    %v1547 = vsel %vm26, %v1531, 0
    %v1550 = vsel %vm26, %v1532, 0
    %1552 = vmatprep.subr.mxu0 0.0
    %1553 = vmatpush1.msra.mxu0 0.0
    %1554 = vmatprep.subr.mxu0 0.0
    %1555 = vmatpush1.msra.mxu0 0.0
    %1556 = vmatprep.subr.mxu0 0.0
    %1557 = vmatpush1.msra.mxu0 0.0
    %1558 = vmatprep.subr.mxu0 0.0
    %1559 = vmatpush1.msra.mxu0 0.0
    %1560 = vmatprep.subr.mxu0 0.0
    %1561 = vmatpush1.msra.mxu0 0.0
    %1562 = vmatprep.subr.mxu0 0.0
    %1563 = vmatpush1.msra.mxu0 0.0
    %1564 = vmatprep.subr.mxu0 0.0
    %1565 = vmatpush1.msra.mxu0 0.0
    %1566 = vmatprep.subr.mxu0 0.0
    %1567 = vmatpush1.msra.mxu0 0.0
    %1568 = vmatprep.subr.mxu0 0.0
    %1569 = vmatpush1.msra.mxu0 0.0
    %1570 = vmatprep.subr.mxu0 0.0
    %1571 = vmatpush1.msra.mxu0 0.0
    %1572 = vmatprep.subr.mxu0 0.0
    %1573 = vmatpush1.msra.mxu0 0.0
    %1574 = vmatprep.subr.mxu0 0.0
    %1575 = vmatpush1.msra.mxu0 0.0
    %1576 = vmatprep.subr.mxu0 0.0
    %1577 = vmatpush1.msra.mxu0 %v1536
    %1578 = vmatprep.subr.mxu0 0.0
    %1579 = vmatpush1.msra.mxu0 %v1535
    %1580 = vmatprep.subr.mxu0 0.0
    %1581 = vmatpush1.msra.mxu0 %v1534
    %1582 = vmatprep.subr.mxu0 0.0
    %1583 = vmatpush1.msra.mxu0 %v1533
    %1584 = vmatprep.subr.mxu0 0.0
    %1585 = vmatpush2.msra.mxu0 0.0
    %1586 = vmatprep.subr.mxu0 0.0
    %1587 = vmatpush2.msra.mxu0 0.0
    %1588 = vmatprep.subr.mxu0 0.0
    %1589 = vmatpush2.msra.mxu0 0.0
    %1590 = vmatprep.subr.mxu0 0.0
    %1591 = vmatpush2.msra.mxu0 0.0
    %1592 = vmatprep.subr.mxu0 0.0
    %1593 = vmatpush2.msra.mxu0 0.0
    %1594 = vmatprep.subr.mxu0 0.0
    %1595 = vmatpush2.msra.mxu0 0.0
    %1596 = vmatprep.subr.mxu0 0.0
    %1597 = vmatpush2.msra.mxu0 0.0
    %1598 = vmatprep.subr.mxu0 0.0
    %1599 = vmatpush2.msra.mxu0 0.0
    %1600 = vmatprep.subr.mxu0 0.0
    %1601 = vmatpush2.msra.mxu0 0.0
    %1602 = vmatprep.subr.mxu0 0.0
    %1603 = vmatpush2.msra.mxu0 0.0
    %1604 = vmatprep.subr.mxu0 0.0
    %1605 = vmatpush2.msra.mxu0 0.0
    %1606 = vmatprep.subr.mxu0 0.0
    %1607 = vmatpush2.msra.mxu0 0.0
    %1608 = vmatprep.subr.mxu0 0.0
    %1609 = vmatpush2.msra.mxu0 0.0
    %1610 = vmatprep.subr.mxu0 0.0
    %1611 = vmatpush2.msra.mxu0 0.0
    %1612 = vmatprep.subr.mxu0 0.0
    %1613 = vmatpush2.msra.mxu0 0.0
    %1614 = vmatprep.subr.mxu0 0.0
    %1615 = vmatpush2.msra.mxu0 0.0
    %1616 = vmatprep.mubr.f32.mxu0 0.0
    %1617 = vmatmul.mubr.f32.gmra.mxu0 %v1538
    %v1618 = vpop.f32.mrf.mxu0
    %v1619 = vadd.f32 0.0, %v1618
    %v1620 = vpop.f32.mrf.mxu0
    %1621 = vmatprep.mubr.f32.mxu0 0.0
    %1622 = vmatmul.mubr.f32.gmra.mxu0 %v1541
    %v1623 = vpop.f32.mrf.mxu0
    %v1624 = vadd.f32 0.0, %v1623
    %v1625 = vpop.f32.mrf.mxu0
    %1626 = vmatprep.mubr.f32.mxu0 0.0
    %1627 = vmatmul.mubr.f32.gmra.mxu0 %v1544
    %v1628 = vpop.f32.mrf.mxu0
    %v1629 = vadd.f32 0.0, %v1628
    %v1630 = vpop.f32.mrf.mxu0
    %1631 = vmatprep.mubr.f32.mxu0 0.0
    %1632 = vmatmul.mubr.f32.gmra.mxu0 %v1547
    %v1633 = vpop.f32.mrf.mxu0
    %v1634 = vadd.f32 0.0, %v1633
    %v1635 = vpop.f32.mrf.mxu0
    %1636 = vmatprep.mubr.f32.mxu0 0.0
    %1637 = vmatmul.mubr.f32.gmra.mxu0 %v1550
    %v1638 = vpop.f32.mrf.mxu0
    %v1639 = vadd.f32 0.0, %v1638
    %v1640 = vpop.f32.mrf.mxu0
    %1641 = vdwg.mxu0
    %v1642 = vadd.f32 %v1505, %v1619
    %v1643 = vadd.f32 %v1510, %v1624
    %v1644 = vadd.f32 %v1515, %v1629
    %v1645 = vadd.f32 %v1520, %v1634
    %v1646 = vadd.f32 %v1525, %v1639
    %v1647 = vld [vmem:[#allocation4 + $0x158] sm:$0x1]
    %v1648 = vlaneseq
    %v1649 = vshrl.u32 %v1648, 7
    %v1650 = vsub.s32 0, %v1649
    %v1651 = vrot.slane %v1647, %v1650
    %v1652 = vadd.f32 %v1642, %v1651
    %v1653 = vadd.f32 %v1643, %v1651
    %v1654 = vadd.f32 %v1644, %v1651
    %v1655 = vadd.f32 %v1645, %v1651
    %v1656 = vadd.f32 %v1646, %v1651
    %vm1657 = vcmp.ge.f32.partialorder %v1652, 0.0
    %vm1658 = vcmp.ge.f32.partialorder %v1653, 0.0
    %vm1659 = vcmp.ge.f32.partialorder %v1654, 0.0
    %vm1660 = vcmp.ge.f32.partialorder %v1655, 0.0
    %vm1661 = vcmp.ge.f32.partialorder %v1656, 0.0
    %v1662 = vmul.f32 %v1652, 0.01
    %v1663 = vmul.f32 %v1653, 0.01
    %v1664 = vmul.f32 %v1654, 0.01
    %v1665 = vmul.f32 %v1655, 0.01
    %v1666 = vmul.f32 %v1656, 0.01
    %v1667 = vsel %vm1657, %v1652, %v1662
    %v1668 = vsel %vm1658, %v1653, %v1663
    %v1669 = vsel %vm1659, %v1654, %v1664
    %v1670 = vsel %vm1660, %v1655, %v1665
    %v1671 = vsel %vm1661, %v1656, %v1666
    %v1672 = vld [vmem:[#allocation2 + $0x8] sm:$0xff]
    %v1673 = vld [vmem:[#allocation2 + $0x10] sm:$0xff]
    %v1674 = vld [vmem:[#allocation2 + $0x18] sm:$0xff]
    %v1675 = vld [vmem:[#allocation2 + $0x20] sm:$0xff]
    %v1676 = vld [vmem:[#allocation2 + $0x28] sm:$0xff]
    %v1677 = vadd.f32 %v1667, %v1672
    %v1678 = vadd.f32 %v1668, %v1673
    %v1679 = vadd.f32 %v1669, %v1674
    %v1680 = vadd.f32 %v1670, %v1675
    %v1681 = vadd.f32 %v1671, %v1676
    %1682 = vst.msk [vmem:[#allocation2 + $0x8] sm:$0xff] %vm26, %v1677
    %1683 = vst.msk [vmem:[#allocation2 + $0x10] sm:$0xff] %vm26, %v1678
    %1684 = vst.msk [vmem:[#allocation2 + $0x18] sm:$0xff] %vm26, %v1679
    %1685 = vst.msk [vmem:[#allocation2 + $0x20] sm:$0xff] %vm26, %v1680
    %1686 = vst.msk [vmem:[#allocation2 + $0x28] sm:$0xff] %vm26, %v1681
    %1687 = vst.msk [vmem:[#allocation2 + $0x18] sm:$0xff] %vm26, 0.0
    %v1688 = vld [vmem:[#allocation2] sm:$0xff]
    %v1689 = vld [vmem:[#allocation2 + $0x8] sm:$0xff]
    %v1690 = vld [vmem:[#allocation2 + $0x10] sm:$0xff]
    %v1691 = vld [vmem:[#allocation2 + $0x18] sm:$0xff]
    %v1692 = vld [vmem:[#allocation2 + $0x20] sm:$0xff]
    %v1693 = vld [vmem:[#allocation4 + $0x160] sm:$0xff]
    %v1694 = vld [vmem:[#allocation4 + $0x168] sm:$0xff]
    %v1695 = vld [vmem:[#allocation4 + $0x170] sm:$0xff]
    %v1696 = vld [vmem:[#allocation4 + $0x178] sm:$0xff]
    %v1697 = vld [vmem:[#allocation2 + $0x4] sm:$0xff]
    %v1698 = vld [vmem:[#allocation2 + $0xc] sm:$0xff]
    %v1699 = vld [vmem:[#allocation2 + $0x14] sm:$0xff]
    %v1700 = vld [vmem:[#allocation2 + $0x1c] sm:$0xff]
    %v1701 = vld [vmem:[#allocation2 + $0x24] sm:$0xff]
    %v1702 = vld [vmem:[#allocation4 + $0x180] sm:$0xff]
    %v1703 = vld [vmem:[#allocation4 + $0x188] sm:$0xff]
    %v1704 = vld [vmem:[#allocation4 + $0x190] sm:$0xff]
    %v1705 = vld [vmem:[#allocation4 + $0x198] sm:$0xff]
    %v1707 = vsel %vm26, %v1697, 0
    %v1710 = vsel %vm26, %v1698, 0
    %v1713 = vsel %vm26, %v1699, 0
    %v1716 = vsel %vm26, %v1700, 0
    %v1719 = vsel %vm26, %v1701, 0
    %1721 = vmatprep.subr.mxu0 0.0
    %1722 = vmatpush1.msra.mxu0 0.0
    %1723 = vmatprep.subr.mxu0 0.0
    %1724 = vmatpush1.msra.mxu0 0.0
    %1725 = vmatprep.subr.mxu0 0.0
    %1726 = vmatpush1.msra.mxu0 0.0
    %1727 = vmatprep.subr.mxu0 0.0
    %1728 = vmatpush1.msra.mxu0 0.0
    %1729 = vmatprep.subr.mxu0 0.0
    %1730 = vmatpush1.msra.mxu0 0.0
    %1731 = vmatprep.subr.mxu0 0.0
    %1732 = vmatpush1.msra.mxu0 0.0
    %1733 = vmatprep.subr.mxu0 0.0
    %1734 = vmatpush1.msra.mxu0 0.0
    %1735 = vmatprep.subr.mxu0 0.0
    %1736 = vmatpush1.msra.mxu0 0.0
    %1737 = vmatprep.subr.mxu0 0.0
    %1738 = vmatpush1.msra.mxu0 0.0
    %1739 = vmatprep.subr.mxu0 0.0
    %1740 = vmatpush1.msra.mxu0 0.0
    %1741 = vmatprep.subr.mxu0 0.0
    %1742 = vmatpush1.msra.mxu0 0.0
    %1743 = vmatprep.subr.mxu0 0.0
    %1744 = vmatpush1.msra.mxu0 0.0
    %1745 = vmatprep.subr.mxu0 0.0
    %1746 = vmatpush1.msra.mxu0 %v1705
    %1747 = vmatprep.subr.mxu0 0.0
    %1748 = vmatpush1.msra.mxu0 %v1704
    %1749 = vmatprep.subr.mxu0 0.0
    %1750 = vmatpush1.msra.mxu0 %v1703
    %1751 = vmatprep.subr.mxu0 0.0
    %1752 = vmatpush1.msra.mxu0 %v1702
    %1753 = vmatprep.subr.mxu0 0.0
    %1754 = vmatpush2.msra.mxu0 0.0
    %1755 = vmatprep.subr.mxu0 0.0
    %1756 = vmatpush2.msra.mxu0 0.0
    %1757 = vmatprep.subr.mxu0 0.0
    %1758 = vmatpush2.msra.mxu0 0.0
    %1759 = vmatprep.subr.mxu0 0.0
    %1760 = vmatpush2.msra.mxu0 0.0
    %1761 = vmatprep.subr.mxu0 0.0
    %1762 = vmatpush2.msra.mxu0 0.0
    %1763 = vmatprep.subr.mxu0 0.0
    %1764 = vmatpush2.msra.mxu0 0.0
    %1765 = vmatprep.subr.mxu0 0.0
    %1766 = vmatpush2.msra.mxu0 0.0
    %1767 = vmatprep.subr.mxu0 0.0
    %1768 = vmatpush2.msra.mxu0 0.0
    %1769 = vmatprep.subr.mxu0 0.0
    %1770 = vmatpush2.msra.mxu0 0.0
    %1771 = vmatprep.subr.mxu0 0.0
    %1772 = vmatpush2.msra.mxu0 0.0
    %1773 = vmatprep.subr.mxu0 0.0
    %1774 = vmatpush2.msra.mxu0 0.0
    %1775 = vmatprep.subr.mxu0 0.0
    %1776 = vmatpush2.msra.mxu0 0.0
    %1777 = vmatprep.subr.mxu0 0.0
    %1778 = vmatpush2.msra.mxu0 0.0
    %1779 = vmatprep.subr.mxu0 0.0
    %1780 = vmatpush2.msra.mxu0 0.0
    %1781 = vmatprep.subr.mxu0 0.0
    %1782 = vmatpush2.msra.mxu0 0.0
    %1783 = vmatprep.subr.mxu0 0.0
    %1784 = vmatpush2.msra.mxu0 0.0
    %1785 = vmatprep.mubr.f32.mxu0 0.0
    %1786 = vmatmul.mubr.f32.gmra.mxu0 %v1707
    %v1787 = vpop.f32.mrf.mxu0
    %v1788 = vadd.f32 0.0, %v1787
    %v1789 = vpop.f32.mrf.mxu0
    %1790 = vmatprep.mubr.f32.mxu0 0.0
    %1791 = vmatmul.mubr.f32.gmra.mxu0 %v1710
    %v1792 = vpop.f32.mrf.mxu0
    %v1793 = vadd.f32 0.0, %v1792
    %v1794 = vpop.f32.mrf.mxu0
    %1795 = vmatprep.mubr.f32.mxu0 0.0
    %1796 = vmatmul.mubr.f32.gmra.mxu0 %v1713
    %v1797 = vpop.f32.mrf.mxu0
    %v1798 = vadd.f32 0.0, %v1797
    %v1799 = vpop.f32.mrf.mxu0
    %1800 = vmatprep.mubr.f32.mxu0 0.0
    %1801 = vmatmul.mubr.f32.gmra.mxu0 %v1716
    %v1802 = vpop.f32.mrf.mxu0
    %v1803 = vadd.f32 0.0, %v1802
    %v1804 = vpop.f32.mrf.mxu0
    %1805 = vmatprep.mubr.f32.mxu0 0.0
    %1806 = vmatmul.mubr.f32.gmra.mxu0 %v1719
    %v1807 = vpop.f32.mrf.mxu0
    %v1808 = vadd.f32 0.0, %v1807
    %v1809 = vpop.f32.mrf.mxu0
    %1810 = vdwg.mxu0
    %v1812 = vsel %vm26, %v1688, 0
    %v1815 = vsel %vm26, %v1689, 0
    %v1818 = vsel %vm26, %v1690, 0
    %v1821 = vsel %vm26, %v1691, 0
    %v1824 = vsel %vm26, %v1692, 0
    %1826 = vmatprep.subr.mxu0 0.0
    %1827 = vmatpush1.msra.mxu0 0.0
    %1828 = vmatprep.subr.mxu0 0.0
    %1829 = vmatpush1.msra.mxu0 0.0
    %1830 = vmatprep.subr.mxu0 0.0
    %1831 = vmatpush1.msra.mxu0 0.0
    %1832 = vmatprep.subr.mxu0 0.0
    %1833 = vmatpush1.msra.mxu0 0.0
    %1834 = vmatprep.subr.mxu0 0.0
    %1835 = vmatpush1.msra.mxu0 0.0
    %1836 = vmatprep.subr.mxu0 0.0
    %1837 = vmatpush1.msra.mxu0 0.0
    %1838 = vmatprep.subr.mxu0 0.0
    %1839 = vmatpush1.msra.mxu0 0.0
    %1840 = vmatprep.subr.mxu0 0.0
    %1841 = vmatpush1.msra.mxu0 0.0
    %1842 = vmatprep.subr.mxu0 0.0
    %1843 = vmatpush1.msra.mxu0 0.0
    %1844 = vmatprep.subr.mxu0 0.0
    %1845 = vmatpush1.msra.mxu0 0.0
    %1846 = vmatprep.subr.mxu0 0.0
    %1847 = vmatpush1.msra.mxu0 0.0
    %1848 = vmatprep.subr.mxu0 0.0
    %1849 = vmatpush1.msra.mxu0 0.0
    %1850 = vmatprep.subr.mxu0 0.0
    %1851 = vmatpush1.msra.mxu0 %v1696
    %1852 = vmatprep.subr.mxu0 0.0
    %1853 = vmatpush1.msra.mxu0 %v1695
    %1854 = vmatprep.subr.mxu0 0.0
    %1855 = vmatpush1.msra.mxu0 %v1694
    %1856 = vmatprep.subr.mxu0 0.0
    %1857 = vmatpush1.msra.mxu0 %v1693
    %1858 = vmatprep.subr.mxu0 0.0
    %1859 = vmatpush2.msra.mxu0 0.0
    %1860 = vmatprep.subr.mxu0 0.0
    %1861 = vmatpush2.msra.mxu0 0.0
    %1862 = vmatprep.subr.mxu0 0.0
    %1863 = vmatpush2.msra.mxu0 0.0
    %1864 = vmatprep.subr.mxu0 0.0
    %1865 = vmatpush2.msra.mxu0 0.0
    %1866 = vmatprep.subr.mxu0 0.0
    %1867 = vmatpush2.msra.mxu0 0.0
    %1868 = vmatprep.subr.mxu0 0.0
    %1869 = vmatpush2.msra.mxu0 0.0
    %1870 = vmatprep.subr.mxu0 0.0
    %1871 = vmatpush2.msra.mxu0 0.0
    %1872 = vmatprep.subr.mxu0 0.0
    %1873 = vmatpush2.msra.mxu0 0.0
    %1874 = vmatprep.subr.mxu0 0.0
    %1875 = vmatpush2.msra.mxu0 0.0
    %1876 = vmatprep.subr.mxu0 0.0
    %1877 = vmatpush2.msra.mxu0 0.0
    %1878 = vmatprep.subr.mxu0 0.0
    %1879 = vmatpush2.msra.mxu0 0.0
    %1880 = vmatprep.subr.mxu0 0.0
    %1881 = vmatpush2.msra.mxu0 0.0
    %1882 = vmatprep.subr.mxu0 0.0
    %1883 = vmatpush2.msra.mxu0 0.0
    %1884 = vmatprep.subr.mxu0 0.0
    %1885 = vmatpush2.msra.mxu0 0.0
    %1886 = vmatprep.subr.mxu0 0.0
    %1887 = vmatpush2.msra.mxu0 0.0
    %1888 = vmatprep.subr.mxu0 0.0
    %1889 = vmatpush2.msra.mxu0 0.0
    %1890 = vmatprep.mubr.f32.mxu0 0.0
    %1891 = vmatmul.mubr.f32.gmra.mxu0 %v1812
    %v1892 = vpop.f32.mrf.mxu0
    %v1893 = vadd.f32 %v1788, %v1892
    %v1894 = vpop.f32.mrf.mxu0
    %1895 = vmatprep.mubr.f32.mxu0 0.0
    %1896 = vmatmul.mubr.f32.gmra.mxu0 %v1815
    %v1897 = vpop.f32.mrf.mxu0
    %v1898 = vadd.f32 %v1793, %v1897
    %v1899 = vpop.f32.mrf.mxu0
    %1900 = vmatprep.mubr.f32.mxu0 0.0
    %1901 = vmatmul.mubr.f32.gmra.mxu0 %v1818
    %v1902 = vpop.f32.mrf.mxu0
    %v1903 = vadd.f32 %v1798, %v1902
    %v1904 = vpop.f32.mrf.mxu0
    %1905 = vmatprep.mubr.f32.mxu0 0.0
    %1906 = vmatmul.mubr.f32.gmra.mxu0 %v1821
    %v1907 = vpop.f32.mrf.mxu0
    %v1908 = vadd.f32 %v1803, %v1907
    %v1909 = vpop.f32.mrf.mxu0
    %1910 = vmatprep.mubr.f32.mxu0 0.0
    %1911 = vmatmul.mubr.f32.gmra.mxu0 %v1824
    %v1912 = vpop.f32.mrf.mxu0
    %v1913 = vadd.f32 %v1808, %v1912
    %v1914 = vpop.f32.mrf.mxu0
    %1915 = vdwg.mxu0
    %v1916 = vld [vmem:[#allocation2 + $0x8] sm:$0xff]
    %v1917 = vld [vmem:[#allocation2 + $0x10] sm:$0xff]
    %v1918 = vld [vmem:[#allocation2 + $0x18] sm:$0xff]
    %v1919 = vld [vmem:[#allocation2 + $0x20] sm:$0xff]
    %v1920 = vld [vmem:[#allocation2 + $0x28] sm:$0xff]
    %v1921 = vld [vmem:[#allocation4 + $0x1a0] sm:$0xff]
    %v1922 = vld [vmem:[#allocation4 + $0x1a8] sm:$0xff]
    %v1923 = vld [vmem:[#allocation4 + $0x1b0] sm:$0xff]
    %v1924 = vld [vmem:[#allocation4 + $0x1b8] sm:$0xff]
    %v1926 = vsel %vm26, %v1916, 0
    %v1929 = vsel %vm26, %v1917, 0
    %v1932 = vsel %vm26, %v1918, 0
    %v1935 = vsel %vm26, %v1919, 0
    %v1938 = vsel %vm26, %v1920, 0
    %1940 = vmatprep.subr.mxu0 0.0
    %1941 = vmatpush1.msra.mxu0 0.0
    %1942 = vmatprep.subr.mxu0 0.0
    %1943 = vmatpush1.msra.mxu0 0.0
    %1944 = vmatprep.subr.mxu0 0.0
    %1945 = vmatpush1.msra.mxu0 0.0
    %1946 = vmatprep.subr.mxu0 0.0
    %1947 = vmatpush1.msra.mxu0 0.0
    %1948 = vmatprep.subr.mxu0 0.0
    %1949 = vmatpush1.msra.mxu0 0.0
    %1950 = vmatprep.subr.mxu0 0.0
    %1951 = vmatpush1.msra.mxu0 0.0
    %1952 = vmatprep.subr.mxu0 0.0
    %1953 = vmatpush1.msra.mxu0 0.0
    %1954 = vmatprep.subr.mxu0 0.0
    %1955 = vmatpush1.msra.mxu0 0.0
    %1956 = vmatprep.subr.mxu0 0.0
    %1957 = vmatpush1.msra.mxu0 0.0
    %1958 = vmatprep.subr.mxu0 0.0
    %1959 = vmatpush1.msra.mxu0 0.0
    %1960 = vmatprep.subr.mxu0 0.0
    %1961 = vmatpush1.msra.mxu0 0.0
    %1962 = vmatprep.subr.mxu0 0.0
    %1963 = vmatpush1.msra.mxu0 0.0
    %1964 = vmatprep.subr.mxu0 0.0
    %1965 = vmatpush1.msra.mxu0 %v1924
    %1966 = vmatprep.subr.mxu0 0.0
    %1967 = vmatpush1.msra.mxu0 %v1923
    %1968 = vmatprep.subr.mxu0 0.0
    %1969 = vmatpush1.msra.mxu0 %v1922
    %1970 = vmatprep.subr.mxu0 0.0
    %1971 = vmatpush1.msra.mxu0 %v1921
    %1972 = vmatprep.subr.mxu0 0.0
    %1973 = vmatpush2.msra.mxu0 0.0
    %1974 = vmatprep.subr.mxu0 0.0
    %1975 = vmatpush2.msra.mxu0 0.0
    %1976 = vmatprep.subr.mxu0 0.0
    %1977 = vmatpush2.msra.mxu0 0.0
    %1978 = vmatprep.subr.mxu0 0.0
    %1979 = vmatpush2.msra.mxu0 0.0
    %1980 = vmatprep.subr.mxu0 0.0
    %1981 = vmatpush2.msra.mxu0 0.0
    %1982 = vmatprep.subr.mxu0 0.0
    %1983 = vmatpush2.msra.mxu0 0.0
    %1984 = vmatprep.subr.mxu0 0.0
    %1985 = vmatpush2.msra.mxu0 0.0
    %1986 = vmatprep.subr.mxu0 0.0
    %1987 = vmatpush2.msra.mxu0 0.0
    %1988 = vmatprep.subr.mxu0 0.0
    %1989 = vmatpush2.msra.mxu0 0.0
    %1990 = vmatprep.subr.mxu0 0.0
    %1991 = vmatpush2.msra.mxu0 0.0
    %1992 = vmatprep.subr.mxu0 0.0
    %1993 = vmatpush2.msra.mxu0 0.0
    %1994 = vmatprep.subr.mxu0 0.0
    %1995 = vmatpush2.msra.mxu0 0.0
    %1996 = vmatprep.subr.mxu0 0.0
    %1997 = vmatpush2.msra.mxu0 0.0
    %1998 = vmatprep.subr.mxu0 0.0
    %1999 = vmatpush2.msra.mxu0 0.0
    %2000 = vmatprep.subr.mxu0 0.0
    %2001 = vmatpush2.msra.mxu0 0.0
    %2002 = vmatprep.subr.mxu0 0.0
    %2003 = vmatpush2.msra.mxu0 0.0
    %2004 = vmatprep.mubr.f32.mxu0 0.0
    %2005 = vmatmul.mubr.f32.gmra.mxu0 %v1926
    %v2006 = vpop.f32.mrf.mxu0
    %v2007 = vadd.f32 0.0, %v2006
    %v2008 = vpop.f32.mrf.mxu0
    %2009 = vmatprep.mubr.f32.mxu0 0.0
    %2010 = vmatmul.mubr.f32.gmra.mxu0 %v1929
    %v2011 = vpop.f32.mrf.mxu0
    %v2012 = vadd.f32 0.0, %v2011
    %v2013 = vpop.f32.mrf.mxu0
    %2014 = vmatprep.mubr.f32.mxu0 0.0
    %2015 = vmatmul.mubr.f32.gmra.mxu0 %v1932
    %v2016 = vpop.f32.mrf.mxu0
    %v2017 = vadd.f32 0.0, %v2016
    %v2018 = vpop.f32.mrf.mxu0
    %2019 = vmatprep.mubr.f32.mxu0 0.0
    %2020 = vmatmul.mubr.f32.gmra.mxu0 %v1935
    %v2021 = vpop.f32.mrf.mxu0
    %v2022 = vadd.f32 0.0, %v2021
    %v2023 = vpop.f32.mrf.mxu0
    %2024 = vmatprep.mubr.f32.mxu0 0.0
    %2025 = vmatmul.mubr.f32.gmra.mxu0 %v1938
    %v2026 = vpop.f32.mrf.mxu0
    %v2027 = vadd.f32 0.0, %v2026
    %v2028 = vpop.f32.mrf.mxu0
    %2029 = vdwg.mxu0
    %v2030 = vadd.f32 %v1893, %v2007
    %v2031 = vadd.f32 %v1898, %v2012
    %v2032 = vadd.f32 %v1903, %v2017
    %v2033 = vadd.f32 %v1908, %v2022
    %v2034 = vadd.f32 %v1913, %v2027
    %v2035 = vld [vmem:[#allocation4 + $0x1c0] sm:$0x1]
    %v2036 = vlaneseq
    %v2037 = vshrl.u32 %v2036, 7
    %v2038 = vsub.s32 0, %v2037
    %v2039 = vrot.slane %v2035, %v2038
    %v2040 = vadd.f32 %v2030, %v2039
    %v2041 = vadd.f32 %v2031, %v2039
    %v2042 = vadd.f32 %v2032, %v2039
    %v2043 = vadd.f32 %v2033, %v2039
    %v2044 = vadd.f32 %v2034, %v2039
    %vm2045 = vcmp.ge.f32.partialorder %v2040, 0.0
    %vm2046 = vcmp.ge.f32.partialorder %v2041, 0.0
    %vm2047 = vcmp.ge.f32.partialorder %v2042, 0.0
    %vm2048 = vcmp.ge.f32.partialorder %v2043, 0.0
    %vm2049 = vcmp.ge.f32.partialorder %v2044, 0.0
    %v2050 = vmul.f32 %v2040, 0.01
    %v2051 = vmul.f32 %v2041, 0.01
    %v2052 = vmul.f32 %v2042, 0.01
    %v2053 = vmul.f32 %v2043, 0.01
    %v2054 = vmul.f32 %v2044, 0.01
    %v2055 = vsel %vm2045, %v2040, %v2050
    %v2056 = vsel %vm2046, %v2041, %v2051
    %v2057 = vsel %vm2047, %v2042, %v2052
    %v2058 = vsel %vm2048, %v2043, %v2053
    %v2059 = vsel %vm2049, %v2044, %v2054
    %vm2060 = vcmask 130048
    %2061 = vst.msk [vmem:[#allocation3 + $0x8] sm:$0xff] %vm2060, %v2055
    %2062 = vst.msk [vmem:[#allocation3 + $0x10] sm:$0xff] %vm2060, %v2056
    %2063 = vst.msk [vmem:[#allocation3 + $0x18] sm:$0xff] %vm2060, %v2057
    %2064 = vst.msk [vmem:[#allocation3 + $0x20] sm:$0xff] %vm2060, %v2058
    %2065 = vst.msk [vmem:[#allocation3 + $0x28] sm:$0xff] %vm2060, %v2059
    %2066 = vst.msk [vmem:[#allocation3 + $0x18] sm:$0xff] %vm2060, 0.0
    %v2067 = vld [vmem:[#allocation3] sm:$0xff]
    %v2068 = vld [vmem:[#allocation3 + $0x8] sm:$0xff]
    %v2069 = vld [vmem:[#allocation3 + $0x10] sm:$0xff]
    %v2070 = vld [vmem:[#allocation3 + $0x18] sm:$0xff]
    %v2071 = vld [vmem:[#allocation3 + $0x20] sm:$0xff]
    %v2072 = vld [vmem:[#allocation4 + $0x1c8] sm:$0xff]
    %v2073 = vld [vmem:[#allocation4 + $0x1d0] sm:$0xff]
    %v2074 = vld [vmem:[#allocation3 + $0x4] sm:$0xff]
    %v2075 = vld [vmem:[#allocation3 + $0xc] sm:$0xff]
    %v2076 = vld [vmem:[#allocation3 + $0x14] sm:$0xff]
    %v2077 = vld [vmem:[#allocation3 + $0x1c] sm:$0xff]
    %v2078 = vld [vmem:[#allocation3 + $0x24] sm:$0xff]
    %v2079 = vld [vmem:[#allocation4 + $0x1d8] sm:$0xff]
    %v2080 = vld [vmem:[#allocation4 + $0x1e0] sm:$0xff]
    %v2082 = vsel %vm2060, %v2074, 0
    %v2085 = vsel %vm2060, %v2075, 0
    %v2088 = vsel %vm2060, %v2076, 0
    %v2091 = vsel %vm2060, %v2077, 0
    %v2094 = vsel %vm2060, %v2078, 0
    %2096 = vmatprep.subr.mxu0 0.0
    %2097 = vmatpush1.msra.mxu0 0.0
    %2098 = vmatprep.subr.mxu0 0.0
    %2099 = vmatpush1.msra.mxu0 0.0
    %2100 = vmatprep.subr.mxu0 0.0
    %2101 = vmatpush1.msra.mxu0 0.0
    %2102 = vmatprep.subr.mxu0 0.0
    %2103 = vmatpush1.msra.mxu0 0.0
    %2104 = vmatprep.subr.mxu0 0.0
    %2105 = vmatpush1.msra.mxu0 0.0
    %2106 = vmatprep.subr.mxu0 0.0
    %2107 = vmatpush1.msra.mxu0 0.0
    %2108 = vmatprep.subr.mxu0 0.0
    %2109 = vmatpush1.msra.mxu0 0.0
    %2110 = vmatprep.subr.mxu0 0.0
    %2111 = vmatpush1.msra.mxu0 0.0
    %2112 = vmatprep.subr.mxu0 0.0
    %2113 = vmatpush1.msra.mxu0 0.0
    %2114 = vmatprep.subr.mxu0 0.0
    %2115 = vmatpush1.msra.mxu0 0.0
    %2116 = vmatprep.subr.mxu0 0.0
    %2117 = vmatpush1.msra.mxu0 0.0
    %2118 = vmatprep.subr.mxu0 0.0
    %2119 = vmatpush1.msra.mxu0 0.0
    %2120 = vmatprep.subr.mxu0 0.0
    %2121 = vmatpush1.msra.mxu0 0.0
    %2122 = vmatprep.subr.mxu0 0.0
    %2123 = vmatpush1.msra.mxu0 0.0
    %2124 = vmatprep.subr.mxu0 0.0
    %2125 = vmatpush1.msra.mxu0 %v2080
    %2126 = vmatprep.subr.mxu0 0.0
    %2127 = vmatpush1.msra.mxu0 %v2079
    %2128 = vmatprep.subr.mxu0 0.0
    %2129 = vmatpush2.msra.mxu0 0.0
    %2130 = vmatprep.subr.mxu0 0.0
    %2131 = vmatpush2.msra.mxu0 0.0
    %2132 = vmatprep.subr.mxu0 0.0
    %2133 = vmatpush2.msra.mxu0 0.0
    %2134 = vmatprep.subr.mxu0 0.0
    %2135 = vmatpush2.msra.mxu0 0.0
    %2136 = vmatprep.subr.mxu0 0.0
    %2137 = vmatpush2.msra.mxu0 0.0
    %2138 = vmatprep.subr.mxu0 0.0
    %2139 = vmatpush2.msra.mxu0 0.0
    %2140 = vmatprep.subr.mxu0 0.0
    %2141 = vmatpush2.msra.mxu0 0.0
    %2142 = vmatprep.subr.mxu0 0.0
    %2143 = vmatpush2.msra.mxu0 0.0
    %2144 = vmatprep.subr.mxu0 0.0
    %2145 = vmatpush2.msra.mxu0 0.0
    %2146 = vmatprep.subr.mxu0 0.0
    %2147 = vmatpush2.msra.mxu0 0.0
    %2148 = vmatprep.subr.mxu0 0.0
    %2149 = vmatpush2.msra.mxu0 0.0
    %2150 = vmatprep.subr.mxu0 0.0
    %2151 = vmatpush2.msra.mxu0 0.0
    %2152 = vmatprep.subr.mxu0 0.0
    %2153 = vmatpush2.msra.mxu0 0.0
    %2154 = vmatprep.subr.mxu0 0.0
    %2155 = vmatpush2.msra.mxu0 0.0
    %2156 = vmatprep.subr.mxu0 0.0
    %2157 = vmatpush2.msra.mxu0 0.0
    %2158 = vmatprep.subr.mxu0 0.0
    %2159 = vmatpush2.msra.mxu0 0.0
    %2160 = vmatprep.mubr.f32.mxu0 0.0
    %2161 = vmatmul.mubr.f32.gmra.mxu0 %v2082
    %v2162 = vpop.f32.mrf.mxu0
    %v2163 = vadd.f32 0.0, %v2162
    %v2164 = vpop.f32.mrf.mxu0
    %2165 = vmatprep.mubr.f32.mxu0 0.0
    %2166 = vmatmul.mubr.f32.gmra.mxu0 %v2085
    %v2167 = vpop.f32.mrf.mxu0
    %v2168 = vadd.f32 0.0, %v2167
    %v2169 = vpop.f32.mrf.mxu0
    %2170 = vmatprep.mubr.f32.mxu0 0.0
    %2171 = vmatmul.mubr.f32.gmra.mxu0 %v2088
    %v2172 = vpop.f32.mrf.mxu0
    %v2173 = vadd.f32 0.0, %v2172
    %v2174 = vpop.f32.mrf.mxu0
    %2175 = vmatprep.mubr.f32.mxu0 0.0
    %2176 = vmatmul.mubr.f32.gmra.mxu0 %v2091
    %v2177 = vpop.f32.mrf.mxu0
    %v2178 = vadd.f32 0.0, %v2177
    %v2179 = vpop.f32.mrf.mxu0
    %2180 = vmatprep.mubr.f32.mxu0 0.0
    %2181 = vmatmul.mubr.f32.gmra.mxu0 %v2094
    %v2182 = vpop.f32.mrf.mxu0
    %v2183 = vadd.f32 0.0, %v2182
    %v2184 = vpop.f32.mrf.mxu0
    %2185 = vdwg.mxu0
    %v2187 = vsel %vm2060, %v2067, 0
    %v2190 = vsel %vm2060, %v2068, 0
    %v2193 = vsel %vm2060, %v2069, 0
    %v2196 = vsel %vm2060, %v2070, 0
    %v2199 = vsel %vm2060, %v2071, 0
    %2201 = vmatprep.subr.mxu0 0.0
    %2202 = vmatpush1.msra.mxu0 0.0
    %2203 = vmatprep.subr.mxu0 0.0
    %2204 = vmatpush1.msra.mxu0 0.0
    %2205 = vmatprep.subr.mxu0 0.0
    %2206 = vmatpush1.msra.mxu0 0.0
    %2207 = vmatprep.subr.mxu0 0.0
    %2208 = vmatpush1.msra.mxu0 0.0
    %2209 = vmatprep.subr.mxu0 0.0
    %2210 = vmatpush1.msra.mxu0 0.0
    %2211 = vmatprep.subr.mxu0 0.0
    %2212 = vmatpush1.msra.mxu0 0.0
    %2213 = vmatprep.subr.mxu0 0.0
    %2214 = vmatpush1.msra.mxu0 0.0
    %2215 = vmatprep.subr.mxu0 0.0
    %2216 = vmatpush1.msra.mxu0 0.0
    %2217 = vmatprep.subr.mxu0 0.0
    %2218 = vmatpush1.msra.mxu0 0.0
    %2219 = vmatprep.subr.mxu0 0.0
    %2220 = vmatpush1.msra.mxu0 0.0
    %2221 = vmatprep.subr.mxu0 0.0
    %2222 = vmatpush1.msra.mxu0 0.0
    %2223 = vmatprep.subr.mxu0 0.0
    %2224 = vmatpush1.msra.mxu0 0.0
    %2225 = vmatprep.subr.mxu0 0.0
    %2226 = vmatpush1.msra.mxu0 0.0
    %2227 = vmatprep.subr.mxu0 0.0
    %2228 = vmatpush1.msra.mxu0 0.0
    %2229 = vmatprep.subr.mxu0 0.0
    %2230 = vmatpush1.msra.mxu0 %v2073
    %2231 = vmatprep.subr.mxu0 0.0
    %2232 = vmatpush1.msra.mxu0 %v2072
    %2233 = vmatprep.subr.mxu0 0.0
    %2234 = vmatpush2.msra.mxu0 0.0
    %2235 = vmatprep.subr.mxu0 0.0
    %2236 = vmatpush2.msra.mxu0 0.0
    %2237 = vmatprep.subr.mxu0 0.0
    %2238 = vmatpush2.msra.mxu0 0.0
    %2239 = vmatprep.subr.mxu0 0.0
    %2240 = vmatpush2.msra.mxu0 0.0
    %2241 = vmatprep.subr.mxu0 0.0
    %2242 = vmatpush2.msra.mxu0 0.0
    %2243 = vmatprep.subr.mxu0 0.0
    %2244 = vmatpush2.msra.mxu0 0.0
    %2245 = vmatprep.subr.mxu0 0.0
    %2246 = vmatpush2.msra.mxu0 0.0
    %2247 = vmatprep.subr.mxu0 0.0
    %2248 = vmatpush2.msra.mxu0 0.0
    %2249 = vmatprep.subr.mxu0 0.0
    %2250 = vmatpush2.msra.mxu0 0.0
    %2251 = vmatprep.subr.mxu0 0.0
    %2252 = vmatpush2.msra.mxu0 0.0
    %2253 = vmatprep.subr.mxu0 0.0
    %2254 = vmatpush2.msra.mxu0 0.0
    %2255 = vmatprep.subr.mxu0 0.0
    %2256 = vmatpush2.msra.mxu0 0.0
    %2257 = vmatprep.subr.mxu0 0.0
    %2258 = vmatpush2.msra.mxu0 0.0
    %2259 = vmatprep.subr.mxu0 0.0
    %2260 = vmatpush2.msra.mxu0 0.0
    %2261 = vmatprep.subr.mxu0 0.0
    %2262 = vmatpush2.msra.mxu0 0.0
    %2263 = vmatprep.subr.mxu0 0.0
    %2264 = vmatpush2.msra.mxu0 0.0
    %2265 = vmatprep.mubr.f32.mxu0 0.0
    %2266 = vmatmul.mubr.f32.gmra.mxu0 %v2187
    %v2267 = vpop.f32.mrf.mxu0
    %v2268 = vadd.f32 %v2163, %v2267
    %v2269 = vpop.f32.mrf.mxu0
    %2270 = vmatprep.mubr.f32.mxu0 0.0
    %2271 = vmatmul.mubr.f32.gmra.mxu0 %v2190
    %v2272 = vpop.f32.mrf.mxu0
    %v2273 = vadd.f32 %v2168, %v2272
    %v2274 = vpop.f32.mrf.mxu0
    %2275 = vmatprep.mubr.f32.mxu0 0.0
    %2276 = vmatmul.mubr.f32.gmra.mxu0 %v2193
    %v2277 = vpop.f32.mrf.mxu0
    %v2278 = vadd.f32 %v2173, %v2277
    %v2279 = vpop.f32.mrf.mxu0
    %2280 = vmatprep.mubr.f32.mxu0 0.0
    %2281 = vmatmul.mubr.f32.gmra.mxu0 %v2196
    %v2282 = vpop.f32.mrf.mxu0
    %v2283 = vadd.f32 %v2178, %v2282
    %v2284 = vpop.f32.mrf.mxu0
    %2285 = vmatprep.mubr.f32.mxu0 0.0
    %2286 = vmatmul.mubr.f32.gmra.mxu0 %v2199
    %v2287 = vpop.f32.mrf.mxu0
    %v2288 = vadd.f32 %v2183, %v2287
    %v2289 = vpop.f32.mrf.mxu0
    %2290 = vdwg.mxu0
    %v2291 = vld [vmem:[#allocation3 + $0x8] sm:$0xff]
    %v2292 = vld [vmem:[#allocation3 + $0x10] sm:$0xff]
    %v2293 = vld [vmem:[#allocation3 + $0x18] sm:$0xff]
    %v2294 = vld [vmem:[#allocation3 + $0x20] sm:$0xff]
    %v2295 = vld [vmem:[#allocation3 + $0x28] sm:$0xff]
    %v2296 = vld [vmem:[#allocation4 + $0x1e8] sm:$0xff]
    %v2297 = vld [vmem:[#allocation4 + $0x1f0] sm:$0xff]
    %v2299 = vsel %vm2060, %v2291, 0
    %v2302 = vsel %vm2060, %v2292, 0
    %v2305 = vsel %vm2060, %v2293, 0
    %v2308 = vsel %vm2060, %v2294, 0
    %v2311 = vsel %vm2060, %v2295, 0
    %2313 = vmatprep.subr.mxu0 0.0
    %2314 = vmatpush1.msra.mxu0 0.0
    %2315 = vmatprep.subr.mxu0 0.0
    %2316 = vmatpush1.msra.mxu0 0.0
    %2317 = vmatprep.subr.mxu0 0.0
    %2318 = vmatpush1.msra.mxu0 0.0
    %2319 = vmatprep.subr.mxu0 0.0
    %2320 = vmatpush1.msra.mxu0 0.0
    %2321 = vmatprep.subr.mxu0 0.0
    %2322 = vmatpush1.msra.mxu0 0.0
    %2323 = vmatprep.subr.mxu0 0.0
    %2324 = vmatpush1.msra.mxu0 0.0
    %2325 = vmatprep.subr.mxu0 0.0
    %2326 = vmatpush1.msra.mxu0 0.0
    %2327 = vmatprep.subr.mxu0 0.0
    %2328 = vmatpush1.msra.mxu0 0.0
    %2329 = vmatprep.subr.mxu0 0.0
    %2330 = vmatpush1.msra.mxu0 0.0
    %2331 = vmatprep.subr.mxu0 0.0
    %2332 = vmatpush1.msra.mxu0 0.0
    %2333 = vmatprep.subr.mxu0 0.0
    %2334 = vmatpush1.msra.mxu0 0.0
    %2335 = vmatprep.subr.mxu0 0.0
    %2336 = vmatpush1.msra.mxu0 0.0
    %2337 = vmatprep.subr.mxu0 0.0
    %2338 = vmatpush1.msra.mxu0 0.0
    %2339 = vmatprep.subr.mxu0 0.0
    %2340 = vmatpush1.msra.mxu0 0.0
    %2341 = vmatprep.subr.mxu0 0.0
    %2342 = vmatpush1.msra.mxu0 %v2297
    %2343 = vmatprep.subr.mxu0 0.0
    %2344 = vmatpush1.msra.mxu0 %v2296
    %2345 = vmatprep.subr.mxu0 0.0
    %2346 = vmatpush2.msra.mxu0 0.0
    %2347 = vmatprep.subr.mxu0 0.0
    %2348 = vmatpush2.msra.mxu0 0.0
    %2349 = vmatprep.subr.mxu0 0.0
    %2350 = vmatpush2.msra.mxu0 0.0
    %2351 = vmatprep.subr.mxu0 0.0
    %2352 = vmatpush2.msra.mxu0 0.0
    %2353 = vmatprep.subr.mxu0 0.0
    %2354 = vmatpush2.msra.mxu0 0.0
    %2355 = vmatprep.subr.mxu0 0.0
    %2356 = vmatpush2.msra.mxu0 0.0
    %2357 = vmatprep.subr.mxu0 0.0
    %2358 = vmatpush2.msra.mxu0 0.0
    %2359 = vmatprep.subr.mxu0 0.0
    %2360 = vmatpush2.msra.mxu0 0.0
    %2361 = vmatprep.subr.mxu0 0.0
    %2362 = vmatpush2.msra.mxu0 0.0
    %2363 = vmatprep.subr.mxu0 0.0
    %2364 = vmatpush2.msra.mxu0 0.0
    %2365 = vmatprep.subr.mxu0 0.0
    %2366 = vmatpush2.msra.mxu0 0.0
    %2367 = vmatprep.subr.mxu0 0.0
    %2368 = vmatpush2.msra.mxu0 0.0
    %2369 = vmatprep.subr.mxu0 0.0
    %2370 = vmatpush2.msra.mxu0 0.0
    %2371 = vmatprep.subr.mxu0 0.0
    %2372 = vmatpush2.msra.mxu0 0.0
    %2373 = vmatprep.subr.mxu0 0.0
    %2374 = vmatpush2.msra.mxu0 0.0
    %2375 = vmatprep.subr.mxu0 0.0
    %2376 = vmatpush2.msra.mxu0 0.0
    %2377 = vmatprep.mubr.f32.mxu0 0.0
    %2378 = vmatmul.mubr.f32.gmra.mxu0 %v2299
    %v2379 = vpop.f32.mrf.mxu0
    %v2380 = vadd.f32 0.0, %v2379
    %v2381 = vpop.f32.mrf.mxu0
    %2382 = vmatprep.mubr.f32.mxu0 0.0
    %2383 = vmatmul.mubr.f32.gmra.mxu0 %v2302
    %v2384 = vpop.f32.mrf.mxu0
    %v2385 = vadd.f32 0.0, %v2384
    %v2386 = vpop.f32.mrf.mxu0
    %2387 = vmatprep.mubr.f32.mxu0 0.0
    %2388 = vmatmul.mubr.f32.gmra.mxu0 %v2305
    %v2389 = vpop.f32.mrf.mxu0
    %v2390 = vadd.f32 0.0, %v2389
    %v2391 = vpop.f32.mrf.mxu0
    %2392 = vmatprep.mubr.f32.mxu0 0.0
    %2393 = vmatmul.mubr.f32.gmra.mxu0 %v2308
    %v2394 = vpop.f32.mrf.mxu0
    %v2395 = vadd.f32 0.0, %v2394
    %v2396 = vpop.f32.mrf.mxu0
    %2397 = vmatprep.mubr.f32.mxu0 0.0
    %2398 = vmatmul.mubr.f32.gmra.mxu0 %v2311
    %v2399 = vpop.f32.mrf.mxu0
    %v2400 = vadd.f32 0.0, %v2399
    %v2401 = vpop.f32.mrf.mxu0
    %2402 = vdwg.mxu0
    %v2403 = vadd.f32 %v2268, %v2380
    %v2404 = vadd.f32 %v2273, %v2385
    %v2405 = vadd.f32 %v2278, %v2390
    %v2406 = vadd.f32 %v2283, %v2395
    %v2407 = vadd.f32 %v2288, %v2400
    %v2408 = vld [vmem:[#allocation4 + $0x1f8] sm:$0x1]
    %v2409 = vlaneseq
    %v2410 = vshrl.u32 %v2409, 7
    %v2411 = vsub.s32 0, %v2410
    %v2412 = vrot.slane %v2408, %v2411
    %v2413 = vadd.f32 %v2403, %v2412
    %v2414 = vadd.f32 %v2404, %v2412
    %v2415 = vadd.f32 %v2405, %v2412
    %v2416 = vadd.f32 %v2406, %v2412
    %v2417 = vadd.f32 %v2407, %v2412
    %vm2418 = vcmp.ge.f32.partialorder %v2413, 0.0
    %vm2419 = vcmp.ge.f32.partialorder %v2414, 0.0
    %vm2420 = vcmp.ge.f32.partialorder %v2415, 0.0
    %vm2421 = vcmp.ge.f32.partialorder %v2416, 0.0
    %vm2422 = vcmp.ge.f32.partialorder %v2417, 0.0
    %v2423 = vmul.f32 %v2413, 0.01
    %v2424 = vmul.f32 %v2414, 0.01
    %v2425 = vmul.f32 %v2415, 0.01
    %v2426 = vmul.f32 %v2416, 0.01
    %v2427 = vmul.f32 %v2417, 0.01
    %v2428 = vsel %vm2418, %v2413, %v2423
    %v2429 = vsel %vm2419, %v2414, %v2424
    %v2430 = vsel %vm2420, %v2415, %v2425
    %v2431 = vsel %vm2421, %v2416, %v2426
    %v2432 = vsel %vm2422, %v2417, %v2427
    %v2433 = vld [vmem:[#allocation2 + $0x8] sm:$0xff]
    %v2434 = vld [vmem:[#allocation2 + $0x10] sm:$0xff]
    %v2435 = vld [vmem:[#allocation2 + $0x18] sm:$0xff]
    %v2436 = vld [vmem:[#allocation2 + $0x20] sm:$0xff]
    %v2437 = vld [vmem:[#allocation2 + $0x28] sm:$0xff]
    %v2438 = vld [vmem:[#allocation4 + $0x200] sm:$0xff]
    %v2439 = vld [vmem:[#allocation4 + $0x208] sm:$0xff]
    %v2440 = vld [vmem:[#allocation4 + $0x210] sm:$0xff]
    %v2441 = vld [vmem:[#allocation4 + $0x218] sm:$0xff]
    %v2442 = vld [vmem:[#allocation4 + $0x220] sm:$0x1]
    %v2443 = vlaneseq
    %v2444 = vshrl.u32 %v2443, 7
    %v2445 = vsub.s32 0, %v2444
    %v2446 = vrot.slane %v2442, %v2445
    %v2448 = vsel %vm26, %v2433, 0
    %v2451 = vsel %vm26, %v2434, 0
    %v2454 = vsel %vm26, %v2435, 0
    %v2457 = vsel %vm26, %v2436, 0
    %v2460 = vsel %vm26, %v2437, 0
    %2462 = vmatprep.subr.mxu0 0.0
    %2463 = vmatpush1.msra.mxu0 0.0
    %2464 = vmatprep.subr.mxu0 0.0
    %2465 = vmatpush1.msra.mxu0 0.0
    %2466 = vmatprep.subr.mxu0 0.0
    %2467 = vmatpush1.msra.mxu0 0.0
    %2468 = vmatprep.subr.mxu0 0.0
    %2469 = vmatpush1.msra.mxu0 0.0
    %2470 = vmatprep.subr.mxu0 0.0
    %2471 = vmatpush1.msra.mxu0 0.0
    %2472 = vmatprep.subr.mxu0 0.0
    %2473 = vmatpush1.msra.mxu0 0.0
    %2474 = vmatprep.subr.mxu0 0.0
    %2475 = vmatpush1.msra.mxu0 0.0
    %2476 = vmatprep.subr.mxu0 0.0
    %2477 = vmatpush1.msra.mxu0 0.0
    %2478 = vmatprep.subr.mxu0 0.0
    %2479 = vmatpush1.msra.mxu0 0.0
    %2480 = vmatprep.subr.mxu0 0.0
    %2481 = vmatpush1.msra.mxu0 0.0
    %2482 = vmatprep.subr.mxu0 0.0
    %2483 = vmatpush1.msra.mxu0 0.0
    %2484 = vmatprep.subr.mxu0 0.0
    %2485 = vmatpush1.msra.mxu0 0.0
    %2486 = vmatprep.subr.mxu0 0.0
    %2487 = vmatpush1.msra.mxu0 %v2441
    %2488 = vmatprep.subr.mxu0 0.0
    %2489 = vmatpush1.msra.mxu0 %v2440
    %2490 = vmatprep.subr.mxu0 0.0
    %2491 = vmatpush1.msra.mxu0 %v2439
    %2492 = vmatprep.subr.mxu0 0.0
    %2493 = vmatpush1.msra.mxu0 %v2438
    %2494 = vmatprep.subr.mxu0 0.0
    %2495 = vmatpush2.msra.mxu0 0.0
    %2496 = vmatprep.subr.mxu0 0.0
    %2497 = vmatpush2.msra.mxu0 0.0
    %2498 = vmatprep.subr.mxu0 0.0
    %2499 = vmatpush2.msra.mxu0 0.0
    %2500 = vmatprep.subr.mxu0 0.0
    %2501 = vmatpush2.msra.mxu0 0.0
    %2502 = vmatprep.subr.mxu0 0.0
    %2503 = vmatpush2.msra.mxu0 0.0
    %2504 = vmatprep.subr.mxu0 0.0
    %2505 = vmatpush2.msra.mxu0 0.0
    %2506 = vmatprep.subr.mxu0 0.0
    %2507 = vmatpush2.msra.mxu0 0.0
    %2508 = vmatprep.subr.mxu0 0.0
    %2509 = vmatpush2.msra.mxu0 0.0
    %2510 = vmatprep.subr.mxu0 0.0
    %2511 = vmatpush2.msra.mxu0 0.0
    %2512 = vmatprep.subr.mxu0 0.0
    %2513 = vmatpush2.msra.mxu0 0.0
    %2514 = vmatprep.subr.mxu0 0.0
    %2515 = vmatpush2.msra.mxu0 0.0
    %2516 = vmatprep.subr.mxu0 0.0
    %2517 = vmatpush2.msra.mxu0 0.0
    %2518 = vmatprep.subr.mxu0 0.0
    %2519 = vmatpush2.msra.mxu0 0.0
    %2520 = vmatprep.subr.mxu0 0.0
    %2521 = vmatpush2.msra.mxu0 0.0
    %2522 = vmatprep.subr.mxu0 0.0
    %2523 = vmatpush2.msra.mxu0 0.0
    %2524 = vmatprep.subr.mxu0 0.0
    %2525 = vmatpush2.msra.mxu0 0.0
    %2526 = vmatprep.mubr.f32.mxu0 0.0
    %2527 = vmatmul.mubr.f32.gmra.mxu0 %v2448
    %v2528 = vpop.f32.mrf.mxu0
    %v2529 = vadd.f32 %v2446, %v2528
    %v2530 = vpop.f32.mrf.mxu0
    %2531 = vmatprep.mubr.f32.mxu0 0.0
    %2532 = vmatmul.mubr.f32.gmra.mxu0 %v2451
    %v2533 = vpop.f32.mrf.mxu0
    %v2534 = vadd.f32 %v2446, %v2533
    %v2535 = vpop.f32.mrf.mxu0
    %2536 = vmatprep.mubr.f32.mxu0 0.0
    %2537 = vmatmul.mubr.f32.gmra.mxu0 %v2454
    %v2538 = vpop.f32.mrf.mxu0
    %v2539 = vadd.f32 %v2446, %v2538
    %v2540 = vpop.f32.mrf.mxu0
    %2541 = vmatprep.mubr.f32.mxu0 0.0
    %2542 = vmatmul.mubr.f32.gmra.mxu0 %v2457
    %v2543 = vpop.f32.mrf.mxu0
    %v2544 = vadd.f32 %v2446, %v2543
    %v2545 = vpop.f32.mrf.mxu0
    %2546 = vmatprep.mubr.f32.mxu0 0.0
    %2547 = vmatmul.mubr.f32.gmra.mxu0 %v2460
    %v2548 = vpop.f32.mrf.mxu0
    %v2549 = vadd.f32 %v2446, %v2548
    %v2550 = vpop.f32.mrf.mxu0
    %2551 = vdwg.mxu0
    %v2552 = vadd.f32 %v2428, %v2529
    %v2553 = vadd.f32 %v2429, %v2534
    %v2554 = vadd.f32 %v2430, %v2539
    %v2555 = vadd.f32 %v2431, %v2544
    %v2556 = vadd.f32 %v2432, %v2549
    %2557 = vst.msk [vmem:[#allocation2 + $0x8] sm:$0xff] %vm2060, %v2552
    %2558 = vst.msk [vmem:[#allocation2 + $0x10] sm:$0xff] %vm2060, %v2553
    %2559 = vst.msk [vmem:[#allocation2 + $0x18] sm:$0xff] %vm2060, %v2554
    %2560 = vst.msk [vmem:[#allocation2 + $0x20] sm:$0xff] %vm2060, %v2555
    %2561 = vst.msk [vmem:[#allocation2 + $0x28] sm:$0xff] %vm2060, %v2556
    %2562 = vst.msk [vmem:[#allocation2 + $0x18] sm:$0xff] %vm2060, 0.0
    %v2563 = vld [vmem:[#allocation2 + $0x8] sm:$0xff]
    %v2564 = vld [vmem:[#allocation2 + $0x10] sm:$0xff]
    %v2565 = vsel %vm2060, %v2563, -inf
    %v2566 = vsel %vm2060, %v2564, -inf
    %v2567 = vmax.f32 %v2565, %v2566
    %v2568 = vrot.slane %v2567, 4
    %v2569 = vmax.f32 %v2567, %v2568
    %v2570 = vrot.slane %v2569, 2
    %v2571 = vmax.f32 %v2569, %v2570
    %v2572 = vrot.slane %v2571, 1
    %v2573 = vmax.f32 %v2571, %v2572
    %vm2574 = vcmask 122880
    %2575 = vst.msk [vmem:[#allocation3] sm:$0x1] %vm2574, %v2573
    %v2576 = vld [vmem:[#allocation2 + $0x20] sm:$0xff]
    %v2577 = vld [vmem:[#allocation2 + $0x28] sm:$0xff]
    %v2578 = vsel %vm2060, %v2576, -inf
    %v2579 = vsel %vm2060, %v2577, -inf
    %v2580 = vmax.f32 %v2578, %v2579
    %v2581 = vrot.slane %v2580, 4
    %v2582 = vmax.f32 %v2580, %v2581
    %v2583 = vrot.slane %v2582, 2
    %v2584 = vmax.f32 %v2582, %v2583
    %v2585 = vrot.slane %v2584, 1
    %v2586 = vmax.f32 %v2584, %v2585
    %2587 = vst.msk [vmem:[#allocation3 + $0x1] sm:$0x1] %vm2574, %v2586
    %v2588 = vld [vmem:[#allocation3] sm:$0x3]
    %v2589 = vld [vmem:[#allocation4 + $0x228] sm:$0xff]
    %v2590 = vld [vmem:[#allocation4 + $0x230] sm:$0xff]
    %v2591 = vld [vmem:[#allocation4 + $0x238] sm:$0x1]
    %v2592 = vlaneseq
    %v2593 = vshrl.u32 %v2592, 7
    %v2594 = vsub.s32 0, %v2593
    %v2595 = vrot.slane %v2591, %v2594
    %v2597 = vsel %vm2060, %v2588, 0
    %2599 = vmatprep.subr.mxu0 0.0
    %2600 = vmatpush1.msra.mxu0 0.0
    %2601 = vmatprep.subr.mxu0 0.0
    %2602 = vmatpush1.msra.mxu0 0.0
    %2603 = vmatprep.subr.mxu0 0.0
    %2604 = vmatpush1.msra.mxu0 0.0
    %2605 = vmatprep.subr.mxu0 0.0
    %2606 = vmatpush1.msra.mxu0 0.0
    %2607 = vmatprep.subr.mxu0 0.0
    %2608 = vmatpush1.msra.mxu0 0.0
    %2609 = vmatprep.subr.mxu0 0.0
    %2610 = vmatpush1.msra.mxu0 0.0
    %2611 = vmatprep.subr.mxu0 0.0
    %2612 = vmatpush1.msra.mxu0 0.0
    %2613 = vmatprep.subr.mxu0 0.0
    %2614 = vmatpush1.msra.mxu0 0.0
    %2615 = vmatprep.subr.mxu0 0.0
    %2616 = vmatpush1.msra.mxu0 0.0
    %2617 = vmatprep.subr.mxu0 0.0
    %2618 = vmatpush1.msra.mxu0 0.0
    %2619 = vmatprep.subr.mxu0 0.0
    %2620 = vmatpush1.msra.mxu0 0.0
    %2621 = vmatprep.subr.mxu0 0.0
    %2622 = vmatpush1.msra.mxu0 0.0
    %2623 = vmatprep.subr.mxu0 0.0
    %2624 = vmatpush1.msra.mxu0 0.0
    %2625 = vmatprep.subr.mxu0 0.0
    %2626 = vmatpush1.msra.mxu0 0.0
    %2627 = vmatprep.subr.mxu0 0.0
    %2628 = vmatpush1.msra.mxu0 %v2590
    %2629 = vmatprep.subr.mxu0 0.0
    %2630 = vmatpush1.msra.mxu0 %v2589
    %2631 = vmatprep.subr.mxu0 0.0
    %2632 = vmatpush2.msra.mxu0 0.0
    %2633 = vmatprep.subr.mxu0 0.0
    %2634 = vmatpush2.msra.mxu0 0.0
    %2635 = vmatprep.subr.mxu0 0.0
    %2636 = vmatpush2.msra.mxu0 0.0
    %2637 = vmatprep.subr.mxu0 0.0
    %2638 = vmatpush2.msra.mxu0 0.0
    %2639 = vmatprep.subr.mxu0 0.0
    %2640 = vmatpush2.msra.mxu0 0.0
    %2641 = vmatprep.subr.mxu0 0.0
    %2642 = vmatpush2.msra.mxu0 0.0
    %2643 = vmatprep.subr.mxu0 0.0
    %2644 = vmatpush2.msra.mxu0 0.0
    %2645 = vmatprep.subr.mxu0 0.0
    %2646 = vmatpush2.msra.mxu0 0.0
    %2647 = vmatprep.subr.mxu0 0.0
    %2648 = vmatpush2.msra.mxu0 0.0
    %2649 = vmatprep.subr.mxu0 0.0
    %2650 = vmatpush2.msra.mxu0 0.0
    %2651 = vmatprep.subr.mxu0 0.0
    %2652 = vmatpush2.msra.mxu0 0.0
    %2653 = vmatprep.subr.mxu0 0.0
    %2654 = vmatpush2.msra.mxu0 0.0
    %2655 = vmatprep.subr.mxu0 0.0
    %2656 = vmatpush2.msra.mxu0 0.0
    %2657 = vmatprep.subr.mxu0 0.0
    %2658 = vmatpush2.msra.mxu0 0.0
    %2659 = vmatprep.subr.mxu0 0.0
    %2660 = vmatpush2.msra.mxu0 0.0
    %2661 = vmatprep.subr.mxu0 0.0
    %2662 = vmatpush2.msra.mxu0 0.0
    %2663 = vmatprep.mubr.f32.mxu0 0.0
    %2664 = vmatmul.mubr.f32.gmra.mxu0 %v2597
    %v2665 = vpop.f32.mrf.mxu0
    %v2666 = vadd.f32 %v2595, %v2665
    %v2667 = vpop.f32.mrf.mxu0
    %2668 = vdwg.mxu0
    %vm2669 = vcmask 58368
    %2670 = vst.msk [vmem:[#allocation7] sm:$0x3] %vm2669, %v2666
    // Predicated region
    $region14: #{forward.1} parent=1 // pred_check
      _
    $region15: #{forward.1} parent=1 // pred_check_branch
      %2672 = sbr.rel (0) target = $region17
    $region16: #{forward.1} parent=1 // pred_region
      %s2674 = ssub.s32 32, 32
      %2675 = vsyncadd [#allocation6], %s2674
      %s2677 = sshll.u32 [#allocation7], 4
      %s2678 = int_to_ptr.vmem [resolvable:$true] %s2677
      %2680 = dma.vmem_to_hbm [thread:$0]  %s2678, 32, %s2, [#allocation6]
    $region17: #{forward.1} parent=1 // pred_fallthru
      _
    // Predicated region
    $region18: #{forward.1} parent=1 // pred_check
      _
    $region19: #{forward.1} parent=1 // pred_check_branch
      %2682 = sbr.rel (0) target = $region21
    $region20: #{forward.1} parent=1 // pred_region
      %2683 = dma.done [#allocation6], 32
    $region21: #{forward.1} parent=1 // pred_fallthru
      _
    %2684 = vsyncpa [#allocation5], 1
    %2685 = vsyncpa [#allocation6], 1

</llo_original>
